<compile_context>
chip_gen: v6e
topology: v6e:2x2x1
jax: 0.10.0
libtpu: 0.0.40
codegen_flags: <defaults>
</compile_context>

<pallas_src>
import jax
import jax.numpy as jnp
from jax.experimental import pallas as pl
from jax.experimental.pallas import tpu as pltpu

KH = 5  # conv kernel height (5x5 'same' convs)


# ------------------------------- fused kernel -------------------------------
def fused_network_kernel(x_tb_ref, x0b_ref, wih_ref, whh_ref, blstm_ref,
                         band1_ref, b1_ref, band2_ref, b2_ref,
                         out_ref, feat1_ref, feat2_ref):
    # x_tb  : (T*B, 2W) f32, time-major (row = t*B + b)  -> LSTM input
    # x0b   : (B*T, W)  bf16, batch-major (row = b*T + t) -> conv channel 1
    # wih   : (2W, 4W) f32   weight_ih_l0^T
    # whh   : (W, 4W)  f32   weight_hh_l0^T
    # blstm : (1, 4W)  f32   b_ih + b_hh
    # band1 : (5, 2W, n1p) bf16 banded conv1 weights (n1p = 384, zero-padded)
    # b1    : (1, n1p) f32
    # band2 : (5, n1p, 5W) bf16 banded conv2 weights
    # b2    : (1, 5W)  f32
    # out   : (B, T, W) f32
    # feat1 : (B*Hp, 2W)  bf16 scratch (height-padded conv1 input)
    # feat2 : (B*Hp, n1p) bf16 scratch (height-padded conv2 input)
    B, T, Wd = out_ref.shape
    Hp = T + KH - 1                      # padded rows per batch block
    M = B * Hp - (KH - 1)                # fused-conv output rows (incl. garbage)
    n1 = feat1_ref.shape[1]              # 2W
    n1p = feat2_ref.shape[1]             # padded Cout1*W
    n2 = band2_ref.shape[2]              # Cout2*W
    cout2 = n2 // Wd

    # ---- zero ONLY the conv height-pad rows (interior is fully overwritten) ----
    z1 = jnp.zeros((2, n1), feat1_ref.dtype)
    z2 = jnp.zeros((2, n1p), feat2_ref.dtype)
    for b in range(B):
        base = b * Hp
        feat1_ref[base:base + 2, :] = z1
        feat1_ref[base + Hp - 2:base + Hp, :] = z1
        feat2_ref[base:base + 2, :] = z2
        feat2_ref[base + Hp - 2:base + Hp, :] = z2

    # ---------------- LSTM (single layer, h0 = c0 = 0) ----------------
    # Input projection hoisted out of the recurrence: one merged matmul over
    # all (t, b) rows with the bias folded in.
    xg = (jnp.dot(x_tb_ref[...], wih_ref[...],
                  preferred_element_type=jnp.float32) + blstm_ref[...])  # (T*B, 4W)
    whh = whh_ref[...]
    h = jnp.zeros((B, Wd), jnp.float32)
    c = jnp.zeros((B, Wd), jnp.float32)
    hs = []
    for t in range(T):                               # static unroll (T = 8)
        g = xg[t * B:(t + 1) * B, :] + jnp.dot(h, whh,
                                               preferred_element_type=jnp.float32)
        # PyTorch gate order: i, f, g, o.  Transcendentals only on needed lanes.
        ifg = jax.nn.sigmoid(g[:, 0:2 * Wd])
        i_g = ifg[:, 0:Wd]
        f_g = ifg[:, Wd:2 * Wd]
        g_g = jnp.tanh(g[:, 2 * Wd:3 * Wd])
        o_g = jax.nn.sigmoid(g[:, 3 * Wd:4 * Wd])
        c = f_g * c + i_g * g_g
        h = o_g * jnp.tanh(c)
        hs.append(h)

    # ---- one wide (T, 2W) store per batch: lanes = [LSTM h | x0] channels ----
    for b in range(B):
        base = b * Hp
        h_rows = jnp.concatenate([hs[t][b:b + 1, :] for t in range(T)], axis=0)
        blk = jnp.concatenate(
            [h_rows.astype(feat1_ref.dtype), x0b_ref[b * T:(b + 1) * T, :]],
            axis=1)                                   # (T, 2W) bf16
        feat1_ref[base + 2:base + 2 + T, :] = blk

    # --------- conv1 + tanh: 5 tall banded matmuls over both batch blocks ---------
    acc1 = jnp.zeros((M, n1p), jnp.float32)
    for ky in range(KH):
        acc1 = acc1 + jnp.dot(feat1_ref[ky:ky + M, :], band1_ref[ky],
                              preferred_element_type=jnp.float32)
    b1 = b1_ref[...]
    for b in range(B):
        base = b * Hp
        feat2_ref[base + 2:base + 2 + T, :] = \
            jnp.tanh(acc1[base:base + T, :] + b1).astype(feat2_ref.dtype)

    # --------- conv2 + tanh + channel-sum ---------
    acc2 = jnp.zeros((M, n2), jnp.float32)
    for ky in range(KH):
        acc2 = acc2 + jnp.dot(feat2_ref[ky:ky + M, :], band2_ref[ky],
                              preferred_element_type=jnp.float32)
    b2 = b2_ref[...]
    for b in range(B):
        base = b * Hp
        y2 = jnp.tanh(acc2[base:base + T, :] + b2)    # (T, Cout2*W)
        osum = y2[:, 0:Wd]
        for co in range(1, cout2):                    # sum over output channels
            osum = osum + y2[:, co * Wd:(co + 1) * Wd]
        out_ref[b] = osum


# ---------------------- one-time weight preprocessing ------------------------
def _make_band(wconv, width):
    """Banded weights for a KxK 'same' conv expressed as K row-shifted matmuls.

    band[ky, ci*W + wi, co*W + wo] = wconv[co, ci, ky, wi - wo + K//2]
    (zero where kx falls outside the kernel -> width 'same' padding).
    """
    cout, cin, kh, kw = wconv.shape
    wi = jnp.arange(width)[:, None]
    wo = jnp.arange(width)[None, :]
    kx = wi - wo + (kw // 2)
    valid = ((kx >= 0) & (kx < kw)).astype(wconv.dtype)
    kx_c = jnp.clip(kx, 0, kw - 1)
    wt = jnp.transpose(wconv, (2, 1, 0, 3))           # (KH, Cin, Cout, KW)
    band = wt[:, :, :, kx_c]                          # (KH, Cin, Cout, Wi, Wo)
    band = band * valid[None, None, None, :, :]
    band = jnp.transpose(band, (0, 1, 3, 2, 4))       # (KH, Cin, Wi, Cout, Wo)
    return band.reshape(kh, cin * width, cout * width)


def _round_up(n, m):
    return ((n + m - 1) // m) * m


def prepare_params(params, width):
    """Run ONCE per parameter set (hoisted out of the per-call jit)."""
    Wd = width
    wih_t = params["wih"].T.astype(jnp.float32)                  # (2W, 4W)
    whh_t = params["whh"].T.astype(jnp.float32)                  # (W, 4W)
    b_lstm = (params["b_ih"] + params["b_hh"])[None, :].astype(jnp.float32)

    band1 = _make_band(params["cw1"].astype(jnp.float32), Wd)    # (5, 2W, 10W)
    band2 = _make_band(params["cw2"].astype(jnp.float32), Wd)    # (5, 10W, 5W)
    b1row = jnp.repeat(params["cb1"].astype(jnp.float32), Wd)[None, :]
    b2row = jnp.repeat(params["cb2"].astype(jnp.float32), Wd)[None, :]

    # Lane-dense padding of the conv1 output space (10W=320 -> 384) with zero
    # columns in band1/b1 and matching zero rows in band2.
    n1 = band1.shape[2]
    pad = _round_up(n1, 128) - n1
    band1 = jnp.pad(band1, ((0, 0), (0, 0), (0, pad)))
    b1row = jnp.pad(b1row, ((0, 0), (0, pad)))
    band2 = jnp.pad(band2, ((0, 0), (0, pad), (0, 0)))

    return dict(
        wih_t=wih_t, whh_t=whh_t, b_lstm=b_lstm,
        band1=band1.astype(jnp.bfloat16), b1row=b1row,
        band2=band2.astype(jnp.bfloat16), b2row=b2row,
    )


def _full_spec(arr):
    nd = arr.ndim
    return pl.BlockSpec(arr.shape, lambda i, nd=nd: (0,) * nd)


# ------------------------------- full forward --------------------------------
@jax.jit
def network_forward(x0, x1, prep):
    B, T, Wd = x0.shape
    Hp = T + KH - 1

    # Tiny input-layout glue; everything heavy stays inside the kernel.
    x_tb = jnp.transpose(jnp.concatenate([x0, x1], axis=2), (1, 0, 2)) \
              .reshape(T * B, 2 * Wd).astype(jnp.float32)
    x0_bt = x0.reshape(B * T, Wd).astype(jnp.bfloat16)

    in_arrays = (x_tb, x0_bt, prep["wih_t"], prep["whh_t"], prep["b_lstm"],
                 prep["band1"], prep["b1row"], prep["band2"], prep["b2row"])
    n1p = prep["band1"].shape[2]

    out = pl.pallas_call(
        fused_network_kernel,
        grid=(1,),
        in_specs=[_full_spec(a) for a in in_arrays],
        out_specs=pl.BlockSpec((B, T, Wd), lambda i: (0, 0, 0)),
        out_shape=jax.ShapeDtypeStruct((B, T, Wd), jnp.float32),
        scratch_shapes=[
            pltpu.VMEM((B * Hp, 2 * Wd), jnp.bfloat16),    # conv1 input (padded H)
            pltpu.VMEM((B * Hp, n1p), jnp.bfloat16),       # conv2 input (padded H)
        ],
        compiler_params=pltpu.CompilerParams(dimension_semantics=("arbitrary",)),
    )(*in_arrays)
    return out


# --------------------------------- params ------------------------------------
def init_params(width, key):
    ks = jax.random.split(key, 8)

    def u(k, shape, s):
        return jax.random.uniform(k, shape, jnp.float32, -s, s)

    s_lstm = 1.0 / float(width) ** 0.5
    s1 = 1.0 / float(2 * 5 * 5) ** 0.5
    s2 = 1.0 / float(10 * 5 * 5) ** 0.5
    return dict(
        wih=u(ks[0], (4 * width, 2 * width), s_lstm),   # LSTM weight_ih_l0
        whh=u(ks[1], (4 * width, width), s_lstm),       # LSTM weight_hh_l0
        b_ih=u(ks[2], (4 * width,), s_lstm),
        b_hh=u(ks[3], (4 * width,), s_lstm),
        cw1=u(ks[4], (10, 2, 5, 5), s1),                # Conv2d(2, 10, 5, 'same')
        cb1=u(ks[5], (10,), s1),
        cw2=u(ks[6], (5, 10, 5, 5), s2),                # Conv2d(10, 5, 5, 'same')
        cb2=u(ks[7], (5,), s2),
        # TODO(synk): cnn3/tanh3 exist in the PyTorch module but are unused in
        # forward(); intentionally not implemented.
    )


if __name__ == "__main__":
    B, T, Wd = 2, 8, 32                                  # width = 32
    key = jax.random.PRNGKey(0)
    k0, k1 = jax.random.split(key)
    x0 = jax.random.normal(k0, (B, T, Wd), jnp.float32)
    x1 = jax.random.normal(k1, (B, T, Wd), jnp.float32)

    params = init_params(Wd, jax.random.PRNGKey(42))
    prep = prepare_params(params, Wd)                    # one-time weight prep

    out = network_forward(x0, x1, prep)
    out = jax.block_until_ready(out)
    assert out.shape == (B, T, Wd) and out.dtype == jnp.float32
    print("KERNEL_OK")
</pallas_src>

<mosaic_0001>
module attributes {stable_mosaic.version = 11 : i64} {
  func.func @fused_network_kernel(%arg0: i32, %arg1: memref<16x64xf32, #tpu.memory_space<vmem>>, %arg2: memref<16x32xbf16, #tpu.memory_space<vmem>>, %arg3: memref<64x128xf32, #tpu.memory_space<vmem>>, %arg4: memref<32x128xf32, #tpu.memory_space<vmem>>, %arg5: memref<1x128xf32, #tpu.memory_space<vmem>>, %arg6: memref<5x64x384xbf16, #tpu.memory_space<vmem>>, %arg7: memref<1x384xf32, #tpu.memory_space<vmem>>, %arg8: memref<5x384x160xbf16, #tpu.memory_space<vmem>>, %arg9: memref<1x160xf32, #tpu.memory_space<vmem>>, %arg10: memref<2x8x32xf32, #tpu.memory_space<vmem>>, %arg11: memref<24x64xbf16, #tpu.memory_space<vmem>>, %arg12: memref<24x384xbf16, #tpu.memory_space<vmem>>) attributes {dimension_semantics = [#tpu.dimension_semantics<arbitrary>], iteration_bounds = array<i64: 1>, scalar_prefetch = 0 : i64, scratch_operands = 2 : i64, tpu.core_type = #tpu.core_type<tc>, window_params = [{pipeline_mode = #tpu.pipeline_mode<synchronous>, transform_indices = @transform_0, window_bounds = array<i64: 16, 64>}, {pipeline_mode = #tpu.pipeline_mode<synchronous>, transform_indices = @transform_1, window_bounds = array<i64: 16, 32>}, {pipeline_mode = #tpu.pipeline_mode<synchronous>, transform_indices = @transform_2, window_bounds = array<i64: 64, 128>}, {pipeline_mode = #tpu.pipeline_mode<synchronous>, transform_indices = @transform_3, window_bounds = array<i64: 32, 128>}, {pipeline_mode = #tpu.pipeline_mode<synchronous>, transform_indices = @transform_4, window_bounds = array<i64: 1, 128>}, {pipeline_mode = #tpu.pipeline_mode<synchronous>, transform_indices = @transform_5, window_bounds = array<i64: 5, 64, 384>}, {pipeline_mode = #tpu.pipeline_mode<synchronous>, transform_indices = @transform_6, window_bounds = array<i64: 1, 384>}, {pipeline_mode = #tpu.pipeline_mode<synchronous>, transform_indices = @transform_7, window_bounds = array<i64: 5, 384, 160>}, {pipeline_mode = #tpu.pipeline_mode<synchronous>, transform_indices = @transform_8, window_bounds = array<i64: 1, 160>}, {pipeline_mode = #tpu.pipeline_mode<synchronous>, transform_indices = @transform_9, window_bounds = array<i64: 2, 8, 32>}]} {
    %cst = arith.constant 0.000000e+00 : bf16
    %0 = vector.broadcast %cst : bf16 to vector<2x64xbf16>
    %cst_0 = arith.constant 0.000000e+00 : bf16
    %1 = vector.broadcast %cst_0 : bf16 to vector<2x384xbf16>
    %c0 = arith.constant 0 : index
    %c0_1 = arith.constant 0 : index
    %2 = vector.load %arg11[%c0, %c0_1] : memref<24x64xbf16, #tpu.memory_space<vmem>>, vector<2x64xbf16>
    tpu.vector_store %arg11[%c0, %c0_1], %0 {strides = array<i32>} : memref<24x64xbf16, #tpu.memory_space<vmem>>, vector<2x64xbf16>,
    %c10 = arith.constant 10 : index
    %c0_2 = arith.constant 0 : index
    %3 = vector.load %arg11[%c10, %c0_2] : memref<24x64xbf16, #tpu.memory_space<vmem>>, vector<2x64xbf16>
    tpu.vector_store %arg11[%c10, %c0_2], %0 {strides = array<i32>} : memref<24x64xbf16, #tpu.memory_space<vmem>>, vector<2x64xbf16>,
    %c0_3 = arith.constant 0 : index
    %c0_4 = arith.constant 0 : index
    %4 = vector.load %arg12[%c0_3, %c0_4] : memref<24x384xbf16, #tpu.memory_space<vmem>>, vector<2x384xbf16>
    tpu.vector_store %arg12[%c0_3, %c0_4], %1 {strides = array<i32>} : memref<24x384xbf16, #tpu.memory_space<vmem>>, vector<2x384xbf16>,
    %c10_5 = arith.constant 10 : index
    %c0_6 = arith.constant 0 : index
    %5 = vector.load %arg12[%c10_5, %c0_6] : memref<24x384xbf16, #tpu.memory_space<vmem>>, vector<2x384xbf16>
    tpu.vector_store %arg12[%c10_5, %c0_6], %1 {strides = array<i32>} : memref<24x384xbf16, #tpu.memory_space<vmem>>, vector<2x384xbf16>,
    %c12 = arith.constant 12 : index
    %c0_7 = arith.constant 0 : index
    %6 = vector.load %arg11[%c12, %c0_7] : memref<24x64xbf16, #tpu.memory_space<vmem>>, vector<2x64xbf16>
    tpu.vector_store %arg11[%c12, %c0_7], %0 {strides = array<i32>} : memref<24x64xbf16, #tpu.memory_space<vmem>>, vector<2x64xbf16>,
    %c22 = arith.constant 22 : index
    %c0_8 = arith.constant 0 : index
    %7 = vector.load %arg11[%c22, %c0_8] : memref<24x64xbf16, #tpu.memory_space<vmem>>, vector<2x64xbf16>
    tpu.vector_store %arg11[%c22, %c0_8], %0 {strides = array<i32>} : memref<24x64xbf16, #tpu.memory_space<vmem>>, vector<2x64xbf16>,
    %c12_9 = arith.constant 12 : index
    %c0_10 = arith.constant 0 : index
    %8 = vector.load %arg12[%c12_9, %c0_10] : memref<24x384xbf16, #tpu.memory_space<vmem>>, vector<2x384xbf16>
    tpu.vector_store %arg12[%c12_9, %c0_10], %1 {strides = array<i32>} : memref<24x384xbf16, #tpu.memory_space<vmem>>, vector<2x384xbf16>,
    %c22_11 = arith.constant 22 : index
    %c0_12 = arith.constant 0 : index
    %9 = vector.load %arg12[%c22_11, %c0_12] : memref<24x384xbf16, #tpu.memory_space<vmem>>, vector<2x384xbf16>
    tpu.vector_store %arg12[%c22_11, %c0_12], %1 {strides = array<i32>} : memref<24x384xbf16, #tpu.memory_space<vmem>>, vector<2x384xbf16>,
    %c0_13 = arith.constant 0 : index
    %c0_14 = arith.constant 0 : index
    %10 = vector.load %arg1[%c0_13, %c0_14] : memref<16x64xf32, #tpu.memory_space<vmem>>, vector<16x64xf32>
    %c0_15 = arith.constant 0 : index
    %c0_16 = arith.constant 0 : index
    %11 = vector.load %arg3[%c0_15, %c0_16] : memref<64x128xf32, #tpu.memory_space<vmem>>, vector<64x128xf32>
    %cst_17 = arith.constant dense<0.000000e+00> : vector<16x128xf32>
    %12 = tpu.matmul %10, %11, %cst_17 {dimension_numbers = #tpu.dot_dimension_numbers<[1], [0], [0], [1], [0, 0, 1, 1], [], []>} : vector<16x64xf32>, vector<64x128xf32>, vector<16x128xf32> -> vector<16x128xf32>
    %c0_18 = arith.constant 0 : index
    %c0_19 = arith.constant 0 : index
    %13 = vector.load %arg5[%c0_18, %c0_19] : memref<1x128xf32, #tpu.memory_space<vmem>>, vector<1x128xf32>
    %14 = vector.broadcast %13 : vector<1x128xf32> to vector<16x128xf32>
    %15 = arith.addf %12, %14 : vector<16x128xf32>
    %c0_20 = arith.constant 0 : index
    %c0_21 = arith.constant 0 : index
    %16 = vector.load %arg4[%c0_20, %c0_21] : memref<32x128xf32, #tpu.memory_space<vmem>>, vector<32x128xf32>
    %cst_22 = arith.constant 0.000000e+00 : f32
    %17 = vector.broadcast %cst_22 : f32 to vector<2x32xf32>
    %cst_23 = arith.constant 0.000000e+00 : f32
    %18 = vector.broadcast %cst_23 : f32 to vector<2x32xf32>
    %19 = vector.extract_strided_slice %15 {offsets = [0, 0], sizes = [2, 128], strides = [1, 1]} : vector<16x128xf32> to vector<2x128xf32>
    %cst_24 = arith.constant dense<0.000000e+00> : vector<2x128xf32>
    %20 = tpu.matmul %17, %16, %cst_24 {dimension_numbers = #tpu.dot_dimension_numbers<[1], [0], [0], [1], [0, 0, 1, 1], [], []>} : vector<2x32xf32>, vector<32x128xf32>, vector<2x128xf32> -> vector<2x128xf32>
    %21 = arith.addf %19, %20 : vector<2x128xf32>
    %22 = vector.extract_strided_slice %21 {offsets = [0, 0], sizes = [2, 64], strides = [1, 1]} : vector<2x128xf32> to vector<2x64xf32>
    %23 = arith.negf %22 : vector<2x64xf32>
    %24 = math.exp %23 : vector<2x64xf32>
    %cst_25 = arith.constant 1.000000e+00 : f32
    %25 = vector.broadcast %cst_25 : f32 to vector<2x64xf32>
    %26 = arith.addf %25, %24 : vector<2x64xf32>
    %27 = arith.divf %25, %26 : vector<2x64xf32>
    %28 = vector.extract_strided_slice %27 {offsets = [0, 0], sizes = [2, 32], strides = [1, 1]} : vector<2x64xf32> to vector<2x32xf32>
    %29 = vector.extract_strided_slice %27 {offsets = [0, 32], sizes = [2, 32], strides = [1, 1]} : vector<2x64xf32> to vector<2x32xf32>
    %30 = vector.extract_strided_slice %21 {offsets = [0, 64], sizes = [2, 32], strides = [1, 1]} : vector<2x128xf32> to vector<2x32xf32>
    %31 = math.tanh %30 : vector<2x32xf32>
    %32 = vector.extract_strided_slice %21 {offsets = [0, 96], sizes = [2, 32], strides = [1, 1]} : vector<2x128xf32> to vector<2x32xf32>
    %33 = arith.negf %32 : vector<2x32xf32>
    %34 = math.exp %33 : vector<2x32xf32>
    %cst_26 = arith.constant 1.000000e+00 : f32
    %35 = vector.broadcast %cst_26 : f32 to vector<2x32xf32>
    %36 = arith.addf %35, %34 : vector<2x32xf32>
    %37 = arith.divf %35, %36 : vector<2x32xf32>
    %38 = arith.mulf %29, %18 : vector<2x32xf32>
    %39 = arith.mulf %28, %31 : vector<2x32xf32>
    %40 = arith.addf %38, %39 : vector<2x32xf32>
    %41 = math.tanh %40 : vector<2x32xf32>
    %42 = arith.mulf %37, %41 : vector<2x32xf32>
    %43 = vector.extract_strided_slice %15 {offsets = [2, 0], sizes = [2, 128], strides = [1, 1]} : vector<16x128xf32> to vector<2x128xf32>
    %cst_27 = arith.constant dense<0.000000e+00> : vector<2x128xf32>
    %44 = tpu.matmul %42, %16, %cst_27 {dimension_numbers = #tpu.dot_dimension_numbers<[1], [0], [0], [1], [0, 0, 1, 1], [], []>} : vector<2x32xf32>, vector<32x128xf32>, vector<2x128xf32> -> vector<2x128xf32>
    %45 = arith.addf %43, %44 : vector<2x128xf32>
    %46 = vector.extract_strided_slice %45 {offsets = [0, 0], sizes = [2, 64], strides = [1, 1]} : vector<2x128xf32> to vector<2x64xf32>
    %47 = arith.negf %46 : vector<2x64xf32>
    %48 = math.exp %47 : vector<2x64xf32>
    %cst_28 = arith.constant 1.000000e+00 : f32
    %49 = vector.broadcast %cst_28 : f32 to vector<2x64xf32>
    %50 = arith.addf %49, %48 : vector<2x64xf32>
    %51 = arith.divf %49, %50 : vector<2x64xf32>
    %52 = vector.extract_strided_slice %51 {offsets = [0, 0], sizes = [2, 32], strides = [1, 1]} : vector<2x64xf32> to vector<2x32xf32>
    %53 = vector.extract_strided_slice %51 {offsets = [0, 32], sizes = [2, 32], strides = [1, 1]} : vector<2x64xf32> to vector<2x32xf32>
    %54 = vector.extract_strided_slice %45 {offsets = [0, 64], sizes = [2, 32], strides = [1, 1]} : vector<2x128xf32> to vector<2x32xf32>
    %55 = math.tanh %54 : vector<2x32xf32>
    %56 = vector.extract_strided_slice %45 {offsets = [0, 96], sizes = [2, 32], strides = [1, 1]} : vector<2x128xf32> to vector<2x32xf32>
    %57 = arith.negf %56 : vector<2x32xf32>
    %58 = math.exp %57 : vector<2x32xf32>
    %cst_29 = arith.constant 1.000000e+00 : f32
    %59 = vector.broadcast %cst_29 : f32 to vector<2x32xf32>
    %60 = arith.addf %59, %58 : vector<2x32xf32>
    %61 = arith.divf %59, %60 : vector<2x32xf32>
    %62 = arith.mulf %53, %40 : vector<2x32xf32>
    %63 = arith.mulf %52, %55 : vector<2x32xf32>
    %64 = arith.addf %62, %63 : vector<2x32xf32>
    %65 = math.tanh %64 : vector<2x32xf32>
    %66 = arith.mulf %61, %65 : vector<2x32xf32>
    %67 = vector.extract_strided_slice %15 {offsets = [4, 0], sizes = [2, 128], strides = [1, 1]} : vector<16x128xf32> to vector<2x128xf32>
    %cst_30 = arith.constant dense<0.000000e+00> : vector<2x128xf32>
    %68 = tpu.matmul %66, %16, %cst_30 {dimension_numbers = #tpu.dot_dimension_numbers<[1], [0], [0], [1], [0, 0, 1, 1], [], []>} : vector<2x32xf32>, vector<32x128xf32>, vector<2x128xf32> -> vector<2x128xf32>
    %69 = arith.addf %67, %68 : vector<2x128xf32>
    %70 = vector.extract_strided_slice %69 {offsets = [0, 0], sizes = [2, 64], strides = [1, 1]} : vector<2x128xf32> to vector<2x64xf32>
    %71 = arith.negf %70 : vector<2x64xf32>
    %72 = math.exp %71 : vector<2x64xf32>
    %cst_31 = arith.constant 1.000000e+00 : f32
    %73 = vector.broadcast %cst_31 : f32 to vector<2x64xf32>
    %74 = arith.addf %73, %72 : vector<2x64xf32>
    %75 = arith.divf %73, %74 : vector<2x64xf32>
    %76 = vector.extract_strided_slice %75 {offsets = [0, 0], sizes = [2, 32], strides = [1, 1]} : vector<2x64xf32> to vector<2x32xf32>
    %77 = vector.extract_strided_slice %75 {offsets = [0, 32], sizes = [2, 32], strides = [1, 1]} : vector<2x64xf32> to vector<2x32xf32>
    %78 = vector.extract_strided_slice %69 {offsets = [0, 64], sizes = [2, 32], strides = [1, 1]} : vector<2x128xf32> to vector<2x32xf32>
    %79 = math.tanh %78 : vector<2x32xf32>
    %80 = vector.extract_strided_slice %69 {offsets = [0, 96], sizes = [2, 32], strides = [1, 1]} : vector<2x128xf32> to vector<2x32xf32>
    %81 = arith.negf %80 : vector<2x32xf32>
    %82 = math.exp %81 : vector<2x32xf32>
    %cst_32 = arith.constant 1.000000e+00 : f32
    %83 = vector.broadcast %cst_32 : f32 to vector<2x32xf32>
    %84 = arith.addf %83, %82 : vector<2x32xf32>
    %85 = arith.divf %83, %84 : vector<2x32xf32>
    %86 = arith.mulf %77, %64 : vector<2x32xf32>
    %87 = arith.mulf %76, %79 : vector<2x32xf32>
    %88 = arith.addf %86, %87 : vector<2x32xf32>
    %89 = math.tanh %88 : vector<2x32xf32>
    %90 = arith.mulf %85, %89 : vector<2x32xf32>
    %91 = vector.extract_strided_slice %15 {offsets = [6, 0], sizes = [2, 128], strides = [1, 1]} : vector<16x128xf32> to vector<2x128xf32>
    %cst_33 = arith.constant dense<0.000000e+00> : vector<2x128xf32>
    %92 = tpu.matmul %90, %16, %cst_33 {dimension_numbers = #tpu.dot_dimension_numbers<[1], [0], [0], [1], [0, 0, 1, 1], [], []>} : vector<2x32xf32>, vector<32x128xf32>, vector<2x128xf32> -> vector<2x128xf32>
    %93 = arith.addf %91, %92 : vector<2x128xf32>
    %94 = vector.extract_strided_slice %93 {offsets = [0, 0], sizes = [2, 64], strides = [1, 1]} : vector<2x128xf32> to vector<2x64xf32>
    %95 = arith.negf %94 : vector<2x64xf32>
    %96 = math.exp %95 : vector<2x64xf32>
    %cst_34 = arith.constant 1.000000e+00 : f32
    %97 = vector.broadcast %cst_34 : f32 to vector<2x64xf32>
    %98 = arith.addf %97, %96 : vector<2x64xf32>
    %99 = arith.divf %97, %98 : vector<2x64xf32>
    %100 = vector.extract_strided_slice %99 {offsets = [0, 0], sizes = [2, 32], strides = [1, 1]} : vector<2x64xf32> to vector<2x32xf32>
    %101 = vector.extract_strided_slice %99 {offsets = [0, 32], sizes = [2, 32], strides = [1, 1]} : vector<2x64xf32> to vector<2x32xf32>
    %102 = vector.extract_strided_slice %93 {offsets = [0, 64], sizes = [2, 32], strides = [1, 1]} : vector<2x128xf32> to vector<2x32xf32>
    %103 = math.tanh %102 : vector<2x32xf32>
    %104 = vector.extract_strided_slice %93 {offsets = [0, 96], sizes = [2, 32], strides = [1, 1]} : vector<2x128xf32> to vector<2x32xf32>
    %105 = arith.negf %104 : vector<2x32xf32>
    %106 = math.exp %105 : vector<2x32xf32>
    %cst_35 = arith.constant 1.000000e+00 : f32
    %107 = vector.broadcast %cst_35 : f32 to vector<2x32xf32>
    %108 = arith.addf %107, %106 : vector<2x32xf32>
    %109 = arith.divf %107, %108 : vector<2x32xf32>
    %110 = arith.mulf %101, %88 : vector<2x32xf32>
    %111 = arith.mulf %100, %103 : vector<2x32xf32>
    %112 = arith.addf %110, %111 : vector<2x32xf32>
    %113 = math.tanh %112 : vector<2x32xf32>
    %114 = arith.mulf %109, %113 : vector<2x32xf32>
    %115 = vector.extract_strided_slice %15 {offsets = [8, 0], sizes = [2, 128], strides = [1, 1]} : vector<16x128xf32> to vector<2x128xf32>
    %cst_36 = arith.constant dense<0.000000e+00> : vector<2x128xf32>
    %116 = tpu.matmul %114, %16, %cst_36 {dimension_numbers = #tpu.dot_dimension_numbers<[1], [0], [0], [1], [0, 0, 1, 1], [], []>} : vector<2x32xf32>, vector<32x128xf32>, vector<2x128xf32> -> vector<2x128xf32>
    %117 = arith.addf %115, %116 : vector<2x128xf32>
    %118 = vector.extract_strided_slice %117 {offsets = [0, 0], sizes = [2, 64], strides = [1, 1]} : vector<2x128xf32> to vector<2x64xf32>
    %119 = arith.negf %118 : vector<2x64xf32>
    %120 = math.exp %119 : vector<2x64xf32>
    %cst_37 = arith.constant 1.000000e+00 : f32
    %121 = vector.broadcast %cst_37 : f32 to vector<2x64xf32>
    %122 = arith.addf %121, %120 : vector<2x64xf32>
    %123 = arith.divf %121, %122 : vector<2x64xf32>
    %124 = vector.extract_strided_slice %123 {offsets = [0, 0], sizes = [2, 32], strides = [1, 1]} : vector<2x64xf32> to vector<2x32xf32>
    %125 = vector.extract_strided_slice %123 {offsets = [0, 32], sizes = [2, 32], strides = [1, 1]} : vector<2x64xf32> to vector<2x32xf32>
    %126 = vector.extract_strided_slice %117 {offsets = [0, 64], sizes = [2, 32], strides = [1, 1]} : vector<2x128xf32> to vector<2x32xf32>
    %127 = math.tanh %126 : vector<2x32xf32>
    %128 = vector.extract_strided_slice %117 {offsets = [0, 96], sizes = [2, 32], strides = [1, 1]} : vector<2x128xf32> to vector<2x32xf32>
    %129 = arith.negf %128 : vector<2x32xf32>
    %130 = math.exp %129 : vector<2x32xf32>
    %cst_38 = arith.constant 1.000000e+00 : f32
    %131 = vector.broadcast %cst_38 : f32 to vector<2x32xf32>
    %132 = arith.addf %131, %130 : vector<2x32xf32>
    %133 = arith.divf %131, %132 : vector<2x32xf32>
    %134 = arith.mulf %125, %112 : vector<2x32xf32>
    %135 = arith.mulf %124, %127 : vector<2x32xf32>
    %136 = arith.addf %134, %135 : vector<2x32xf32>
    %137 = math.tanh %136 : vector<2x32xf32>
    %138 = arith.mulf %133, %137 : vector<2x32xf32>
    %139 = vector.extract_strided_slice %15 {offsets = [10, 0], sizes = [2, 128], strides = [1, 1]} : vector<16x128xf32> to vector<2x128xf32>
    %cst_39 = arith.constant dense<0.000000e+00> : vector<2x128xf32>
    %140 = tpu.matmul %138, %16, %cst_39 {dimension_numbers = #tpu.dot_dimension_numbers<[1], [0], [0], [1], [0, 0, 1, 1], [], []>} : vector<2x32xf32>, vector<32x128xf32>, vector<2x128xf32> -> vector<2x128xf32>
    %141 = arith.addf %139, %140 : vector<2x128xf32>
    %142 = vector.extract_strided_slice %141 {offsets = [0, 0], sizes = [2, 64], strides = [1, 1]} : vector<2x128xf32> to vector<2x64xf32>
    %143 = arith.negf %142 : vector<2x64xf32>
    %144 = math.exp %143 : vector<2x64xf32>
    %cst_40 = arith.constant 1.000000e+00 : f32
    %145 = vector.broadcast %cst_40 : f32 to vector<2x64xf32>
    %146 = arith.addf %145, %144 : vector<2x64xf32>
    %147 = arith.divf %145, %146 : vector<2x64xf32>
    %148 = vector.extract_strided_slice %147 {offsets = [0, 0], sizes = [2, 32], strides = [1, 1]} : vector<2x64xf32> to vector<2x32xf32>
    %149 = vector.extract_strided_slice %147 {offsets = [0, 32], sizes = [2, 32], strides = [1, 1]} : vector<2x64xf32> to vector<2x32xf32>
    %150 = vector.extract_strided_slice %141 {offsets = [0, 64], sizes = [2, 32], strides = [1, 1]} : vector<2x128xf32> to vector<2x32xf32>
    %151 = math.tanh %150 : vector<2x32xf32>
    %152 = vector.extract_strided_slice %141 {offsets = [0, 96], sizes = [2, 32], strides = [1, 1]} : vector<2x128xf32> to vector<2x32xf32>
    %153 = arith.negf %152 : vector<2x32xf32>
    %154 = math.exp %153 : vector<2x32xf32>
    %cst_41 = arith.constant 1.000000e+00 : f32
    %155 = vector.broadcast %cst_41 : f32 to vector<2x32xf32>
    %156 = arith.addf %155, %154 : vector<2x32xf32>
    %157 = arith.divf %155, %156 : vector<2x32xf32>
    %158 = arith.mulf %149, %136 : vector<2x32xf32>
    %159 = arith.mulf %148, %151 : vector<2x32xf32>
    %160 = arith.addf %158, %159 : vector<2x32xf32>
    %161 = math.tanh %160 : vector<2x32xf32>
    %162 = arith.mulf %157, %161 : vector<2x32xf32>
    %163 = vector.extract_strided_slice %15 {offsets = [12, 0], sizes = [2, 128], strides = [1, 1]} : vector<16x128xf32> to vector<2x128xf32>
    %cst_42 = arith.constant dense<0.000000e+00> : vector<2x128xf32>
    %164 = tpu.matmul %162, %16, %cst_42 {dimension_numbers = #tpu.dot_dimension_numbers<[1], [0], [0], [1], [0, 0, 1, 1], [], []>} : vector<2x32xf32>, vector<32x128xf32>, vector<2x128xf32> -> vector<2x128xf32>
    %165 = arith.addf %163, %164 : vector<2x128xf32>
    %166 = vector.extract_strided_slice %165 {offsets = [0, 0], sizes = [2, 64], strides = [1, 1]} : vector<2x128xf32> to vector<2x64xf32>
    %167 = arith.negf %166 : vector<2x64xf32>
    %168 = math.exp %167 : vector<2x64xf32>
    %cst_43 = arith.constant 1.000000e+00 : f32
    %169 = vector.broadcast %cst_43 : f32 to vector<2x64xf32>
    %170 = arith.addf %169, %168 : vector<2x64xf32>
    %171 = arith.divf %169, %170 : vector<2x64xf32>
    %172 = vector.extract_strided_slice %171 {offsets = [0, 0], sizes = [2, 32], strides = [1, 1]} : vector<2x64xf32> to vector<2x32xf32>
    %173 = vector.extract_strided_slice %171 {offsets = [0, 32], sizes = [2, 32], strides = [1, 1]} : vector<2x64xf32> to vector<2x32xf32>
    %174 = vector.extract_strided_slice %165 {offsets = [0, 64], sizes = [2, 32], strides = [1, 1]} : vector<2x128xf32> to vector<2x32xf32>
    %175 = math.tanh %174 : vector<2x32xf32>
    %176 = vector.extract_strided_slice %165 {offsets = [0, 96], sizes = [2, 32], strides = [1, 1]} : vector<2x128xf32> to vector<2x32xf32>
    %177 = arith.negf %176 : vector<2x32xf32>
    %178 = math.exp %177 : vector<2x32xf32>
    %cst_44 = arith.constant 1.000000e+00 : f32
    %179 = vector.broadcast %cst_44 : f32 to vector<2x32xf32>
    %180 = arith.addf %179, %178 : vector<2x32xf32>
    %181 = arith.divf %179, %180 : vector<2x32xf32>
    %182 = arith.mulf %173, %160 : vector<2x32xf32>
    %183 = arith.mulf %172, %175 : vector<2x32xf32>
    %184 = arith.addf %182, %183 : vector<2x32xf32>
    %185 = math.tanh %184 : vector<2x32xf32>
    %186 = arith.mulf %181, %185 : vector<2x32xf32>
    %187 = vector.extract_strided_slice %15 {offsets = [14, 0], sizes = [2, 128], strides = [1, 1]} : vector<16x128xf32> to vector<2x128xf32>
    %cst_45 = arith.constant dense<0.000000e+00> : vector<2x128xf32>
    %188 = tpu.matmul %186, %16, %cst_45 {dimension_numbers = #tpu.dot_dimension_numbers<[1], [0], [0], [1], [0, 0, 1, 1], [], []>} : vector<2x32xf32>, vector<32x128xf32>, vector<2x128xf32> -> vector<2x128xf32>
    %189 = arith.addf %187, %188 : vector<2x128xf32>
    %190 = vector.extract_strided_slice %189 {offsets = [0, 0], sizes = [2, 64], strides = [1, 1]} : vector<2x128xf32> to vector<2x64xf32>
    %191 = arith.negf %190 : vector<2x64xf32>
    %192 = math.exp %191 : vector<2x64xf32>
    %cst_46 = arith.constant 1.000000e+00 : f32
    %193 = vector.broadcast %cst_46 : f32 to vector<2x64xf32>
    %194 = arith.addf %193, %192 : vector<2x64xf32>
    %195 = arith.divf %193, %194 : vector<2x64xf32>
    %196 = vector.extract_strided_slice %195 {offsets = [0, 0], sizes = [2, 32], strides = [1, 1]} : vector<2x64xf32> to vector<2x32xf32>
    %197 = vector.extract_strided_slice %195 {offsets = [0, 32], sizes = [2, 32], strides = [1, 1]} : vector<2x64xf32> to vector<2x32xf32>
    %198 = vector.extract_strided_slice %189 {offsets = [0, 64], sizes = [2, 32], strides = [1, 1]} : vector<2x128xf32> to vector<2x32xf32>
    %199 = math.tanh %198 : vector<2x32xf32>
    %200 = vector.extract_strided_slice %189 {offsets = [0, 96], sizes = [2, 32], strides = [1, 1]} : vector<2x128xf32> to vector<2x32xf32>
    %201 = arith.negf %200 : vector<2x32xf32>
    %202 = math.exp %201 : vector<2x32xf32>
    %cst_47 = arith.constant 1.000000e+00 : f32
    %203 = vector.broadcast %cst_47 : f32 to vector<2x32xf32>
    %204 = arith.addf %203, %202 : vector<2x32xf32>
    %205 = arith.divf %203, %204 : vector<2x32xf32>
    %206 = arith.mulf %197, %184 : vector<2x32xf32>
    %207 = arith.mulf %196, %199 : vector<2x32xf32>
    %208 = arith.addf %206, %207 : vector<2x32xf32>
    %209 = math.tanh %208 : vector<2x32xf32>
    %210 = arith.mulf %205, %209 : vector<2x32xf32>
    %211 = vector.extract_strided_slice %42 {offsets = [0, 0], sizes = [1, 32], strides = [1, 1]} : vector<2x32xf32> to vector<1x32xf32>
    %212 = vector.extract_strided_slice %66 {offsets = [0, 0], sizes = [1, 32], strides = [1, 1]} : vector<2x32xf32> to vector<1x32xf32>
    %213 = vector.extract_strided_slice %90 {offsets = [0, 0], sizes = [1, 32], strides = [1, 1]} : vector<2x32xf32> to vector<1x32xf32>
    %214 = vector.extract_strided_slice %114 {offsets = [0, 0], sizes = [1, 32], strides = [1, 1]} : vector<2x32xf32> to vector<1x32xf32>
    %215 = vector.extract_strided_slice %138 {offsets = [0, 0], sizes = [1, 32], strides = [1, 1]} : vector<2x32xf32> to vector<1x32xf32>
    %216 = vector.extract_strided_slice %162 {offsets = [0, 0], sizes = [1, 32], strides = [1, 1]} : vector<2x32xf32> to vector<1x32xf32>
    %217 = vector.extract_strided_slice %186 {offsets = [0, 0], sizes = [1, 32], strides = [1, 1]} : vector<2x32xf32> to vector<1x32xf32>
    %218 = vector.extract_strided_slice %210 {offsets = [0, 0], sizes = [1, 32], strides = [1, 1]} : vector<2x32xf32> to vector<1x32xf32>
    %219 = tpu.concatenate %211, %212, %213, %214, %215, %216, %217, %218 in 0 : vector<1x32xf32>, vector<1x32xf32>, vector<1x32xf32>, vector<1x32xf32>, vector<1x32xf32>, vector<1x32xf32>, vector<1x32xf32>, vector<1x32xf32> -> vector<8x32xf32>
    %220 = arith.truncf %219 : vector<8x32xf32> to vector<8x32xbf16>
    %c0_48 = arith.constant 0 : index
    %c0_49 = arith.constant 0 : index
    %221 = vector.load %arg2[%c0_48, %c0_49] : memref<16x32xbf16, #tpu.memory_space<vmem>>, vector<8x32xbf16>
    %222 = tpu.concatenate %220, %221 in 1 : vector<8x32xbf16>, vector<8x32xbf16> -> vector<8x64xbf16>
    %c2 = arith.constant 2 : index
    %c0_50 = arith.constant 0 : index
    %223 = vector.load %arg11[%c2, %c0_50] : memref<24x64xbf16, #tpu.memory_space<vmem>>, vector<8x64xbf16>
    tpu.vector_store %arg11[%c2, %c0_50], %222 {strides = array<i32>} : memref<24x64xbf16, #tpu.memory_space<vmem>>, vector<8x64xbf16>,
    %224 = vector.extract_strided_slice %42 {offsets = [1, 0], sizes = [1, 32], strides = [1, 1]} : vector<2x32xf32> to vector<1x32xf32>
    %225 = vector.extract_strided_slice %66 {offsets = [1, 0], sizes = [1, 32], strides = [1, 1]} : vector<2x32xf32> to vector<1x32xf32>
    %226 = vector.extract_strided_slice %90 {offsets = [1, 0], sizes = [1, 32], strides = [1, 1]} : vector<2x32xf32> to vector<1x32xf32>
    %227 = vector.extract_strided_slice %114 {offsets = [1, 0], sizes = [1, 32], strides = [1, 1]} : vector<2x32xf32> to vector<1x32xf32>
    %228 = vector.extract_strided_slice %138 {offsets = [1, 0], sizes = [1, 32], strides = [1, 1]} : vector<2x32xf32> to vector<1x32xf32>
    %229 = vector.extract_strided_slice %162 {offsets = [1, 0], sizes = [1, 32], strides = [1, 1]} : vector<2x32xf32> to vector<1x32xf32>
    %230 = vector.extract_strided_slice %186 {offsets = [1, 0], sizes = [1, 32], strides = [1, 1]} : vector<2x32xf32> to vector<1x32xf32>
    %231 = vector.extract_strided_slice %210 {offsets = [1, 0], sizes = [1, 32], strides = [1, 1]} : vector<2x32xf32> to vector<1x32xf32>
    %232 = tpu.concatenate %224, %225, %226, %227, %228, %229, %230, %231 in 0 : vector<1x32xf32>, vector<1x32xf32>, vector<1x32xf32>, vector<1x32xf32>, vector<1x32xf32>, vector<1x32xf32>, vector<1x32xf32>, vector<1x32xf32> -> vector<8x32xf32>
    %233 = arith.truncf %232 : vector<8x32xf32> to vector<8x32xbf16>
    %c8 = arith.constant 8 : index
    %c0_51 = arith.constant 0 : index
    %234 = vector.load %arg2[%c8, %c0_51] : memref<16x32xbf16, #tpu.memory_space<vmem>>, vector<8x32xbf16>
    %235 = tpu.concatenate %233, %234 in 1 : vector<8x32xbf16>, vector<8x32xbf16> -> vector<8x64xbf16>
    %c14 = arith.constant 14 : index
    %c0_52 = arith.constant 0 : index
    %236 = vector.load %arg11[%c14, %c0_52] : memref<24x64xbf16, #tpu.memory_space<vmem>>, vector<8x64xbf16>
    tpu.vector_store %arg11[%c14, %c0_52], %235 {strides = array<i32>} : memref<24x64xbf16, #tpu.memory_space<vmem>>, vector<8x64xbf16>,
    %cst_53 = arith.constant 0.000000e+00 : f32
    %237 = vector.broadcast %cst_53 : f32 to vector<20x384xf32>
    %c0_54 = arith.constant 0 : index
    %c0_55 = arith.constant 0 : index
    %238 = vector.load %arg11[%c0_54, %c0_55] : memref<24x64xbf16, #tpu.memory_space<vmem>>, vector<20x64xbf16>
    %c0_56 = arith.constant 0 : index
    %c0_57 = arith.constant 0 : index
    %c0_58 = arith.constant 0 : index
    %239 = vector.load %arg6[%c0_56, %c0_57, %c0_58] : memref<5x64x384xbf16, #tpu.memory_space<vmem>>, vector<1x64x384xbf16>
    %240 = vector.shape_cast %239 : vector<1x64x384xbf16> to vector<64x384xbf16>
    %cst_59 = arith.constant dense<0.000000e+00> : vector<20x384xf32>
    %241 = tpu.matmul %238, %240, %cst_59 {dimension_numbers = #tpu.dot_dimension_numbers<[1], [0], [0], [1], [0, 0, 1, 1], [], []>} : vector<20x64xbf16>, vector<64x384xbf16>, vector<20x384xf32> -> vector<20x384xf32>
    %242 = arith.addf %237, %241 : vector<20x384xf32>
    %c1 = arith.constant 1 : index
    %c0_60 = arith.constant 0 : index
    %243 = vector.load %arg11[%c1, %c0_60] : memref<24x64xbf16, #tpu.memory_space<vmem>>, vector<20x64xbf16>
    %c1_61 = arith.constant 1 : index
    %c0_62 = arith.constant 0 : index
    %c0_63 = arith.constant 0 : index
    %244 = vector.load %arg6[%c1_61, %c0_62, %c0_63] : memref<5x64x384xbf16, #tpu.memory_space<vmem>>, vector<1x64x384xbf16>
    %245 = vector.shape_cast %244 : vector<1x64x384xbf16> to vector<64x384xbf16>
    %cst_64 = arith.constant dense<0.000000e+00> : vector<20x384xf32>
    %246 = tpu.matmul %243, %245, %cst_64 {dimension_numbers = #tpu.dot_dimension_numbers<[1], [0], [0], [1], [0, 0, 1, 1], [], []>} : vector<20x64xbf16>, vector<64x384xbf16>, vector<20x384xf32> -> vector<20x384xf32>
    %247 = arith.addf %242, %246 : vector<20x384xf32>
    %c2_65 = arith.constant 2 : index
    %c0_66 = arith.constant 0 : index
    %248 = vector.load %arg11[%c2_65, %c0_66] : memref<24x64xbf16, #tpu.memory_space<vmem>>, vector<20x64xbf16>
    %c2_67 = arith.constant 2 : index
    %c0_68 = arith.constant 0 : index
    %c0_69 = arith.constant 0 : index
    %249 = vector.load %arg6[%c2_67, %c0_68, %c0_69] : memref<5x64x384xbf16, #tpu.memory_space<vmem>>, vector<1x64x384xbf16>
    %250 = vector.shape_cast %249 : vector<1x64x384xbf16> to vector<64x384xbf16>
    %cst_70 = arith.constant dense<0.000000e+00> : vector<20x384xf32>
    %251 = tpu.matmul %248, %250, %cst_70 {dimension_numbers = #tpu.dot_dimension_numbers<[1], [0], [0], [1], [0, 0, 1, 1], [], []>} : vector<20x64xbf16>, vector<64x384xbf16>, vector<20x384xf32> -> vector<20x384xf32>
    %252 = arith.addf %247, %251 : vector<20x384xf32>
    %c3 = arith.constant 3 : index
    %c0_71 = arith.constant 0 : index
    %253 = vector.load %arg11[%c3, %c0_71] : memref<24x64xbf16, #tpu.memory_space<vmem>>, vector<20x64xbf16>
    %c3_72 = arith.constant 3 : index
    %c0_73 = arith.constant 0 : index
    %c0_74 = arith.constant 0 : index
    %254 = vector.load %arg6[%c3_72, %c0_73, %c0_74] : memref<5x64x384xbf16, #tpu.memory_space<vmem>>, vector<1x64x384xbf16>
    %255 = vector.shape_cast %254 : vector<1x64x384xbf16> to vector<64x384xbf16>
    %cst_75 = arith.constant dense<0.000000e+00> : vector<20x384xf32>
    %256 = tpu.matmul %253, %255, %cst_75 {dimension_numbers = #tpu.dot_dimension_numbers<[1], [0], [0], [1], [0, 0, 1, 1], [], []>} : vector<20x64xbf16>, vector<64x384xbf16>, vector<20x384xf32> -> vector<20x384xf32>
    %257 = arith.addf %252, %256 : vector<20x384xf32>
    %c4 = arith.constant 4 : index
    %c0_76 = arith.constant 0 : index
    %258 = vector.load %arg11[%c4, %c0_76] : memref<24x64xbf16, #tpu.memory_space<vmem>>, vector<20x64xbf16>
    %c4_77 = arith.constant 4 : index
    %c0_78 = arith.constant 0 : index
    %c0_79 = arith.constant 0 : index
    %259 = vector.load %arg6[%c4_77, %c0_78, %c0_79] : memref<5x64x384xbf16, #tpu.memory_space<vmem>>, vector<1x64x384xbf16>
    %260 = vector.shape_cast %259 : vector<1x64x384xbf16> to vector<64x384xbf16>
    %cst_80 = arith.constant dense<0.000000e+00> : vector<20x384xf32>
    %261 = tpu.matmul %258, %260, %cst_80 {dimension_numbers = #tpu.dot_dimension_numbers<[1], [0], [0], [1], [0, 0, 1, 1], [], []>} : vector<20x64xbf16>, vector<64x384xbf16>, vector<20x384xf32> -> vector<20x384xf32>
    %262 = arith.addf %257, %261 : vector<20x384xf32>
    %c0_81 = arith.constant 0 : index
    %c0_82 = arith.constant 0 : index
    %263 = vector.load %arg7[%c0_81, %c0_82] : memref<1x384xf32, #tpu.memory_space<vmem>>, vector<1x384xf32>
    %264 = vector.extract_strided_slice %262 {offsets = [0, 0], sizes = [8, 384], strides = [1, 1]} : vector<20x384xf32> to vector<8x384xf32>
    %265 = vector.broadcast %263 : vector<1x384xf32> to vector<8x384xf32>
    %266 = arith.addf %264, %265 : vector<8x384xf32>
    %267 = math.tanh %266 : vector<8x384xf32>
    %268 = arith.truncf %267 : vector<8x384xf32> to vector<8x384xbf16>
    %c2_83 = arith.constant 2 : index
    %c0_84 = arith.constant 0 : index
    %269 = vector.load %arg12[%c2_83, %c0_84] : memref<24x384xbf16, #tpu.memory_space<vmem>>, vector<8x384xbf16>
    tpu.vector_store %arg12[%c2_83, %c0_84], %268 {strides = array<i32>} : memref<24x384xbf16, #tpu.memory_space<vmem>>, vector<8x384xbf16>,
    %270 = vector.extract_strided_slice %262 {offsets = [12, 0], sizes = [8, 384], strides = [1, 1]} : vector<20x384xf32> to vector<8x384xf32>
    %271 = vector.broadcast %263 : vector<1x384xf32> to vector<8x384xf32>
    %272 = arith.addf %270, %271 : vector<8x384xf32>
    %273 = math.tanh %272 : vector<8x384xf32>
    %274 = arith.truncf %273 : vector<8x384xf32> to vector<8x384xbf16>
    %c14_85 = arith.constant 14 : index
    %c0_86 = arith.constant 0 : index
    %275 = vector.load %arg12[%c14_85, %c0_86] : memref<24x384xbf16, #tpu.memory_space<vmem>>, vector<8x384xbf16>
    tpu.vector_store %arg12[%c14_85, %c0_86], %274 {strides = array<i32>} : memref<24x384xbf16, #tpu.memory_space<vmem>>, vector<8x384xbf16>,
    %cst_87 = arith.constant 0.000000e+00 : f32
    %276 = vector.broadcast %cst_87 : f32 to vector<20x160xf32>
    %c0_88 = arith.constant 0 : index
    %c0_89 = arith.constant 0 : index
    %277 = vector.load %arg12[%c0_88, %c0_89] : memref<24x384xbf16, #tpu.memory_space<vmem>>, vector<20x384xbf16>
    %c0_90 = arith.constant 0 : index
    %c0_91 = arith.constant 0 : index
    %c0_92 = arith.constant 0 : index
    %278 = vector.load %arg8[%c0_90, %c0_91, %c0_92] : memref<5x384x160xbf16, #tpu.memory_space<vmem>>, vector<1x384x160xbf16>
    %279 = vector.shape_cast %278 : vector<1x384x160xbf16> to vector<384x160xbf16>
    %cst_93 = arith.constant dense<0.000000e+00> : vector<20x160xf32>
    %280 = tpu.matmul %277, %279, %cst_93 {dimension_numbers = #tpu.dot_dimension_numbers<[1], [0], [0], [1], [0, 0, 1, 1], [], []>} : vector<20x384xbf16>, vector<384x160xbf16>, vector<20x160xf32> -> vector<20x160xf32>
    %281 = arith.addf %276, %280 : vector<20x160xf32>
    %c1_94 = arith.constant 1 : index
    %c0_95 = arith.constant 0 : index
    %282 = vector.load %arg12[%c1_94, %c0_95] : memref<24x384xbf16, #tpu.memory_space<vmem>>, vector<20x384xbf16>
    %c1_96 = arith.constant 1 : index
    %c0_97 = arith.constant 0 : index
    %c0_98 = arith.constant 0 : index
    %283 = vector.load %arg8[%c1_96, %c0_97, %c0_98] : memref<5x384x160xbf16, #tpu.memory_space<vmem>>, vector<1x384x160xbf16>
    %284 = vector.shape_cast %283 : vector<1x384x160xbf16> to vector<384x160xbf16>
    %cst_99 = arith.constant dense<0.000000e+00> : vector<20x160xf32>
    %285 = tpu.matmul %282, %284, %cst_99 {dimension_numbers = #tpu.dot_dimension_numbers<[1], [0], [0], [1], [0, 0, 1, 1], [], []>} : vector<20x384xbf16>, vector<384x160xbf16>, vector<20x160xf32> -> vector<20x160xf32>
    %286 = arith.addf %281, %285 : vector<20x160xf32>
    %c2_100 = arith.constant 2 : index
    %c0_101 = arith.constant 0 : index
    %287 = vector.load %arg12[%c2_100, %c0_101] : memref<24x384xbf16, #tpu.memory_space<vmem>>, vector<20x384xbf16>
    %c2_102 = arith.constant 2 : index
    %c0_103 = arith.constant 0 : index
    %c0_104 = arith.constant 0 : index
    %288 = vector.load %arg8[%c2_102, %c0_103, %c0_104] : memref<5x384x160xbf16, #tpu.memory_space<vmem>>, vector<1x384x160xbf16>
    %289 = vector.shape_cast %288 : vector<1x384x160xbf16> to vector<384x160xbf16>
    %cst_105 = arith.constant dense<0.000000e+00> : vector<20x160xf32>
    %290 = tpu.matmul %287, %289, %cst_105 {dimension_numbers = #tpu.dot_dimension_numbers<[1], [0], [0], [1], [0, 0, 1, 1], [], []>} : vector<20x384xbf16>, vector<384x160xbf16>, vector<20x160xf32> -> vector<20x160xf32>
    %291 = arith.addf %286, %290 : vector<20x160xf32>
    %c3_106 = arith.constant 3 : index
    %c0_107 = arith.constant 0 : index
    %292 = vector.load %arg12[%c3_106, %c0_107] : memref<24x384xbf16, #tpu.memory_space<vmem>>, vector<20x384xbf16>
    %c3_108 = arith.constant 3 : index
    %c0_109 = arith.constant 0 : index
    %c0_110 = arith.constant 0 : index
    %293 = vector.load %arg8[%c3_108, %c0_109, %c0_110] : memref<5x384x160xbf16, #tpu.memory_space<vmem>>, vector<1x384x160xbf16>
    %294 = vector.shape_cast %293 : vector<1x384x160xbf16> to vector<384x160xbf16>
    %cst_111 = arith.constant dense<0.000000e+00> : vector<20x160xf32>
    %295 = tpu.matmul %292, %294, %cst_111 {dimension_numbers = #tpu.dot_dimension_numbers<[1], [0], [0], [1], [0, 0, 1, 1], [], []>} : vector<20x384xbf16>, vector<384x160xbf16>, vector<20x160xf32> -> vector<20x160xf32>
    %296 = arith.addf %291, %295 : vector<20x160xf32>
    %c4_112 = arith.constant 4 : index
    %c0_113 = arith.constant 0 : index
    %297 = vector.load %arg12[%c4_112, %c0_113] : memref<24x384xbf16, #tpu.memory_space<vmem>>, vector<20x384xbf16>
    %c4_114 = arith.constant 4 : index
    %c0_115 = arith.constant 0 : index
    %c0_116 = arith.constant 0 : index
    %298 = vector.load %arg8[%c4_114, %c0_115, %c0_116] : memref<5x384x160xbf16, #tpu.memory_space<vmem>>, vector<1x384x160xbf16>
    %299 = vector.shape_cast %298 : vector<1x384x160xbf16> to vector<384x160xbf16>
    %cst_117 = arith.constant dense<0.000000e+00> : vector<20x160xf32>
    %300 = tpu.matmul %297, %299, %cst_117 {dimension_numbers = #tpu.dot_dimension_numbers<[1], [0], [0], [1], [0, 0, 1, 1], [], []>} : vector<20x384xbf16>, vector<384x160xbf16>, vector<20x160xf32> -> vector<20x160xf32>
    %301 = arith.addf %296, %300 : vector<20x160xf32>
    %c0_118 = arith.constant 0 : index
    %c0_119 = arith.constant 0 : index
    %302 = vector.load %arg9[%c0_118, %c0_119] : memref<1x160xf32, #tpu.memory_space<vmem>>, vector<1x160xf32>
    %303 = vector.extract_strided_slice %301 {offsets = [0, 0], sizes = [8, 160], strides = [1, 1]} : vector<20x160xf32> to vector<8x160xf32>
    %304 = vector.broadcast %302 : vector<1x160xf32> to vector<8x160xf32>
    %305 = arith.addf %303, %304 : vector<8x160xf32>
    %306 = math.tanh %305 : vector<8x160xf32>
    %307 = vector.extract_strided_slice %306 {offsets = [0, 0], sizes = [8, 32], strides = [1, 1]} : vector<8x160xf32> to vector<8x32xf32>
    %308 = vector.extract_strided_slice %306 {offsets = [0, 32], sizes = [8, 32], strides = [1, 1]} : vector<8x160xf32> to vector<8x32xf32>
    %309 = arith.addf %307, %308 : vector<8x32xf32>
    %310 = vector.extract_strided_slice %306 {offsets = [0, 64], sizes = [8, 32], strides = [1, 1]} : vector<8x160xf32> to vector<8x32xf32>
    %311 = arith.addf %309, %310 : vector<8x32xf32>
    %312 = vector.extract_strided_slice %306 {offsets = [0, 96], sizes = [8, 32], strides = [1, 1]} : vector<8x160xf32> to vector<8x32xf32>
    %313 = arith.addf %311, %312 : vector<8x32xf32>
    %314 = vector.extract_strided_slice %306 {offsets = [0, 128], sizes = [8, 32], strides = [1, 1]} : vector<8x160xf32> to vector<8x32xf32>
    %315 = arith.addf %313, %314 : vector<8x32xf32>
    %c0_120 = arith.constant 0 : index
    %c0_121 = arith.constant 0 : index
    %c0_122 = arith.constant 0 : index
    %316 = vector.load %arg10[%c0_120, %c0_121, %c0_122] : memref<2x8x32xf32, #tpu.memory_space<vmem>>, vector<1x8x32xf32>
    %317 = vector.shape_cast %316 : vector<1x8x32xf32> to vector<8x32xf32>
    %318 = vector.shape_cast %315 : vector<8x32xf32> to vector<1x8x32xf32>
    tpu.vector_store %arg10[%c0_120, %c0_121, %c0_122], %318 {strides = array<i32>} : memref<2x8x32xf32, #tpu.memory_space<vmem>>, vector<1x8x32xf32>,
    %319 = vector.extract_strided_slice %301 {offsets = [12, 0], sizes = [8, 160], strides = [1, 1]} : vector<20x160xf32> to vector<8x160xf32>
    %320 = vector.broadcast %302 : vector<1x160xf32> to vector<8x160xf32>
    %321 = arith.addf %319, %320 : vector<8x160xf32>
    %322 = math.tanh %321 : vector<8x160xf32>
    %323 = vector.extract_strided_slice %322 {offsets = [0, 0], sizes = [8, 32], strides = [1, 1]} : vector<8x160xf32> to vector<8x32xf32>
    %324 = vector.extract_strided_slice %322 {offsets = [0, 32], sizes = [8, 32], strides = [1, 1]} : vector<8x160xf32> to vector<8x32xf32>
    %325 = arith.addf %323, %324 : vector<8x32xf32>
    %326 = vector.extract_strided_slice %322 {offsets = [0, 64], sizes = [8, 32], strides = [1, 1]} : vector<8x160xf32> to vector<8x32xf32>
    %327 = arith.addf %325, %326 : vector<8x32xf32>
    %328 = vector.extract_strided_slice %322 {offsets = [0, 96], sizes = [8, 32], strides = [1, 1]} : vector<8x160xf32> to vector<8x32xf32>
    %329 = arith.addf %327, %328 : vector<8x32xf32>
    %330 = vector.extract_strided_slice %322 {offsets = [0, 128], sizes = [8, 32], strides = [1, 1]} : vector<8x160xf32> to vector<8x32xf32>
    %331 = arith.addf %329, %330 : vector<8x32xf32>
    %c1_123 = arith.constant 1 : index
    %c0_124 = arith.constant 0 : index
    %c0_125 = arith.constant 0 : index
    %332 = vector.load %arg10[%c1_123, %c0_124, %c0_125] : memref<2x8x32xf32, #tpu.memory_space<vmem>>, vector<1x8x32xf32>
    %333 = vector.shape_cast %332 : vector<1x8x32xf32> to vector<8x32xf32>
    %334 = vector.shape_cast %331 : vector<8x32xf32> to vector<1x8x32xf32>
    tpu.vector_store %arg10[%c1_123, %c0_124, %c0_125], %334 {strides = array<i32>} : memref<2x8x32xf32, #tpu.memory_space<vmem>>, vector<1x8x32xf32>,
    return
  }
  func.func @transform_0(%arg0: i32) -> (i32, i32) {
    %c0_i32 = arith.constant 0 : i32
    %c0_i32_0 = arith.constant 0 : i32
    %c0_i32_1 = arith.constant 0 : i32
    return %c0_i32, %c0_i32_0 : i32, i32
  }
  func.func @transform_1(%arg0: i32) -> (i32, i32) {
    %c0_i32 = arith.constant 0 : i32
    %c0_i32_0 = arith.constant 0 : i32
    %c0_i32_1 = arith.constant 0 : i32
    return %c0_i32, %c0_i32_0 : i32, i32
  }
  func.func @transform_2(%arg0: i32) -> (i32, i32) {
    %c0_i32 = arith.constant 0 : i32
    %c0_i32_0 = arith.constant 0 : i32
    %c0_i32_1 = arith.constant 0 : i32
    return %c0_i32, %c0_i32_0 : i32, i32
  }
  func.func @transform_3(%arg0: i32) -> (i32, i32) {
    %c0_i32 = arith.constant 0 : i32
    %c0_i32_0 = arith.constant 0 : i32
    %c0_i32_1 = arith.constant 0 : i32
    return %c0_i32, %c0_i32_0 : i32, i32
  }
  func.func @transform_4(%arg0: i32) -> (i32, i32) {
    %c0_i32 = arith.constant 0 : i32
    %c0_i32_0 = arith.constant 0 : i32
    %c0_i32_1 = arith.constant 0 : i32
    return %c0_i32, %c0_i32_0 : i32, i32
  }
  func.func @transform_5(%arg0: i32) -> (i32, i32, i32) {
    %c0_i32 = arith.constant 0 : i32
    %c0_i32_0 = arith.constant 0 : i32
    %c0_i32_1 = arith.constant 0 : i32
    %c0_i32_2 = arith.constant 0 : i32
    return %c0_i32, %c0_i32_0, %c0_i32_1 : i32, i32, i32
  }
  func.func @transform_6(%arg0: i32) -> (i32, i32) {
    %c0_i32 = arith.constant 0 : i32
    %c0_i32_0 = arith.constant 0 : i32
    %c0_i32_1 = arith.constant 0 : i32
    return %c0_i32, %c0_i32_0 : i32, i32
  }
  func.func @transform_7(%arg0: i32) -> (i32, i32, i32) {
    %c0_i32 = arith.constant 0 : i32
    %c0_i32_0 = arith.constant 0 : i32
    %c0_i32_1 = arith.constant 0 : i32
    %c0_i32_2 = arith.constant 0 : i32
    return %c0_i32, %c0_i32_0, %c0_i32_1 : i32, i32, i32
  }
  func.func @transform_8(%arg0: i32) -> (i32, i32) {
    %c0_i32 = arith.constant 0 : i32
    %c0_i32_0 = arith.constant 0 : i32
    %c0_i32_1 = arith.constant 0 : i32
    return %c0_i32, %c0_i32_0 : i32, i32
  }
  func.func @transform_9(%arg0: i32) -> (i32, i32, i32) {
    %c0_i32 = arith.constant 0 : i32
    %c0_i32_0 = arith.constant 0 : i32
    %c0_i32_1 = arith.constant 0 : i32
    %c0_i32_2 = arith.constant 0 : i32
    return %c0_i32, %c0_i32_0, %c0_i32_1 : i32, i32, i32
  }
}

</mosaic_0001>

<llo_original>
// kernel: network_forward.1
$region0: #{network_forward.1}
  #allocation0 [shape = 'u32[]', space=smem, size = 0x4, offset = 0x4, fixed_abs, tag = 'smem constant byte address 0x4 - core index']
  #allocation1 [shape = 'u32[144,128]{1,0:T(1,128)}', space=vmem, size = 0x12000, scoped, tag = 'internal scratch']
  #allocation2 [shape = 'bf16[24,64]{1,0:T(8,128)(2,1)}', space=vmem, size = 0x1800, scoped, tag = 'scratch operand']
  #allocation3 [shape = 'bf16[24,384]{1,0:T(8,128)(2,1)}', space=vmem, size = 0x4800, scoped, tag = 'scratch operand']
  %s0 = inlined_call_operand.vmem [shape: f32[16,64], index: 0, kind: input, shape index: {}]
  %s1 = inlined_call_operand.vmem [shape: bf16[16,32], index: 1, kind: input, shape index: {}]
  %s2 = inlined_call_operand.vmem [shape: f32[64,128], index: 2, kind: input, shape index: {}]
  %s3 = inlined_call_operand.vmem [shape: f32[32,128], index: 3, kind: input, shape index: {}]
  %s4 = inlined_call_operand.vmem [shape: f32[1,128], index: 4, kind: input, shape index: {}]
  %s5 = inlined_call_operand.vmem [shape: bf16[5,64,384], index: 5, kind: input, shape index: {}]
  %s6 = inlined_call_operand.vmem [shape: f32[1,384], index: 6, kind: input, shape index: {}]
  %s7 = inlined_call_operand.vmem [shape: bf16[5,384,160], index: 7, kind: input, shape index: {}]
  %s8 = inlined_call_operand.vmem [shape: f32[1,160], index: 8, kind: input, shape index: {}]
  %s9 = inlined_call_operand.hbm [shape: f32[2,8,32], index: 9, kind: output, shape index: {}]
  %s10 = sld [smem:[#allocation0]]
  $region46: #{network_forward.1} parent=0
    _
  %s12 = ssub.s32 1, %s10
  %s13 = scalar_select 0, %s12, %s10
  $region1: #{network_forward.1} parent=0
    #allocation4 [shape = 'u8[8192]{0}', space=vmem, size = 0x2000, scoped, tag = 'output window, operand 0, single buffered']
    #allocation5 [shape = 's32[1]{0}', space=sflag, size = 0x4, scoped, tag = 'scoped memory for network_forward.1']
    %14 = vsyncpa [#allocation5], 0
    // Predicated region
    $region2: #{network_forward.1} parent=1 // pred_check
      _
    $region3: #{network_forward.1} parent=1 // pred_check_branch
      %16 = sbr.rel (0) target = $region5
    $region4: #{network_forward.1} parent=1 // pred_region
      _
    $region5: #{network_forward.1} parent=1 // pred_fallthru
      _
    // Predicated region
    $region6: #{network_forward.1} parent=1 // pred_check
      _
    $region7: #{network_forward.1} parent=1 // pred_check_branch
      %18 = sbr.rel (0) target = $region9
    $region8: #{network_forward.1} parent=1 // pred_region
      _
    $region9: #{network_forward.1} parent=1 // pred_fallthru
      _
    // Predicated region
    $region10: #{network_forward.1} parent=1 // pred_check
      _
    $region11: #{network_forward.1} parent=1 // pred_check_branch
      %20 = sbr.rel (0) target = $region13
    $region12: #{network_forward.1} parent=1 // pred_region
      _
    $region13: #{network_forward.1} parent=1 // pred_fallthru
      _
    // Predicated region
    $region14: #{network_forward.1} parent=1 // pred_check
      _
    $region15: #{network_forward.1} parent=1 // pred_check_branch
      %22 = sbr.rel (0) target = $region17
    $region16: #{network_forward.1} parent=1 // pred_region
      _
    $region17: #{network_forward.1} parent=1 // pred_fallthru
      _
    // Predicated region
    $region18: #{network_forward.1} parent=1 // pred_check
      _
    $region19: #{network_forward.1} parent=1 // pred_check_branch
      %24 = sbr.rel (0) target = $region21
    $region20: #{network_forward.1} parent=1 // pred_region
      _
    $region21: #{network_forward.1} parent=1 // pred_fallthru
      _
    // Predicated region
    $region22: #{network_forward.1} parent=1 // pred_check
      _
    $region23: #{network_forward.1} parent=1 // pred_check_branch
      %26 = sbr.rel (0) target = $region25
    $region24: #{network_forward.1} parent=1 // pred_region
      _
    $region25: #{network_forward.1} parent=1 // pred_fallthru
      _
    // Predicated region
    $region26: #{network_forward.1} parent=1 // pred_check
      _
    $region27: #{network_forward.1} parent=1 // pred_check_branch
      %28 = sbr.rel (0) target = $region29
    $region28: #{network_forward.1} parent=1 // pred_region
      _
    $region29: #{network_forward.1} parent=1 // pred_fallthru
      _
    // Predicated region
    $region30: #{network_forward.1} parent=1 // pred_check
      _
    $region31: #{network_forward.1} parent=1 // pred_check_branch
      %30 = sbr.rel (0) target = $region33
    $region32: #{network_forward.1} parent=1 // pred_region
      _
    $region33: #{network_forward.1} parent=1 // pred_fallthru
      _
    // Predicated region
    $region34: #{network_forward.1} parent=1 // pred_check
      _
    $region35: #{network_forward.1} parent=1 // pred_check_branch
      %32 = sbr.rel (0) target = $region37
    $region36: #{network_forward.1} parent=1 // pred_region
      _
    $region37: #{network_forward.1} parent=1 // pred_fallthru
      _
    %vm34 = vcmask 516096
    %35 = vst.msk [vmem:[#allocation2] sm:$0x1] %vm34, 0
    %vm36 = vcmask 517121
    %37 = vst.msk [vmem:[#allocation2 + $0x4] sm:$0x2] %vm36, 0
    %38 = vst [vmem:[#allocation3] sm:$0x11] 0
    %39 = vst [vmem:[#allocation3 + $0x8] sm:$0x1] 0
    %40 = vst [vmem:[#allocation3 + $0xc] sm:$0x22] 0
    %41 = vst [vmem:[#allocation3 + $0x14] sm:$0x2] 0
    %vm42 = vcmask 518146
    %43 = vst.msk [vmem:[#allocation2 + $0x4] sm:$0x4] %vm42, 0
    %vm44 = vcmask 519171
    %45 = vst.msk [vmem:[#allocation2 + $0x8] sm:$0x8] %vm44, 0
    %46 = vst [vmem:[#allocation3 + $0xc] sm:$0x44] 0
    %47 = vst [vmem:[#allocation3 + $0x14] sm:$0x4] 0
    %48 = vst [vmem:[#allocation3 + $0x18] sm:$0x88] 0
    %49 = vst [vmem:[#allocation3 + $0x20] sm:$0x8] 0
    %v50 = vld [vmem:[%s0] sm:$0xff]
    %v51 = vld [vmem:[%s0 + $0x8] sm:$0xff]
    %v52 = vld [vmem:[%s2] sm:$0xff]
    %v53 = vld [vmem:[%s2 + $0x8] sm:$0xff]
    %v54 = vld [vmem:[%s2 + $0x10] sm:$0xff]
    %v55 = vld [vmem:[%s2 + $0x18] sm:$0xff]
    %v56 = vld [vmem:[%s2 + $0x20] sm:$0xff]
    %v57 = vld [vmem:[%s2 + $0x28] sm:$0xff]
    %v58 = vld [vmem:[%s2 + $0x30] sm:$0xff]
    %v59 = vld [vmem:[%s2 + $0x38] sm:$0xff]
    %v60 = vld [vmem:[%s4] sm:$0x1]
    %v62 = vlaneseq
    %v63 = vshrl.u32 %v62, 7
    %v64 = vsub.s32 0, %v63
    %v65 = vrot.slane %v60, %v64
    %vm67 = vcmask 523264
    %v69 = vsel %vm67, %v50, 0
    %v72 = vsel %vm67, %v51, 0
    %74 = vmatprep.subr.mxu0 0.0
    %75 = vmatpush1.msra.mxu0 0.0
    %76 = vmatprep.subr.mxu0 0.0
    %77 = vmatpush1.msra.mxu0 0.0
    %78 = vmatprep.subr.mxu0 0.0
    %79 = vmatpush1.msra.mxu0 0.0
    %80 = vmatprep.subr.mxu0 0.0
    %81 = vmatpush1.msra.mxu0 0.0
    %82 = vmatprep.subr.mxu0 0.0
    %83 = vmatpush1.msra.mxu0 0.0
    %84 = vmatprep.subr.mxu0 0.0
    %85 = vmatpush1.msra.mxu0 0.0
    %86 = vmatprep.subr.mxu0 0.0
    %87 = vmatpush1.msra.mxu0 0.0
    %88 = vmatprep.subr.mxu0 0.0
    %89 = vmatpush1.msra.mxu0 0.0
    %90 = vmatprep.subr.mxu0 0.0
    %91 = vmatpush1.msra.mxu0 %v59
    %92 = vmatprep.subr.mxu0 0.0
    %93 = vmatpush1.msra.mxu0 %v58
    %94 = vmatprep.subr.mxu0 0.0
    %95 = vmatpush1.msra.mxu0 %v57
    %96 = vmatprep.subr.mxu0 0.0
    %97 = vmatpush1.msra.mxu0 %v56
    %98 = vmatprep.subr.mxu0 0.0
    %99 = vmatpush1.msra.mxu0 %v55
    %100 = vmatprep.subr.mxu0 0.0
    %101 = vmatpush1.msra.mxu0 %v54
    %102 = vmatprep.subr.mxu0 0.0
    %103 = vmatpush1.msra.mxu0 %v53
    %104 = vmatprep.subr.mxu0 0.0
    %105 = vmatpush1.msra.mxu0 %v52
    %106 = vmatprep.subr.mxu0 0.0
    %107 = vmatpush2.msra.mxu0 0.0
    %108 = vmatprep.subr.mxu0 0.0
    %109 = vmatpush2.msra.mxu0 0.0
    %110 = vmatprep.subr.mxu0 0.0
    %111 = vmatpush2.msra.mxu0 0.0
    %112 = vmatprep.subr.mxu0 0.0
    %113 = vmatpush2.msra.mxu0 0.0
    %114 = vmatprep.subr.mxu0 0.0
    %115 = vmatpush2.msra.mxu0 0.0
    %116 = vmatprep.subr.mxu0 0.0
    %117 = vmatpush2.msra.mxu0 0.0
    %118 = vmatprep.subr.mxu0 0.0
    %119 = vmatpush2.msra.mxu0 0.0
    %120 = vmatprep.subr.mxu0 0.0
    %121 = vmatpush2.msra.mxu0 0.0
    %122 = vmatprep.subr.mxu0 0.0
    %123 = vmatpush2.msra.mxu0 0.0
    %124 = vmatprep.subr.mxu0 0.0
    %125 = vmatpush2.msra.mxu0 0.0
    %126 = vmatprep.subr.mxu0 0.0
    %127 = vmatpush2.msra.mxu0 0.0
    %128 = vmatprep.subr.mxu0 0.0
    %129 = vmatpush2.msra.mxu0 0.0
    %130 = vmatprep.subr.mxu0 0.0
    %131 = vmatpush2.msra.mxu0 0.0
    %132 = vmatprep.subr.mxu0 0.0
    %133 = vmatpush2.msra.mxu0 0.0
    %134 = vmatprep.subr.mxu0 0.0
    %135 = vmatpush2.msra.mxu0 0.0
    %136 = vmatprep.subr.mxu0 0.0
    %137 = vmatpush2.msra.mxu0 0.0
    %138 = vmatprep.mubr.f32.mxu0 0.0
    %139 = vmatmul.mubr.f32.gmra.mxu0 %v69
    %v140 = vpop.f32.mrf.mxu0
    %v141 = vadd.f32 %v65, %v140
    %v142 = vpop.f32.mrf.mxu0
    %143 = vmatprep.mubr.f32.mxu0 0.0
    %144 = vmatmul.mubr.f32.gmra.mxu0 %v72
    %v145 = vpop.f32.mrf.mxu0
    %v146 = vadd.f32 %v65, %v145
    %v147 = vpop.f32.mrf.mxu0
    %148 = vdwg.mxu0
    %v149 = vld [vmem:[%s3] sm:$0xff]
    %v150 = vld [vmem:[%s3 + $0x8] sm:$0xff]
    %v151 = vld [vmem:[%s3 + $0x10] sm:$0xff]
    %v152 = vld [vmem:[%s3 + $0x18] sm:$0xff]
    %vm153 = vcmask 261120
    %v155 = vsel %vm153, 0.0, 0
    %157 = vmatprep.subr.mxu0 0.0
    %158 = vmatpush1.msra.mxu0 0.0
    %159 = vmatprep.subr.mxu0 0.0
    %160 = vmatpush1.msra.mxu0 0.0
    %161 = vmatprep.subr.mxu0 0.0
    %162 = vmatpush1.msra.mxu0 0.0
    %163 = vmatprep.subr.mxu0 0.0
    %164 = vmatpush1.msra.mxu0 0.0
    %165 = vmatprep.subr.mxu0 0.0
    %166 = vmatpush1.msra.mxu0 0.0
    %167 = vmatprep.subr.mxu0 0.0
    %168 = vmatpush1.msra.mxu0 0.0
    %169 = vmatprep.subr.mxu0 0.0
    %170 = vmatpush1.msra.mxu0 0.0
    %171 = vmatprep.subr.mxu0 0.0
    %172 = vmatpush1.msra.mxu0 0.0
    %173 = vmatprep.subr.mxu0 0.0
    %174 = vmatpush1.msra.mxu0 0.0
    %175 = vmatprep.subr.mxu0 0.0
    %176 = vmatpush1.msra.mxu0 0.0
    %177 = vmatprep.subr.mxu0 0.0
    %178 = vmatpush1.msra.mxu0 0.0
    %179 = vmatprep.subr.mxu0 0.0
    %180 = vmatpush1.msra.mxu0 0.0
    %181 = vmatprep.subr.mxu0 0.0
    %182 = vmatpush1.msra.mxu0 %v152
    %183 = vmatprep.subr.mxu0 0.0
    %184 = vmatpush1.msra.mxu0 %v151
    %185 = vmatprep.subr.mxu0 0.0
    %186 = vmatpush1.msra.mxu0 %v150
    %187 = vmatprep.subr.mxu0 0.0
    %188 = vmatpush1.msra.mxu0 %v149
    %189 = vmatprep.subr.mxu0 0.0
    %190 = vmatpush2.msra.mxu0 0.0
    %191 = vmatprep.subr.mxu0 0.0
    %192 = vmatpush2.msra.mxu0 0.0
    %193 = vmatprep.subr.mxu0 0.0
    %194 = vmatpush2.msra.mxu0 0.0
    %195 = vmatprep.subr.mxu0 0.0
    %196 = vmatpush2.msra.mxu0 0.0
    %197 = vmatprep.subr.mxu0 0.0
    %198 = vmatpush2.msra.mxu0 0.0
    %199 = vmatprep.subr.mxu0 0.0
    %200 = vmatpush2.msra.mxu0 0.0
    %201 = vmatprep.subr.mxu0 0.0
    %202 = vmatpush2.msra.mxu0 0.0
    %203 = vmatprep.subr.mxu0 0.0
    %204 = vmatpush2.msra.mxu0 0.0
    %205 = vmatprep.subr.mxu0 0.0
    %206 = vmatpush2.msra.mxu0 0.0
    %207 = vmatprep.subr.mxu0 0.0
    %208 = vmatpush2.msra.mxu0 0.0
    %209 = vmatprep.subr.mxu0 0.0
    %210 = vmatpush2.msra.mxu0 0.0
    %211 = vmatprep.subr.mxu0 0.0
    %212 = vmatpush2.msra.mxu0 0.0
    %213 = vmatprep.subr.mxu0 0.0
    %214 = vmatpush2.msra.mxu0 0.0
    %215 = vmatprep.subr.mxu0 0.0
    %216 = vmatpush2.msra.mxu0 0.0
    %217 = vmatprep.subr.mxu0 0.0
    %218 = vmatpush2.msra.mxu0 0.0
    %219 = vmatprep.subr.mxu0 0.0
    %220 = vmatpush2.msra.mxu0 0.0
    %221 = vmatprep.mubr.f32.mxu0 0.0
    %222 = vmatmul.mubr.f32.gmra.mxu0 %v155
    %v223 = vpop.f32.mrf.mxu0
    %v224 = vadd.f32 0.0, %v223
    %v225 = vpop.f32.mrf.mxu0
    %226 = vdwg.mxu0
    %v227 = vadd.f32 %v141, %v224
    %v228 = vxor.u32 %v227, 2147483648
    %v229 = vmul.f32 %v228, 1.442695
    %v230 = vpow.pop %v229
    %v231 = vadd.f32 %v230, 1.0
    %v232 = vrcp.pop %v231
    %v233 = vmul.f32 1.0, %v232
    %v234 = vtanh.pop %v227
    %v235 = vmul.f32 %v233, 0.0
    %237 = vrot.lane.b32.xlu0 %v234, 64
    %v238 = vpop.permute.xlu0 %237
    %v240 = vmul.f32 %v233, %v238
    %242 = vrot.lane.b32.xlu0 %v240, 32
    %v243 = vpop.permute.xlu0 %242
    %v245 = vadd.f32 %v235, %v243
    %v246 = vtanh.pop %v245
    %248 = vrot.lane.b32.xlu0 %v246, 64
    %v249 = vpop.permute.xlu0 %248
    %v251 = vmul.f32 %v233, %v249
    %253 = vrot.lane.b32.xlu0 %v251, 32
    %v254 = vpop.permute.xlu0 %253
    %v255 = vsel %vm153, %v254, 0
    %257 = vmatprep.subr.mxu0 0.0
    %258 = vmatpush1.msra.mxu0 0.0
    %259 = vmatprep.subr.mxu0 0.0
    %260 = vmatpush1.msra.mxu0 0.0
    %261 = vmatprep.subr.mxu0 0.0
    %262 = vmatpush1.msra.mxu0 0.0
    %263 = vmatprep.subr.mxu0 0.0
    %264 = vmatpush1.msra.mxu0 0.0
    %265 = vmatprep.subr.mxu0 0.0
    %266 = vmatpush1.msra.mxu0 0.0
    %267 = vmatprep.subr.mxu0 0.0
    %268 = vmatpush1.msra.mxu0 0.0
    %269 = vmatprep.subr.mxu0 0.0
    %270 = vmatpush1.msra.mxu0 0.0
    %271 = vmatprep.subr.mxu0 0.0
    %272 = vmatpush1.msra.mxu0 0.0
    %273 = vmatprep.subr.mxu0 0.0
    %274 = vmatpush1.msra.mxu0 0.0
    %275 = vmatprep.subr.mxu0 0.0
    %276 = vmatpush1.msra.mxu0 0.0
    %277 = vmatprep.subr.mxu0 0.0
    %278 = vmatpush1.msra.mxu0 0.0
    %279 = vmatprep.subr.mxu0 0.0
    %280 = vmatpush1.msra.mxu0 0.0
    %281 = vmatprep.subr.mxu0 0.0
    %282 = vmatpush1.msra.mxu0 %v152
    %283 = vmatprep.subr.mxu0 0.0
    %284 = vmatpush1.msra.mxu0 %v151
    %285 = vmatprep.subr.mxu0 0.0
    %286 = vmatpush1.msra.mxu0 %v150
    %287 = vmatprep.subr.mxu0 0.0
    %288 = vmatpush1.msra.mxu0 %v149
    %289 = vmatprep.subr.mxu0 0.0
    %290 = vmatpush2.msra.mxu0 0.0
    %291 = vmatprep.subr.mxu0 0.0
    %292 = vmatpush2.msra.mxu0 0.0
    %293 = vmatprep.subr.mxu0 0.0
    %294 = vmatpush2.msra.mxu0 0.0
    %295 = vmatprep.subr.mxu0 0.0
    %296 = vmatpush2.msra.mxu0 0.0
    %297 = vmatprep.subr.mxu0 0.0
    %298 = vmatpush2.msra.mxu0 0.0
    %299 = vmatprep.subr.mxu0 0.0
    %300 = vmatpush2.msra.mxu0 0.0
    %301 = vmatprep.subr.mxu0 0.0
    %302 = vmatpush2.msra.mxu0 0.0
    %303 = vmatprep.subr.mxu0 0.0
    %304 = vmatpush2.msra.mxu0 0.0
    %305 = vmatprep.subr.mxu0 0.0
    %306 = vmatpush2.msra.mxu0 0.0
    %307 = vmatprep.subr.mxu0 0.0
    %308 = vmatpush2.msra.mxu0 0.0
    %309 = vmatprep.subr.mxu0 0.0
    %310 = vmatpush2.msra.mxu0 0.0
    %311 = vmatprep.subr.mxu0 0.0
    %312 = vmatpush2.msra.mxu0 0.0
    %313 = vmatprep.subr.mxu0 0.0
    %314 = vmatpush2.msra.mxu0 0.0
    %315 = vmatprep.subr.mxu0 0.0
    %316 = vmatpush2.msra.mxu0 0.0
    %317 = vmatprep.subr.mxu0 0.0
    %318 = vmatpush2.msra.mxu0 0.0
    %319 = vmatprep.subr.mxu0 0.0
    %320 = vmatpush2.msra.mxu0 0.0
    %321 = vmatprep.mubr.f32.mxu0 0.0
    %322 = vmatmul.mubr.f32.gmra.mxu0 %v255
    %v323 = vpop.f32.mrf.mxu0
    %v324 = vadd.f32 0.0, %v323
    %v325 = vpop.f32.mrf.mxu0
    %326 = vdwg.mxu0
    %v328 = vrot.slane %v324, 6
    %v330 = vadd.f32 %v141, %v328
    %v331 = vxor.u32 %v330, 2147483648
    %v332 = vmul.f32 %v331, 1.442695
    %v333 = vpow.pop %v332
    %v334 = vadd.f32 %v333, 1.0
    %v335 = vrcp.pop %v334
    %v336 = vmul.f32 1.0, %v335
    %v337 = vtanh.pop %v330
    %v339 = vrot.slane %v245, 6
    %v341 = vmul.f32 %v336, %v339
    %343 = vrot.lane.b32.xlu0 %v337, 64
    %v344 = vpop.permute.xlu0 %343
    %v346 = vmul.f32 %v336, %v344
    %348 = vrot.lane.b32.xlu0 %v346, 32
    %v349 = vpop.permute.xlu0 %348
    %v351 = vadd.f32 %v341, %v349
    %v352 = vtanh.pop %v351
    %354 = vrot.lane.b32.xlu0 %v352, 64
    %v355 = vpop.permute.xlu0 %354
    %v357 = vmul.f32 %v336, %v355
    %v359 = vrot.slane %v357, 2
    %360 = vrot.lane.b32.xlu0 %v359, 32
    %v361 = vpop.permute.xlu0 %360
    %v362 = vsel %vm153, %v361, 0
    %364 = vmatprep.subr.mxu0 0.0
    %365 = vmatpush1.msra.mxu0 0.0
    %366 = vmatprep.subr.mxu0 0.0
    %367 = vmatpush1.msra.mxu0 0.0
    %368 = vmatprep.subr.mxu0 0.0
    %369 = vmatpush1.msra.mxu0 0.0
    %370 = vmatprep.subr.mxu0 0.0
    %371 = vmatpush1.msra.mxu0 0.0
    %372 = vmatprep.subr.mxu0 0.0
    %373 = vmatpush1.msra.mxu0 0.0
    %374 = vmatprep.subr.mxu0 0.0
    %375 = vmatpush1.msra.mxu0 0.0
    %376 = vmatprep.subr.mxu0 0.0
    %377 = vmatpush1.msra.mxu0 0.0
    %378 = vmatprep.subr.mxu0 0.0
    %379 = vmatpush1.msra.mxu0 0.0
    %380 = vmatprep.subr.mxu0 0.0
    %381 = vmatpush1.msra.mxu0 0.0
    %382 = vmatprep.subr.mxu0 0.0
    %383 = vmatpush1.msra.mxu0 0.0
    %384 = vmatprep.subr.mxu0 0.0
    %385 = vmatpush1.msra.mxu0 0.0
    %386 = vmatprep.subr.mxu0 0.0
    %387 = vmatpush1.msra.mxu0 0.0
    %388 = vmatprep.subr.mxu0 0.0
    %389 = vmatpush1.msra.mxu0 %v152
    %390 = vmatprep.subr.mxu0 0.0
    %391 = vmatpush1.msra.mxu0 %v151
    %392 = vmatprep.subr.mxu0 0.0
    %393 = vmatpush1.msra.mxu0 %v150
    %394 = vmatprep.subr.mxu0 0.0
    %395 = vmatpush1.msra.mxu0 %v149
    %396 = vmatprep.subr.mxu0 0.0
    %397 = vmatpush2.msra.mxu0 0.0
    %398 = vmatprep.subr.mxu0 0.0
    %399 = vmatpush2.msra.mxu0 0.0
    %400 = vmatprep.subr.mxu0 0.0
    %401 = vmatpush2.msra.mxu0 0.0
    %402 = vmatprep.subr.mxu0 0.0
    %403 = vmatpush2.msra.mxu0 0.0
    %404 = vmatprep.subr.mxu0 0.0
    %405 = vmatpush2.msra.mxu0 0.0
    %406 = vmatprep.subr.mxu0 0.0
    %407 = vmatpush2.msra.mxu0 0.0
    %408 = vmatprep.subr.mxu0 0.0
    %409 = vmatpush2.msra.mxu0 0.0
    %410 = vmatprep.subr.mxu0 0.0
    %411 = vmatpush2.msra.mxu0 0.0
    %412 = vmatprep.subr.mxu0 0.0
    %413 = vmatpush2.msra.mxu0 0.0
    %414 = vmatprep.subr.mxu0 0.0
    %415 = vmatpush2.msra.mxu0 0.0
    %416 = vmatprep.subr.mxu0 0.0
    %417 = vmatpush2.msra.mxu0 0.0
    %418 = vmatprep.subr.mxu0 0.0
    %419 = vmatpush2.msra.mxu0 0.0
    %420 = vmatprep.subr.mxu0 0.0
    %421 = vmatpush2.msra.mxu0 0.0
    %422 = vmatprep.subr.mxu0 0.0
    %423 = vmatpush2.msra.mxu0 0.0
    %424 = vmatprep.subr.mxu0 0.0
    %425 = vmatpush2.msra.mxu0 0.0
    %426 = vmatprep.subr.mxu0 0.0
    %427 = vmatpush2.msra.mxu0 0.0
    %428 = vmatprep.mubr.f32.mxu0 0.0
    %429 = vmatmul.mubr.f32.gmra.mxu0 %v362
    %v430 = vpop.f32.mrf.mxu0
    %v431 = vadd.f32 0.0, %v430
    %v432 = vpop.f32.mrf.mxu0
    %433 = vdwg.mxu0
    %v435 = vrot.slane %v431, 4
    %v437 = vadd.f32 %v141, %v435
    %v438 = vxor.u32 %v437, 2147483648
    %v439 = vmul.f32 %v438, 1.442695
    %v440 = vpow.pop %v439
    %v441 = vadd.f32 %v440, 1.0
    %v442 = vrcp.pop %v441
    %v443 = vmul.f32 1.0, %v442
    %v444 = vtanh.pop %v437
    %v446 = vrot.slane %v351, 6
    %v448 = vmul.f32 %v443, %v446
    %450 = vrot.lane.b32.xlu0 %v444, 64
    %v451 = vpop.permute.xlu0 %450
    %v453 = vmul.f32 %v443, %v451
    %455 = vrot.lane.b32.xlu0 %v453, 32
    %v456 = vpop.permute.xlu0 %455
    %v458 = vadd.f32 %v448, %v456
    %v459 = vtanh.pop %v458
    %461 = vrot.lane.b32.xlu0 %v459, 64
    %v462 = vpop.permute.xlu0 %461
    %v464 = vmul.f32 %v443, %v462
    %v466 = vrot.slane %v464, 4
    %467 = vrot.lane.b32.xlu0 %v466, 32
    %v468 = vpop.permute.xlu0 %467
    %v469 = vsel %vm153, %v468, 0
    %471 = vmatprep.subr.mxu0 0.0
    %472 = vmatpush1.msra.mxu0 0.0
    %473 = vmatprep.subr.mxu0 0.0
    %474 = vmatpush1.msra.mxu0 0.0
    %475 = vmatprep.subr.mxu0 0.0
    %476 = vmatpush1.msra.mxu0 0.0
    %477 = vmatprep.subr.mxu0 0.0
    %478 = vmatpush1.msra.mxu0 0.0
    %479 = vmatprep.subr.mxu0 0.0
    %480 = vmatpush1.msra.mxu0 0.0
    %481 = vmatprep.subr.mxu0 0.0
    %482 = vmatpush1.msra.mxu0 0.0
    %483 = vmatprep.subr.mxu0 0.0
    %484 = vmatpush1.msra.mxu0 0.0
    %485 = vmatprep.subr.mxu0 0.0
    %486 = vmatpush1.msra.mxu0 0.0
    %487 = vmatprep.subr.mxu0 0.0
    %488 = vmatpush1.msra.mxu0 0.0
    %489 = vmatprep.subr.mxu0 0.0
    %490 = vmatpush1.msra.mxu0 0.0
    %491 = vmatprep.subr.mxu0 0.0
    %492 = vmatpush1.msra.mxu0 0.0
    %493 = vmatprep.subr.mxu0 0.0
    %494 = vmatpush1.msra.mxu0 0.0
    %495 = vmatprep.subr.mxu0 0.0
    %496 = vmatpush1.msra.mxu0 %v152
    %497 = vmatprep.subr.mxu0 0.0
    %498 = vmatpush1.msra.mxu0 %v151
    %499 = vmatprep.subr.mxu0 0.0
    %500 = vmatpush1.msra.mxu0 %v150
    %501 = vmatprep.subr.mxu0 0.0
    %502 = vmatpush1.msra.mxu0 %v149
    %503 = vmatprep.subr.mxu0 0.0
    %504 = vmatpush2.msra.mxu0 0.0
    %505 = vmatprep.subr.mxu0 0.0
    %506 = vmatpush2.msra.mxu0 0.0
    %507 = vmatprep.subr.mxu0 0.0
    %508 = vmatpush2.msra.mxu0 0.0
    %509 = vmatprep.subr.mxu0 0.0
    %510 = vmatpush2.msra.mxu0 0.0
    %511 = vmatprep.subr.mxu0 0.0
    %512 = vmatpush2.msra.mxu0 0.0
    %513 = vmatprep.subr.mxu0 0.0
    %514 = vmatpush2.msra.mxu0 0.0
    %515 = vmatprep.subr.mxu0 0.0
    %516 = vmatpush2.msra.mxu0 0.0
    %517 = vmatprep.subr.mxu0 0.0
    %518 = vmatpush2.msra.mxu0 0.0
    %519 = vmatprep.subr.mxu0 0.0
    %520 = vmatpush2.msra.mxu0 0.0
    %521 = vmatprep.subr.mxu0 0.0
    %522 = vmatpush2.msra.mxu0 0.0
    %523 = vmatprep.subr.mxu0 0.0
    %524 = vmatpush2.msra.mxu0 0.0
    %525 = vmatprep.subr.mxu0 0.0
    %526 = vmatpush2.msra.mxu0 0.0
    %527 = vmatprep.subr.mxu0 0.0
    %528 = vmatpush2.msra.mxu0 0.0
    %529 = vmatprep.subr.mxu0 0.0
    %530 = vmatpush2.msra.mxu0 0.0
    %531 = vmatprep.subr.mxu0 0.0
    %532 = vmatpush2.msra.mxu0 0.0
    %533 = vmatprep.subr.mxu0 0.0
    %534 = vmatpush2.msra.mxu0 0.0
    %535 = vmatprep.mubr.f32.mxu0 0.0
    %536 = vmatmul.mubr.f32.gmra.mxu0 %v469
    %v537 = vpop.f32.mrf.mxu0
    %v538 = vadd.f32 0.0, %v537
    %v539 = vpop.f32.mrf.mxu0
    %540 = vdwg.mxu0
    %v542 = vrot.slane %v538, 2
    %v544 = vadd.f32 %v141, %v542
    %v545 = vxor.u32 %v544, 2147483648
    %v546 = vmul.f32 %v545, 1.442695
    %v547 = vpow.pop %v546
    %v548 = vadd.f32 %v547, 1.0
    %v549 = vrcp.pop %v548
    %v550 = vmul.f32 1.0, %v549
    %v551 = vtanh.pop %v544
    %v553 = vrot.slane %v458, 6
    %v555 = vmul.f32 %v550, %v553
    %557 = vrot.lane.b32.xlu0 %v551, 64
    %v558 = vpop.permute.xlu0 %557
    %v560 = vmul.f32 %v550, %v558
    %562 = vrot.lane.b32.xlu0 %v560, 32
    %v563 = vpop.permute.xlu0 %562
    %v565 = vadd.f32 %v555, %v563
    %v566 = vtanh.pop %v565
    %568 = vrot.lane.b32.xlu0 %v566, 64
    %v569 = vpop.permute.xlu0 %568
    %v571 = vmul.f32 %v550, %v569
    %v573 = vrot.slane %v571, 6
    %574 = vrot.lane.b32.xlu0 %v573, 32
    %v575 = vpop.permute.xlu0 %574
    %v576 = vsel %vm153, %v575, 0
    %578 = vmatprep.subr.mxu0 0.0
    %579 = vmatpush1.msra.mxu0 0.0
    %580 = vmatprep.subr.mxu0 0.0
    %581 = vmatpush1.msra.mxu0 0.0
    %582 = vmatprep.subr.mxu0 0.0
    %583 = vmatpush1.msra.mxu0 0.0
    %584 = vmatprep.subr.mxu0 0.0
    %585 = vmatpush1.msra.mxu0 0.0
    %586 = vmatprep.subr.mxu0 0.0
    %587 = vmatpush1.msra.mxu0 0.0
    %588 = vmatprep.subr.mxu0 0.0
    %589 = vmatpush1.msra.mxu0 0.0
    %590 = vmatprep.subr.mxu0 0.0
    %591 = vmatpush1.msra.mxu0 0.0
    %592 = vmatprep.subr.mxu0 0.0
    %593 = vmatpush1.msra.mxu0 0.0
    %594 = vmatprep.subr.mxu0 0.0
    %595 = vmatpush1.msra.mxu0 0.0
    %596 = vmatprep.subr.mxu0 0.0
    %597 = vmatpush1.msra.mxu0 0.0
    %598 = vmatprep.subr.mxu0 0.0
    %599 = vmatpush1.msra.mxu0 0.0
    %600 = vmatprep.subr.mxu0 0.0
    %601 = vmatpush1.msra.mxu0 0.0
    %602 = vmatprep.subr.mxu0 0.0
    %603 = vmatpush1.msra.mxu0 %v152
    %604 = vmatprep.subr.mxu0 0.0
    %605 = vmatpush1.msra.mxu0 %v151
    %606 = vmatprep.subr.mxu0 0.0
    %607 = vmatpush1.msra.mxu0 %v150
    %608 = vmatprep.subr.mxu0 0.0
    %609 = vmatpush1.msra.mxu0 %v149
    %610 = vmatprep.subr.mxu0 0.0
    %611 = vmatpush2.msra.mxu0 0.0
    %612 = vmatprep.subr.mxu0 0.0
    %613 = vmatpush2.msra.mxu0 0.0
    %614 = vmatprep.subr.mxu0 0.0
    %615 = vmatpush2.msra.mxu0 0.0
    %616 = vmatprep.subr.mxu0 0.0
    %617 = vmatpush2.msra.mxu0 0.0
    %618 = vmatprep.subr.mxu0 0.0
    %619 = vmatpush2.msra.mxu0 0.0
    %620 = vmatprep.subr.mxu0 0.0
    %621 = vmatpush2.msra.mxu0 0.0
    %622 = vmatprep.subr.mxu0 0.0
    %623 = vmatpush2.msra.mxu0 0.0
    %624 = vmatprep.subr.mxu0 0.0
    %625 = vmatpush2.msra.mxu0 0.0
    %626 = vmatprep.subr.mxu0 0.0
    %627 = vmatpush2.msra.mxu0 0.0
    %628 = vmatprep.subr.mxu0 0.0
    %629 = vmatpush2.msra.mxu0 0.0
    %630 = vmatprep.subr.mxu0 0.0
    %631 = vmatpush2.msra.mxu0 0.0
    %632 = vmatprep.subr.mxu0 0.0
    %633 = vmatpush2.msra.mxu0 0.0
    %634 = vmatprep.subr.mxu0 0.0
    %635 = vmatpush2.msra.mxu0 0.0
    %636 = vmatprep.subr.mxu0 0.0
    %637 = vmatpush2.msra.mxu0 0.0
    %638 = vmatprep.subr.mxu0 0.0
    %639 = vmatpush2.msra.mxu0 0.0
    %640 = vmatprep.subr.mxu0 0.0
    %641 = vmatpush2.msra.mxu0 0.0
    %642 = vmatprep.mubr.f32.mxu0 0.0
    %643 = vmatmul.mubr.f32.gmra.mxu0 %v576
    %v644 = vpop.f32.mrf.mxu0
    %v645 = vadd.f32 0.0, %v644
    %v646 = vpop.f32.mrf.mxu0
    %647 = vdwg.mxu0
    %v648 = vadd.f32 %v146, %v645
    %v649 = vxor.u32 %v648, 2147483648
    %v650 = vmul.f32 %v649, 1.442695
    %v651 = vpow.pop %v650
    %v652 = vadd.f32 %v651, 1.0
    %v653 = vrcp.pop %v652
    %v654 = vmul.f32 1.0, %v653
    %v655 = vtanh.pop %v648
    %v657 = vrot.slane %v565, 6
    %v659 = vmul.f32 %v654, %v657
    %661 = vrot.lane.b32.xlu0 %v655, 64
    %v662 = vpop.permute.xlu0 %661
    %v664 = vmul.f32 %v654, %v662
    %666 = vrot.lane.b32.xlu0 %v664, 32
    %v667 = vpop.permute.xlu0 %666
    %v669 = vadd.f32 %v659, %v667
    %v670 = vtanh.pop %v669
    %672 = vrot.lane.b32.xlu0 %v670, 64
    %v673 = vpop.permute.xlu0 %672
    %v675 = vmul.f32 %v654, %v673
    %677 = vrot.lane.b32.xlu0 %v675, 32
    %v678 = vpop.permute.xlu0 %677
    %v679 = vsel %vm153, %v678, 0
    %681 = vmatprep.subr.mxu0 0.0
    %682 = vmatpush1.msra.mxu0 0.0
    %683 = vmatprep.subr.mxu0 0.0
    %684 = vmatpush1.msra.mxu0 0.0
    %685 = vmatprep.subr.mxu0 0.0
    %686 = vmatpush1.msra.mxu0 0.0
    %687 = vmatprep.subr.mxu0 0.0
    %688 = vmatpush1.msra.mxu0 0.0
    %689 = vmatprep.subr.mxu0 0.0
    %690 = vmatpush1.msra.mxu0 0.0
    %691 = vmatprep.subr.mxu0 0.0
    %692 = vmatpush1.msra.mxu0 0.0
    %693 = vmatprep.subr.mxu0 0.0
    %694 = vmatpush1.msra.mxu0 0.0
    %695 = vmatprep.subr.mxu0 0.0
    %696 = vmatpush1.msra.mxu0 0.0
    %697 = vmatprep.subr.mxu0 0.0
    %698 = vmatpush1.msra.mxu0 0.0
    %699 = vmatprep.subr.mxu0 0.0
    %700 = vmatpush1.msra.mxu0 0.0
    %701 = vmatprep.subr.mxu0 0.0
    %702 = vmatpush1.msra.mxu0 0.0
    %703 = vmatprep.subr.mxu0 0.0
    %704 = vmatpush1.msra.mxu0 0.0
    %705 = vmatprep.subr.mxu0 0.0
    %706 = vmatpush1.msra.mxu0 %v152
    %707 = vmatprep.subr.mxu0 0.0
    %708 = vmatpush1.msra.mxu0 %v151
    %709 = vmatprep.subr.mxu0 0.0
    %710 = vmatpush1.msra.mxu0 %v150
    %711 = vmatprep.subr.mxu0 0.0
    %712 = vmatpush1.msra.mxu0 %v149
    %713 = vmatprep.subr.mxu0 0.0
    %714 = vmatpush2.msra.mxu0 0.0
    %715 = vmatprep.subr.mxu0 0.0
    %716 = vmatpush2.msra.mxu0 0.0
    %717 = vmatprep.subr.mxu0 0.0
    %718 = vmatpush2.msra.mxu0 0.0
    %719 = vmatprep.subr.mxu0 0.0
    %720 = vmatpush2.msra.mxu0 0.0
    %721 = vmatprep.subr.mxu0 0.0
    %722 = vmatpush2.msra.mxu0 0.0
    %723 = vmatprep.subr.mxu0 0.0
    %724 = vmatpush2.msra.mxu0 0.0
    %725 = vmatprep.subr.mxu0 0.0
    %726 = vmatpush2.msra.mxu0 0.0
    %727 = vmatprep.subr.mxu0 0.0
    %728 = vmatpush2.msra.mxu0 0.0
    %729 = vmatprep.subr.mxu0 0.0
    %730 = vmatpush2.msra.mxu0 0.0
    %731 = vmatprep.subr.mxu0 0.0
    %732 = vmatpush2.msra.mxu0 0.0
    %733 = vmatprep.subr.mxu0 0.0
    %734 = vmatpush2.msra.mxu0 0.0
    %735 = vmatprep.subr.mxu0 0.0
    %736 = vmatpush2.msra.mxu0 0.0
    %737 = vmatprep.subr.mxu0 0.0
    %738 = vmatpush2.msra.mxu0 0.0
    %739 = vmatprep.subr.mxu0 0.0
    %740 = vmatpush2.msra.mxu0 0.0
    %741 = vmatprep.subr.mxu0 0.0
    %742 = vmatpush2.msra.mxu0 0.0
    %743 = vmatprep.subr.mxu0 0.0
    %744 = vmatpush2.msra.mxu0 0.0
    %745 = vmatprep.mubr.f32.mxu0 0.0
    %746 = vmatmul.mubr.f32.gmra.mxu0 %v679
    %v747 = vpop.f32.mrf.mxu0
    %v748 = vadd.f32 0.0, %v747
    %v749 = vpop.f32.mrf.mxu0
    %750 = vdwg.mxu0
    %v752 = vrot.slane %v748, 6
    %v754 = vadd.f32 %v146, %v752
    %v755 = vxor.u32 %v754, 2147483648
    %v756 = vmul.f32 %v755, 1.442695
    %v757 = vpow.pop %v756
    %v758 = vadd.f32 %v757, 1.0
    %v759 = vrcp.pop %v758
    %v760 = vmul.f32 1.0, %v759
    %v761 = vtanh.pop %v754
    %v763 = vrot.slane %v669, 6
    %v765 = vmul.f32 %v760, %v763
    %767 = vrot.lane.b32.xlu0 %v761, 64
    %v768 = vpop.permute.xlu0 %767
    %v770 = vmul.f32 %v760, %v768
    %772 = vrot.lane.b32.xlu0 %v770, 32
    %v773 = vpop.permute.xlu0 %772
    %v775 = vadd.f32 %v765, %v773
    %v776 = vtanh.pop %v775
    %778 = vrot.lane.b32.xlu0 %v776, 64
    %v779 = vpop.permute.xlu0 %778
    %v781 = vmul.f32 %v760, %v779
    %v783 = vrot.slane %v781, 2
    %784 = vrot.lane.b32.xlu0 %v783, 32
    %v785 = vpop.permute.xlu0 %784
    %v786 = vsel %vm153, %v785, 0
    %788 = vmatprep.subr.mxu0 0.0
    %789 = vmatpush1.msra.mxu0 0.0
    %790 = vmatprep.subr.mxu0 0.0
    %791 = vmatpush1.msra.mxu0 0.0
    %792 = vmatprep.subr.mxu0 0.0
    %793 = vmatpush1.msra.mxu0 0.0
    %794 = vmatprep.subr.mxu0 0.0
    %795 = vmatpush1.msra.mxu0 0.0
    %796 = vmatprep.subr.mxu0 0.0
    %797 = vmatpush1.msra.mxu0 0.0
    %798 = vmatprep.subr.mxu0 0.0
    %799 = vmatpush1.msra.mxu0 0.0
    %800 = vmatprep.subr.mxu0 0.0
    %801 = vmatpush1.msra.mxu0 0.0
    %802 = vmatprep.subr.mxu0 0.0
    %803 = vmatpush1.msra.mxu0 0.0
    %804 = vmatprep.subr.mxu0 0.0
    %805 = vmatpush1.msra.mxu0 0.0
    %806 = vmatprep.subr.mxu0 0.0
    %807 = vmatpush1.msra.mxu0 0.0
    %808 = vmatprep.subr.mxu0 0.0
    %809 = vmatpush1.msra.mxu0 0.0
    %810 = vmatprep.subr.mxu0 0.0
    %811 = vmatpush1.msra.mxu0 0.0
    %812 = vmatprep.subr.mxu0 0.0
    %813 = vmatpush1.msra.mxu0 %v152
    %814 = vmatprep.subr.mxu0 0.0
    %815 = vmatpush1.msra.mxu0 %v151
    %816 = vmatprep.subr.mxu0 0.0
    %817 = vmatpush1.msra.mxu0 %v150
    %818 = vmatprep.subr.mxu0 0.0
    %819 = vmatpush1.msra.mxu0 %v149
    %820 = vmatprep.subr.mxu0 0.0
    %821 = vmatpush2.msra.mxu0 0.0
    %822 = vmatprep.subr.mxu0 0.0
    %823 = vmatpush2.msra.mxu0 0.0
    %824 = vmatprep.subr.mxu0 0.0
    %825 = vmatpush2.msra.mxu0 0.0
    %826 = vmatprep.subr.mxu0 0.0
    %827 = vmatpush2.msra.mxu0 0.0
    %828 = vmatprep.subr.mxu0 0.0
    %829 = vmatpush2.msra.mxu0 0.0
    %830 = vmatprep.subr.mxu0 0.0
    %831 = vmatpush2.msra.mxu0 0.0
    %832 = vmatprep.subr.mxu0 0.0
    %833 = vmatpush2.msra.mxu0 0.0
    %834 = vmatprep.subr.mxu0 0.0
    %835 = vmatpush2.msra.mxu0 0.0
    %836 = vmatprep.subr.mxu0 0.0
    %837 = vmatpush2.msra.mxu0 0.0
    %838 = vmatprep.subr.mxu0 0.0
    %839 = vmatpush2.msra.mxu0 0.0
    %840 = vmatprep.subr.mxu0 0.0
    %841 = vmatpush2.msra.mxu0 0.0
    %842 = vmatprep.subr.mxu0 0.0
    %843 = vmatpush2.msra.mxu0 0.0
    %844 = vmatprep.subr.mxu0 0.0
    %845 = vmatpush2.msra.mxu0 0.0
    %846 = vmatprep.subr.mxu0 0.0
    %847 = vmatpush2.msra.mxu0 0.0
    %848 = vmatprep.subr.mxu0 0.0
    %849 = vmatpush2.msra.mxu0 0.0
    %850 = vmatprep.subr.mxu0 0.0
    %851 = vmatpush2.msra.mxu0 0.0
    %852 = vmatprep.mubr.f32.mxu0 0.0
    %853 = vmatmul.mubr.f32.gmra.mxu0 %v786
    %v854 = vpop.f32.mrf.mxu0
    %v855 = vadd.f32 0.0, %v854
    %v856 = vpop.f32.mrf.mxu0
    %857 = vdwg.mxu0
    %v859 = vrot.slane %v855, 4
    %v861 = vadd.f32 %v146, %v859
    %v862 = vxor.u32 %v861, 2147483648
    %v863 = vmul.f32 %v862, 1.442695
    %v864 = vpow.pop %v863
    %v865 = vadd.f32 %v864, 1.0
    %v866 = vrcp.pop %v865
    %v867 = vmul.f32 1.0, %v866
    %v868 = vtanh.pop %v861
    %v870 = vrot.slane %v775, 6
    %v872 = vmul.f32 %v867, %v870
    %874 = vrot.lane.b32.xlu0 %v868, 64
    %v875 = vpop.permute.xlu0 %874
    %v877 = vmul.f32 %v867, %v875
    %879 = vrot.lane.b32.xlu0 %v877, 32
    %v880 = vpop.permute.xlu0 %879
    %v882 = vadd.f32 %v872, %v880
    %v883 = vtanh.pop %v882
    %885 = vrot.lane.b32.xlu0 %v883, 64
    %v886 = vpop.permute.xlu0 %885
    %v888 = vmul.f32 %v867, %v886
    %v890 = vrot.slane %v888, 4
    %891 = vrot.lane.b32.xlu0 %v890, 32
    %v892 = vpop.permute.xlu0 %891
    %v893 = vsel %vm153, %v892, 0
    %895 = vmatprep.subr.mxu0 0.0
    %896 = vmatpush1.msra.mxu0 0.0
    %897 = vmatprep.subr.mxu0 0.0
    %898 = vmatpush1.msra.mxu0 0.0
    %899 = vmatprep.subr.mxu0 0.0
    %900 = vmatpush1.msra.mxu0 0.0
    %901 = vmatprep.subr.mxu0 0.0
    %902 = vmatpush1.msra.mxu0 0.0
    %903 = vmatprep.subr.mxu0 0.0
    %904 = vmatpush1.msra.mxu0 0.0
    %905 = vmatprep.subr.mxu0 0.0
    %906 = vmatpush1.msra.mxu0 0.0
    %907 = vmatprep.subr.mxu0 0.0
    %908 = vmatpush1.msra.mxu0 0.0
    %909 = vmatprep.subr.mxu0 0.0
    %910 = vmatpush1.msra.mxu0 0.0
    %911 = vmatprep.subr.mxu0 0.0
    %912 = vmatpush1.msra.mxu0 0.0
    %913 = vmatprep.subr.mxu0 0.0
    %914 = vmatpush1.msra.mxu0 0.0
    %915 = vmatprep.subr.mxu0 0.0
    %916 = vmatpush1.msra.mxu0 0.0
    %917 = vmatprep.subr.mxu0 0.0
    %918 = vmatpush1.msra.mxu0 0.0
    %919 = vmatprep.subr.mxu0 0.0
    %920 = vmatpush1.msra.mxu0 %v152
    %921 = vmatprep.subr.mxu0 0.0
    %922 = vmatpush1.msra.mxu0 %v151
    %923 = vmatprep.subr.mxu0 0.0
    %924 = vmatpush1.msra.mxu0 %v150
    %925 = vmatprep.subr.mxu0 0.0
    %926 = vmatpush1.msra.mxu0 %v149
    %927 = vmatprep.subr.mxu0 0.0
    %928 = vmatpush2.msra.mxu0 0.0
    %929 = vmatprep.subr.mxu0 0.0
    %930 = vmatpush2.msra.mxu0 0.0
    %931 = vmatprep.subr.mxu0 0.0
    %932 = vmatpush2.msra.mxu0 0.0
    %933 = vmatprep.subr.mxu0 0.0
    %934 = vmatpush2.msra.mxu0 0.0
    %935 = vmatprep.subr.mxu0 0.0
    %936 = vmatpush2.msra.mxu0 0.0
    %937 = vmatprep.subr.mxu0 0.0
    %938 = vmatpush2.msra.mxu0 0.0
    %939 = vmatprep.subr.mxu0 0.0
    %940 = vmatpush2.msra.mxu0 0.0
    %941 = vmatprep.subr.mxu0 0.0
    %942 = vmatpush2.msra.mxu0 0.0
    %943 = vmatprep.subr.mxu0 0.0
    %944 = vmatpush2.msra.mxu0 0.0
    %945 = vmatprep.subr.mxu0 0.0
    %946 = vmatpush2.msra.mxu0 0.0
    %947 = vmatprep.subr.mxu0 0.0
    %948 = vmatpush2.msra.mxu0 0.0
    %949 = vmatprep.subr.mxu0 0.0
    %950 = vmatpush2.msra.mxu0 0.0
    %951 = vmatprep.subr.mxu0 0.0
    %952 = vmatpush2.msra.mxu0 0.0
    %953 = vmatprep.subr.mxu0 0.0
    %954 = vmatpush2.msra.mxu0 0.0
    %955 = vmatprep.subr.mxu0 0.0
    %956 = vmatpush2.msra.mxu0 0.0
    %957 = vmatprep.subr.mxu0 0.0
    %958 = vmatpush2.msra.mxu0 0.0
    %959 = vmatprep.mubr.f32.mxu0 0.0
    %960 = vmatmul.mubr.f32.gmra.mxu0 %v893
    %v961 = vpop.f32.mrf.mxu0
    %v962 = vadd.f32 0.0, %v961
    %v963 = vpop.f32.mrf.mxu0
    %964 = vdwg.mxu0
    %v966 = vrot.slane %v962, 2
    %v968 = vadd.f32 %v146, %v966
    %v969 = vxor.u32 %v968, 2147483648
    %v970 = vmul.f32 %v969, 1.442695
    %v971 = vpow.pop %v970
    %v972 = vadd.f32 %v971, 1.0
    %v973 = vrcp.pop %v972
    %v974 = vmul.f32 1.0, %v973
    %v975 = vtanh.pop %v968
    %v977 = vrot.slane %v882, 6
    %v979 = vmul.f32 %v974, %v977
    %981 = vrot.lane.b32.xlu0 %v975, 64
    %v982 = vpop.permute.xlu0 %981
    %v984 = vmul.f32 %v974, %v982
    %986 = vrot.lane.b32.xlu0 %v984, 32
    %v987 = vpop.permute.xlu0 %986
    %v989 = vadd.f32 %v979, %v987
    %v990 = vtanh.pop %v989
    %992 = vrot.lane.b32.xlu0 %v990, 64
    %v993 = vpop.permute.xlu0 %992
    %v995 = vmul.f32 %v974, %v993
    %v996 = vrot.slane %v357, 1
    %v998 = vrot.slane %v464, 2
    %v1000 = vrot.slane %v571, 3
    %v1002 = vrot.slane %v675, 4
    %v1004 = vrot.slane %v781, 5
    %v1006 = vrot.slane %v888, 6
    %v1009 = vrot.slane %v995, 7
    %vm1011 = vcmask 1040384
    %v1012 = vsel %vm1011, %v251, %v996
    %vm1013 = vcmask 1041408
    %v1014 = vsel %vm1013, %v1012, %v998
    %vm1015 = vcmask 1042432
    %v1016 = vsel %vm1015, %v1014, %v1000
    %vm1017 = vcmask 1043456
    %v1018 = vsel %vm1017, %v1016, %v1002
    %vm1019 = vcmask 1044480
    %v1020 = vsel %vm1019, %v1018, %v1004
    %vm1021 = vcmask 1045504
    %v1022 = vsel %vm1021, %v1020, %v1006
    %vm1023 = vcmask 1046528
    %v1024 = vsel %vm1023, %v1022, %v1009
    %v1025 = vpack.c.bf16 %v1024, %v1024
    %v1026 = vld [vmem:[%s1] sm:$0xf]
    %1028 = vrot.lane.b32.xlu0 %v1025, 32
    %v1029 = vpop.permute.xlu0 %1028
    %v1031 = vunpack.c.l.b16 %v1026
    %v1032 = vpack.c.b16 %v1031, %v1031
    %1033 = vrot.lane.b32.xlu0 %v1032, 32
    %v1034 = vpop.permute.xlu0 %1033
    %v1037 = vsel %vm153, %v1029, %v1034
    %v1039 = vunpack.c.l.b16 %v1037
    %v1040 = vpack.c.b16 %v1039, %v1039
    %v1041 = vrot.slane %v1040, 7
    %v1042 = vrot.slane %v1041, 4
    %vm1045 = vcmask 519169
    %1046 = vst.msk [vmem:[#allocation2] sm:$0xe] %vm1045, %v1041
    %1047 = vst.msk [vmem:[#allocation2 + $0x4] sm:$0x1] %vm34, %v1042
    %v1048 = vrot.slane %v251, 1
    %v1051 = vrot.slane %v464, 3
    %v1053 = vrot.slane %v571, 4
    %v1055 = vrot.slane %v675, 5
    %v1057 = vrot.slane %v781, 6
    %v1059 = vrot.slane %v888, 7
    %v1061 = vsel %vm1011, %v1048, %v359
    %v1062 = vsel %vm1013, %v1061, %v1051
    %v1063 = vsel %vm1015, %v1062, %v1053
    %v1064 = vsel %vm1017, %v1063, %v1055
    %v1065 = vsel %vm1019, %v1064, %v1057
    %v1066 = vsel %vm1021, %v1065, %v1059
    %v1067 = vsel %vm1023, %v1066, %v995
    %v1068 = vpack.c.bf16 %v1067, %v1067
    %v1069 = vld [vmem:[%s1 + $0x4] sm:$0xf]
    %1071 = vrot.lane.b32.xlu0 %v1068, 32
    %v1072 = vpop.permute.xlu0 %1071
    %v1074 = vunpack.c.l.b16 %v1069
    %v1075 = vpack.c.b16 %v1074, %v1074
    %1076 = vrot.lane.b32.xlu0 %v1075, 32
    %v1077 = vpop.permute.xlu0 %1076
    %v1080 = vsel %vm153, %v1072, %v1077
    %v1082 = vunpack.c.l.b16 %v1080
    %v1083 = vpack.c.b16 %v1082, %v1082
    %v1084 = vrot.slane %v1083, 5
    %v1085 = vrot.slane %v1084, 4
    %1088 = vst.msk [vmem:[#allocation2 + $0x4] sm:$0x8] %vm44, %v1084
    %vm1089 = vcmask 518144
    %1090 = vst.msk [vmem:[#allocation2 + $0x8] sm:$0x7] %vm1089, %v1085
    %v1091 = vld [vmem:[#allocation2] sm:$0xf]
    %v1092 = vld [vmem:[#allocation2 + $0x4] sm:$0xf]
    %v1093 = vld [vmem:[#allocation2 + $0x8] sm:$0x3]
    %v1094 = vld [vmem:[%s5] sm:$0xff]
    %v1095 = vld [vmem:[%s5 + $0x8] sm:$0xf]
    %v1096 = vld [vmem:[%s5 + $0xc] sm:$0xff]
    %v1097 = vld [vmem:[%s5 + $0x14] sm:$0xf]
    %v1098 = vld [vmem:[%s5 + $0x18] sm:$0xff]
    %v1099 = vld [vmem:[%s5 + $0x20] sm:$0xf]
    %v1100 = vld [vmem:[%s5 + $0x24] sm:$0xff]
    %v1101 = vld [vmem:[%s5 + $0x2c] sm:$0xf]
    %v1102 = vld [vmem:[%s5 + $0x30] sm:$0xff]
    %v1103 = vld [vmem:[%s5 + $0x38] sm:$0xf]
    %v1104 = vld [vmem:[%s5 + $0x3c] sm:$0xff]
    %v1105 = vld [vmem:[%s5 + $0x44] sm:$0xf]
    %v1106 = vld [vmem:[%s5 + $0x48] sm:$0xff]
    %v1107 = vld [vmem:[%s5 + $0x50] sm:$0xf]
    %v1108 = vld [vmem:[%s5 + $0x54] sm:$0xff]
    %v1109 = vld [vmem:[%s5 + $0x5c] sm:$0xf]
    %v1110 = vld [vmem:[#allocation2 + $0x8] sm:$0x7]
    %s1111 = scalar_lea.vmem %s5, 96
    %v1112 = vld [vmem:[%s1111] sm:$0xff]
    %v1113 = vld [vmem:[%s1111 + $0x8] sm:$0xf]
    %v1114 = vld [vmem:[%s1111 + $0xc] sm:$0xff]
    %v1115 = vld [vmem:[%s1111 + $0x14] sm:$0xf]
    %v1116 = vld [vmem:[%s1111 + $0x18] sm:$0xff]
    %v1117 = vld [vmem:[%s1111 + $0x20] sm:$0xf]
    %v1118 = vld [vmem:[%s1111 + $0x24] sm:$0xff]
    %v1119 = vld [vmem:[%s1111 + $0x2c] sm:$0xf]
    %v1120 = vld [vmem:[%s1111 + $0x30] sm:$0xff]
    %v1121 = vld [vmem:[%s1111 + $0x38] sm:$0xf]
    %v1122 = vld [vmem:[%s1111 + $0x3c] sm:$0xff]
    %v1123 = vld [vmem:[%s1111 + $0x44] sm:$0xf]
    %v1124 = vld [vmem:[%s1111 + $0x48] sm:$0xff]
    %v1125 = vld [vmem:[%s1111 + $0x50] sm:$0xf]
    %v1126 = vld [vmem:[%s1111 + $0x54] sm:$0xff]
    %v1127 = vld [vmem:[%s1111 + $0x5c] sm:$0xf]
    %v1131 = vunpack.c.l.b16 %v1091
    %v1132 = vunpack.c.l.b16 %v1092
    %v1133 = vunpack.c.l.b16 %v1110
    %v1134 = vpack.c.b16 %v1132, %v1131
    %v1135 = vpack.c.b16 %v1133, %v1133
    %vm1136 = vsmask.f32 7424
    %v1138 = vshrl.u32 %v1134, 16
    %v1140 = vshll.u32 %v1134, 16
    %v1142 = vrot.slane %v1140, 1
    %v1143 = vor.u32 %v1138, %v1142
    %v1145 = vshll.u32 %v1135, 16
    %v1147 = vrot.slane %v1145, 1
    %v1148 = vsel %vm1136, %v1143, %v1147
    %v1149 = vshrl.u32 %v1135, 16
    %v1151 = vor.u32 %v1149, %v1147
    %v1168 = vunpack.c.l.b16 %v1112
    %v1169 = vunpack.c.h.b16 %v1112
    %v1170 = vunpack.c.l.b16 %v1113
    %v1171 = vunpack.c.l.b16 %v1114
    %v1172 = vunpack.c.h.b16 %v1114
    %v1173 = vunpack.c.l.b16 %v1115
    %v1174 = vunpack.c.l.b16 %v1116
    %v1175 = vunpack.c.h.b16 %v1116
    %v1176 = vunpack.c.l.b16 %v1117
    %v1177 = vunpack.c.l.b16 %v1118
    %v1178 = vunpack.c.h.b16 %v1118
    %v1179 = vunpack.c.l.b16 %v1119
    %v1180 = vunpack.c.l.b16 %v1120
    %v1181 = vunpack.c.h.b16 %v1120
    %v1182 = vunpack.c.l.b16 %v1121
    %v1183 = vunpack.c.l.b16 %v1122
    %v1184 = vunpack.c.h.b16 %v1122
    %v1185 = vunpack.c.l.b16 %v1123
    %v1186 = vunpack.c.l.b16 %v1124
    %v1187 = vunpack.c.h.b16 %v1124
    %v1188 = vunpack.c.l.b16 %v1125
    %v1189 = vunpack.c.l.b16 %v1126
    %v1190 = vunpack.c.h.b16 %v1126
    %v1191 = vunpack.c.l.b16 %v1127
    %v1192 = vpack.c.b16 %v1171, %v1168
    %v1193 = vpack.c.b16 %v1172, %v1169
    %v1194 = vpack.c.b16 %v1173, %v1170
    %v1195 = vpack.c.b16 %v1177, %v1174
    %v1196 = vpack.c.b16 %v1178, %v1175
    %v1197 = vpack.c.b16 %v1179, %v1176
    %v1198 = vpack.c.b16 %v1183, %v1180
    %v1199 = vpack.c.b16 %v1184, %v1181
    %v1200 = vpack.c.b16 %v1185, %v1182
    %v1201 = vpack.c.b16 %v1189, %v1186
    %v1202 = vpack.c.b16 %v1190, %v1187
    %v1203 = vpack.c.b16 %v1191, %v1188
    %v1217 = vsel %vm67, %v1148, 0
    %v1220 = vsel %vm67, %v1151, 0
    %1222 = vmatprep.subr.bf16.mxu0 0
    %1223 = vmatpush1.bf16.msra.mxu0 0
    %1224 = vmatprep.subr.bf16.mxu0 0
    %1225 = vmatpush1.bf16.msra.mxu0 0
    %1226 = vmatprep.subr.bf16.mxu0 0
    %1227 = vmatpush1.bf16.msra.mxu0 0
    %1228 = vmatprep.subr.bf16.mxu0 0
    %1229 = vmatpush1.bf16.msra.mxu0 0
    %1230 = vmatprep.subr.bf16.mxu0 %v1202
    %1231 = vmatpush1.bf16.msra.mxu0 %v1201
    %1232 = vmatprep.subr.bf16.mxu0 %v1199
    %1233 = vmatpush1.bf16.msra.mxu0 %v1198
    %1234 = vmatprep.subr.bf16.mxu0 %v1196
    %1235 = vmatpush1.bf16.msra.mxu0 %v1195
    %1236 = vmatprep.subr.bf16.mxu0 %v1193
    %1237 = vmatpush1.bf16.msra.mxu0 %v1192
    %1238 = vmatprep.subr.bf16.mxu0 0
    %1239 = vmatpush2.bf16.msra.mxu0 0
    %1240 = vmatprep.subr.bf16.mxu0 0
    %1241 = vmatpush2.bf16.msra.mxu0 0
    %1242 = vmatprep.subr.bf16.mxu0 0
    %1243 = vmatpush2.bf16.msra.mxu0 0
    %1244 = vmatprep.subr.bf16.mxu0 0
    %1245 = vmatpush2.bf16.msra.mxu0 0
    %1246 = vmatprep.subr.bf16.mxu0 0
    %1247 = vmatpush2.bf16.msra.mxu0 0
    %1248 = vmatprep.subr.bf16.mxu0 0
    %1249 = vmatpush2.bf16.msra.mxu0 0
    %1250 = vmatprep.subr.bf16.mxu0 0
    %1251 = vmatpush2.bf16.msra.mxu0 0
    %1252 = vmatprep.subr.bf16.mxu0 0
    %1253 = vmatpush2.bf16.msra.mxu0 0
    %1254 = vmatprep.mubr.bf16.mxu0 0
    %1255 = vmatmul.mubr.bf16.gmra.mxu0 %v1217
    %v1256 = vpop.f32.mrf.mxu0
    %v1257 = vadd.f32 0.0, %v1256
    %v1258 = vpop.f32.mrf.mxu0
    %v1259 = vadd.f32 0.0, %v1258
    %v1260 = vpop.f32.mrf.mxu0
    %v1261 = vadd.f32 0.0, %v1260
    %v1262 = vpop.f32.mrf.mxu0
    %v1263 = vadd.f32 0.0, %v1262
    %1264 = vmatprep.mubr.bf16.mxu0 0
    %1265 = vmatmul.mubr.bf16.gmra.mxu0 %v1220
    %v1266 = vpop.f32.mrf.mxu0
    %v1267 = vadd.f32 0.0, %v1266
    %v1268 = vpop.f32.mrf.mxu0
    %v1269 = vadd.f32 0.0, %v1268
    %v1270 = vpop.f32.mrf.mxu0
    %v1271 = vpop.f32.mrf.mxu0
    %1272 = vdwg.mxu0
    %1273 = vmatprep.subr.bf16.mxu0 0
    %1274 = vmatpush1.bf16.msra.mxu0 0
    %1275 = vmatprep.subr.bf16.mxu0 0
    %1276 = vmatpush1.bf16.msra.mxu0 0
    %1277 = vmatprep.subr.bf16.mxu0 0
    %1278 = vmatpush1.bf16.msra.mxu0 0
    %1279 = vmatprep.subr.bf16.mxu0 0
    %1280 = vmatpush1.bf16.msra.mxu0 0
    %1281 = vmatprep.subr.bf16.mxu0 0
    %1282 = vmatpush1.bf16.msra.mxu0 %v1203
    %1283 = vmatprep.subr.bf16.mxu0 0
    %1284 = vmatpush1.bf16.msra.mxu0 %v1200
    %1285 = vmatprep.subr.bf16.mxu0 0
    %1286 = vmatpush1.bf16.msra.mxu0 %v1197
    %1287 = vmatprep.subr.bf16.mxu0 0
    %1288 = vmatpush1.bf16.msra.mxu0 %v1194
    %1289 = vmatprep.subr.bf16.mxu0 0
    %1290 = vmatpush2.bf16.msra.mxu0 0
    %1291 = vmatprep.subr.bf16.mxu0 0
    %1292 = vmatpush2.bf16.msra.mxu0 0
    %1293 = vmatprep.subr.bf16.mxu0 0
    %1294 = vmatpush2.bf16.msra.mxu0 0
    %1295 = vmatprep.subr.bf16.mxu0 0
    %1296 = vmatpush2.bf16.msra.mxu0 0
    %1297 = vmatprep.subr.bf16.mxu0 0
    %1298 = vmatpush2.bf16.msra.mxu0 0
    %1299 = vmatprep.subr.bf16.mxu0 0
    %1300 = vmatpush2.bf16.msra.mxu0 0
    %1301 = vmatprep.subr.bf16.mxu0 0
    %1302 = vmatpush2.bf16.msra.mxu0 0
    %1303 = vmatprep.subr.bf16.mxu0 0
    %1304 = vmatpush2.bf16.msra.mxu0 0
    %1305 = vmatprep.mubr.bf16.mxu0 0
    %1306 = vmatmul.mubr.bf16.gmra.mxu0 %v1217
    %v1307 = vpop.f32.mrf.mxu0
    %v1308 = vadd.f32 0.0, %v1307
    %v1309 = vpop.f32.mrf.mxu0
    %v1310 = vpop.f32.mrf.mxu0
    %v1311 = vadd.f32 0.0, %v1310
    %v1312 = vpop.f32.mrf.mxu0
    %1313 = vmatprep.mubr.bf16.mxu0 0
    %1314 = vmatmul.mubr.bf16.gmra.mxu0 %v1220
    %v1315 = vpop.f32.mrf.mxu0
    %v1316 = vadd.f32 0.0, %v1315
    %v1317 = vpop.f32.mrf.mxu0
    %v1318 = vpop.f32.mrf.mxu0
    %v1319 = vpop.f32.mrf.mxu0
    %1320 = vdwg.mxu0
    %v1322 = vunpack.c.l.b16 %v1093
    %v1323 = vpack.c.b16 %v1322, %v1322
    %v1340 = vunpack.c.l.b16 %v1094
    %v1341 = vunpack.c.h.b16 %v1094
    %v1342 = vunpack.c.l.b16 %v1095
    %v1343 = vunpack.c.l.b16 %v1096
    %v1344 = vunpack.c.h.b16 %v1096
    %v1345 = vunpack.c.l.b16 %v1097
    %v1346 = vunpack.c.l.b16 %v1098
    %v1347 = vunpack.c.h.b16 %v1098
    %v1348 = vunpack.c.l.b16 %v1099
    %v1349 = vunpack.c.l.b16 %v1100
    %v1350 = vunpack.c.h.b16 %v1100
    %v1351 = vunpack.c.l.b16 %v1101
    %v1352 = vunpack.c.l.b16 %v1102
    %v1353 = vunpack.c.h.b16 %v1102
    %v1354 = vunpack.c.l.b16 %v1103
    %v1355 = vunpack.c.l.b16 %v1104
    %v1356 = vunpack.c.h.b16 %v1104
    %v1357 = vunpack.c.l.b16 %v1105
    %v1358 = vunpack.c.l.b16 %v1106
    %v1359 = vunpack.c.h.b16 %v1106
    %v1360 = vunpack.c.l.b16 %v1107
    %v1361 = vunpack.c.l.b16 %v1108
    %v1362 = vunpack.c.h.b16 %v1108
    %v1363 = vunpack.c.l.b16 %v1109
    %v1364 = vpack.c.b16 %v1343, %v1340
    %v1365 = vpack.c.b16 %v1344, %v1341
    %v1366 = vpack.c.b16 %v1345, %v1342
    %v1367 = vpack.c.b16 %v1349, %v1346
    %v1368 = vpack.c.b16 %v1350, %v1347
    %v1369 = vpack.c.b16 %v1351, %v1348
    %v1370 = vpack.c.b16 %v1355, %v1352
    %v1371 = vpack.c.b16 %v1356, %v1353
    %v1372 = vpack.c.b16 %v1357, %v1354
    %v1373 = vpack.c.b16 %v1361, %v1358
    %v1374 = vpack.c.b16 %v1362, %v1359
    %v1375 = vpack.c.b16 %v1363, %v1360
    %v1388 = vsel %vm67, %v1134, 0
    %v1391 = vsel %vm67, %v1323, 0
    %1393 = vmatprep.subr.bf16.mxu0 0
    %1394 = vmatpush1.bf16.msra.mxu0 0
    %1395 = vmatprep.subr.bf16.mxu0 0
    %1396 = vmatpush1.bf16.msra.mxu0 0
    %1397 = vmatprep.subr.bf16.mxu0 0
    %1398 = vmatpush1.bf16.msra.mxu0 0
    %1399 = vmatprep.subr.bf16.mxu0 0
    %1400 = vmatpush1.bf16.msra.mxu0 0
    %1401 = vmatprep.subr.bf16.mxu0 %v1374
    %1402 = vmatpush1.bf16.msra.mxu0 %v1373
    %1403 = vmatprep.subr.bf16.mxu0 %v1371
    %1404 = vmatpush1.bf16.msra.mxu0 %v1370
    %1405 = vmatprep.subr.bf16.mxu0 %v1368
    %1406 = vmatpush1.bf16.msra.mxu0 %v1367
    %1407 = vmatprep.subr.bf16.mxu0 %v1365
    %1408 = vmatpush1.bf16.msra.mxu0 %v1364
    %1409 = vmatprep.subr.bf16.mxu0 0
    %1410 = vmatpush2.bf16.msra.mxu0 0
    %1411 = vmatprep.subr.bf16.mxu0 0
    %1412 = vmatpush2.bf16.msra.mxu0 0
    %1413 = vmatprep.subr.bf16.mxu0 0
    %1414 = vmatpush2.bf16.msra.mxu0 0
    %1415 = vmatprep.subr.bf16.mxu0 0
    %1416 = vmatpush2.bf16.msra.mxu0 0
    %1417 = vmatprep.subr.bf16.mxu0 0
    %1418 = vmatpush2.bf16.msra.mxu0 0
    %1419 = vmatprep.subr.bf16.mxu0 0
    %1420 = vmatpush2.bf16.msra.mxu0 0
    %1421 = vmatprep.subr.bf16.mxu0 0
    %1422 = vmatpush2.bf16.msra.mxu0 0
    %1423 = vmatprep.subr.bf16.mxu0 0
    %1424 = vmatpush2.bf16.msra.mxu0 0
    %1425 = vmatprep.mubr.bf16.mxu0 0
    %1426 = vmatmul.mubr.bf16.gmra.mxu0 %v1388
    %v1427 = vpop.f32.mrf.mxu0
    %v1428 = vadd.f32 %v1257, %v1427
    %v1429 = vpop.f32.mrf.mxu0
    %v1430 = vadd.f32 %v1259, %v1429
    %v1431 = vpop.f32.mrf.mxu0
    %v1432 = vadd.f32 %v1261, %v1431
    %v1433 = vpop.f32.mrf.mxu0
    %v1434 = vadd.f32 %v1263, %v1433
    %1435 = vmatprep.mubr.bf16.mxu0 0
    %1436 = vmatmul.mubr.bf16.gmra.mxu0 %v1391
    %v1437 = vpop.f32.mrf.mxu0
    %v1438 = vadd.f32 %v1267, %v1437
    %v1439 = vpop.f32.mrf.mxu0
    %v1440 = vadd.f32 %v1269, %v1439
    %v1441 = vpop.f32.mrf.mxu0
    %v1442 = vpop.f32.mrf.mxu0
    %1443 = vdwg.mxu0
    %1444 = vmatprep.subr.bf16.mxu0 0
    %1445 = vmatpush1.bf16.msra.mxu0 0
    %1446 = vmatprep.subr.bf16.mxu0 0
    %1447 = vmatpush1.bf16.msra.mxu0 0
    %1448 = vmatprep.subr.bf16.mxu0 0
    %1449 = vmatpush1.bf16.msra.mxu0 0
    %1450 = vmatprep.subr.bf16.mxu0 0
    %1451 = vmatpush1.bf16.msra.mxu0 0
    %1452 = vmatprep.subr.bf16.mxu0 0
    %1453 = vmatpush1.bf16.msra.mxu0 %v1375
    %1454 = vmatprep.subr.bf16.mxu0 0
    %1455 = vmatpush1.bf16.msra.mxu0 %v1372
    %1456 = vmatprep.subr.bf16.mxu0 0
    %1457 = vmatpush1.bf16.msra.mxu0 %v1369
    %1458 = vmatprep.subr.bf16.mxu0 0
    %1459 = vmatpush1.bf16.msra.mxu0 %v1366
    %1460 = vmatprep.subr.bf16.mxu0 0
    %1461 = vmatpush2.bf16.msra.mxu0 0
    %1462 = vmatprep.subr.bf16.mxu0 0
    %1463 = vmatpush2.bf16.msra.mxu0 0
    %1464 = vmatprep.subr.bf16.mxu0 0
    %1465 = vmatpush2.bf16.msra.mxu0 0
    %1466 = vmatprep.subr.bf16.mxu0 0
    %1467 = vmatpush2.bf16.msra.mxu0 0
    %1468 = vmatprep.subr.bf16.mxu0 0
    %1469 = vmatpush2.bf16.msra.mxu0 0
    %1470 = vmatprep.subr.bf16.mxu0 0
    %1471 = vmatpush2.bf16.msra.mxu0 0
    %1472 = vmatprep.subr.bf16.mxu0 0
    %1473 = vmatpush2.bf16.msra.mxu0 0
    %1474 = vmatprep.subr.bf16.mxu0 0
    %1475 = vmatpush2.bf16.msra.mxu0 0
    %1476 = vmatprep.mubr.bf16.mxu0 0
    %1477 = vmatmul.mubr.bf16.gmra.mxu0 %v1388
    %v1478 = vpop.f32.mrf.mxu0
    %v1479 = vadd.f32 %v1308, %v1478
    %v1480 = vpop.f32.mrf.mxu0
    %v1481 = vpop.f32.mrf.mxu0
    %v1482 = vadd.f32 %v1311, %v1481
    %v1483 = vpop.f32.mrf.mxu0
    %1484 = vmatprep.mubr.bf16.mxu0 0
    %1485 = vmatmul.mubr.bf16.gmra.mxu0 %v1391
    %v1486 = vpop.f32.mrf.mxu0
    %v1487 = vadd.f32 %v1316, %v1486
    %v1488 = vpop.f32.mrf.mxu0
    %v1489 = vpop.f32.mrf.mxu0
    %v1490 = vpop.f32.mrf.mxu0
    %1491 = vdwg.mxu0
    %v1492 = vld [vmem:[#allocation2] sm:$0xe]
    %s1493 = scalar_lea.vmem %s5, 192
    %v1494 = vld [vmem:[%s1493] sm:$0xff]
    %v1495 = vld [vmem:[%s1493 + $0x8] sm:$0xf]
    %v1496 = vld [vmem:[%s1493 + $0xc] sm:$0xff]
    %v1497 = vld [vmem:[%s1493 + $0x14] sm:$0xf]
    %v1498 = vld [vmem:[%s1493 + $0x18] sm:$0xff]
    %v1499 = vld [vmem:[%s1493 + $0x20] sm:$0xf]
    %v1500 = vld [vmem:[%s1493 + $0x24] sm:$0xff]
    %v1501 = vld [vmem:[%s1493 + $0x2c] sm:$0xf]
    %v1502 = vld [vmem:[%s1493 + $0x30] sm:$0xff]
    %v1503 = vld [vmem:[%s1493 + $0x38] sm:$0xf]
    %v1504 = vld [vmem:[%s1493 + $0x3c] sm:$0xff]
    %v1505 = vld [vmem:[%s1493 + $0x44] sm:$0xf]
    %v1506 = vld [vmem:[%s1493 + $0x48] sm:$0xff]
    %v1507 = vld [vmem:[%s1493 + $0x50] sm:$0xf]
    %v1508 = vld [vmem:[%s1493 + $0x54] sm:$0xff]
    %v1509 = vld [vmem:[%s1493 + $0x5c] sm:$0xf]
    %v1511 = vunpack.c.l.b16 %v1492
    %v1512 = vpack.c.b16 %v1132, %v1511
    %vm1513 = vcmask 1046528
    %v1514 = vrot.slane %v1512, 1
    %v1515 = vrot.slane %v1135, 1
    %v1516 = vsel %vm1513, %v1514, %v1515
    %v1533 = vunpack.c.l.b16 %v1494
    %v1534 = vunpack.c.h.b16 %v1494
    %v1535 = vunpack.c.l.b16 %v1495
    %v1536 = vunpack.c.l.b16 %v1496
    %v1537 = vunpack.c.h.b16 %v1496
    %v1538 = vunpack.c.l.b16 %v1497
    %v1539 = vunpack.c.l.b16 %v1498
    %v1540 = vunpack.c.h.b16 %v1498
    %v1541 = vunpack.c.l.b16 %v1499
    %v1542 = vunpack.c.l.b16 %v1500
    %v1543 = vunpack.c.h.b16 %v1500
    %v1544 = vunpack.c.l.b16 %v1501
    %v1545 = vunpack.c.l.b16 %v1502
    %v1546 = vunpack.c.h.b16 %v1502
    %v1547 = vunpack.c.l.b16 %v1503
    %v1548 = vunpack.c.l.b16 %v1504
    %v1549 = vunpack.c.h.b16 %v1504
    %v1550 = vunpack.c.l.b16 %v1505
    %v1551 = vunpack.c.l.b16 %v1506
    %v1552 = vunpack.c.h.b16 %v1506
    %v1553 = vunpack.c.l.b16 %v1507
    %v1554 = vunpack.c.l.b16 %v1508
    %v1555 = vunpack.c.h.b16 %v1508
    %v1556 = vunpack.c.l.b16 %v1509
    %v1557 = vpack.c.b16 %v1536, %v1533
    %v1558 = vpack.c.b16 %v1537, %v1534
    %v1559 = vpack.c.b16 %v1538, %v1535
    %v1560 = vpack.c.b16 %v1542, %v1539
    %v1561 = vpack.c.b16 %v1543, %v1540
    %v1562 = vpack.c.b16 %v1544, %v1541
    %v1563 = vpack.c.b16 %v1548, %v1545
    %v1564 = vpack.c.b16 %v1549, %v1546
    %v1565 = vpack.c.b16 %v1550, %v1547
    %v1566 = vpack.c.b16 %v1554, %v1551
    %v1567 = vpack.c.b16 %v1555, %v1552
    %v1568 = vpack.c.b16 %v1556, %v1553
    %v1582 = vsel %vm67, %v1516, 0
    %v1585 = vsel %vm67, %v1515, 0
    %1587 = vmatprep.subr.bf16.mxu0 0
    %1588 = vmatpush1.bf16.msra.mxu0 0
    %1589 = vmatprep.subr.bf16.mxu0 0
    %1590 = vmatpush1.bf16.msra.mxu0 0
    %1591 = vmatprep.subr.bf16.mxu0 0
    %1592 = vmatpush1.bf16.msra.mxu0 0
    %1593 = vmatprep.subr.bf16.mxu0 0
    %1594 = vmatpush1.bf16.msra.mxu0 0
    %1595 = vmatprep.subr.bf16.mxu0 %v1567
    %1596 = vmatpush1.bf16.msra.mxu0 %v1566
    %1597 = vmatprep.subr.bf16.mxu0 %v1564
    %1598 = vmatpush1.bf16.msra.mxu0 %v1563
    %1599 = vmatprep.subr.bf16.mxu0 %v1561
    %1600 = vmatpush1.bf16.msra.mxu0 %v1560
    %1601 = vmatprep.subr.bf16.mxu0 %v1558
    %1602 = vmatpush1.bf16.msra.mxu0 %v1557
    %1603 = vmatprep.subr.bf16.mxu0 0
    %1604 = vmatpush2.bf16.msra.mxu0 0
    %1605 = vmatprep.subr.bf16.mxu0 0
    %1606 = vmatpush2.bf16.msra.mxu0 0
    %1607 = vmatprep.subr.bf16.mxu0 0
    %1608 = vmatpush2.bf16.msra.mxu0 0
    %1609 = vmatprep.subr.bf16.mxu0 0
    %1610 = vmatpush2.bf16.msra.mxu0 0
    %1611 = vmatprep.subr.bf16.mxu0 0
    %1612 = vmatpush2.bf16.msra.mxu0 0
    %1613 = vmatprep.subr.bf16.mxu0 0
    %1614 = vmatpush2.bf16.msra.mxu0 0
    %1615 = vmatprep.subr.bf16.mxu0 0
    %1616 = vmatpush2.bf16.msra.mxu0 0
    %1617 = vmatprep.subr.bf16.mxu0 0
    %1618 = vmatpush2.bf16.msra.mxu0 0
    %1619 = vmatprep.mubr.bf16.mxu0 0
    %1620 = vmatmul.mubr.bf16.gmra.mxu0 %v1582
    %v1621 = vpop.f32.mrf.mxu0
    %v1622 = vadd.f32 0.0, %v1621
    %v1623 = vpop.f32.mrf.mxu0
    %v1624 = vadd.f32 0.0, %v1623
    %v1625 = vpop.f32.mrf.mxu0
    %v1626 = vadd.f32 0.0, %v1625
    %v1627 = vpop.f32.mrf.mxu0
    %v1628 = vadd.f32 0.0, %v1627
    %1629 = vmatprep.mubr.bf16.mxu0 0
    %1630 = vmatmul.mubr.bf16.gmra.mxu0 %v1585
    %v1631 = vpop.f32.mrf.mxu0
    %v1632 = vadd.f32 0.0, %v1631
    %v1633 = vpop.f32.mrf.mxu0
    %v1634 = vadd.f32 0.0, %v1633
    %v1635 = vpop.f32.mrf.mxu0
    %v1636 = vpop.f32.mrf.mxu0
    %1637 = vdwg.mxu0
    %1638 = vmatprep.subr.bf16.mxu0 0
    %1639 = vmatpush1.bf16.msra.mxu0 0
    %1640 = vmatprep.subr.bf16.mxu0 0
    %1641 = vmatpush1.bf16.msra.mxu0 0
    %1642 = vmatprep.subr.bf16.mxu0 0
    %1643 = vmatpush1.bf16.msra.mxu0 0
    %1644 = vmatprep.subr.bf16.mxu0 0
    %1645 = vmatpush1.bf16.msra.mxu0 0
    %1646 = vmatprep.subr.bf16.mxu0 0
    %1647 = vmatpush1.bf16.msra.mxu0 %v1568
    %1648 = vmatprep.subr.bf16.mxu0 0
    %1649 = vmatpush1.bf16.msra.mxu0 %v1565
    %1650 = vmatprep.subr.bf16.mxu0 0
    %1651 = vmatpush1.bf16.msra.mxu0 %v1562
    %1652 = vmatprep.subr.bf16.mxu0 0
    %1653 = vmatpush1.bf16.msra.mxu0 %v1559
    %1654 = vmatprep.subr.bf16.mxu0 0
    %1655 = vmatpush2.bf16.msra.mxu0 0
    %1656 = vmatprep.subr.bf16.mxu0 0
    %1657 = vmatpush2.bf16.msra.mxu0 0
    %1658 = vmatprep.subr.bf16.mxu0 0
    %1659 = vmatpush2.bf16.msra.mxu0 0
    %1660 = vmatprep.subr.bf16.mxu0 0
    %1661 = vmatpush2.bf16.msra.mxu0 0
    %1662 = vmatprep.subr.bf16.mxu0 0
    %1663 = vmatpush2.bf16.msra.mxu0 0
    %1664 = vmatprep.subr.bf16.mxu0 0
    %1665 = vmatpush2.bf16.msra.mxu0 0
    %1666 = vmatprep.subr.bf16.mxu0 0
    %1667 = vmatpush2.bf16.msra.mxu0 0
    %1668 = vmatprep.subr.bf16.mxu0 0
    %1669 = vmatpush2.bf16.msra.mxu0 0
    %1670 = vmatprep.mubr.bf16.mxu0 0
    %1671 = vmatmul.mubr.bf16.gmra.mxu0 %v1582
    %v1672 = vpop.f32.mrf.mxu0
    %v1673 = vadd.f32 0.0, %v1672
    %v1674 = vpop.f32.mrf.mxu0
    %v1675 = vpop.f32.mrf.mxu0
    %v1676 = vadd.f32 0.0, %v1675
    %v1677 = vpop.f32.mrf.mxu0
    %1678 = vmatprep.mubr.bf16.mxu0 0
    %1679 = vmatmul.mubr.bf16.gmra.mxu0 %v1585
    %v1680 = vpop.f32.mrf.mxu0
    %v1681 = vadd.f32 0.0, %v1680
    %v1682 = vpop.f32.mrf.mxu0
    %v1683 = vpop.f32.mrf.mxu0
    %v1684 = vpop.f32.mrf.mxu0
    %1685 = vdwg.mxu0
    %v1686 = vadd.f32 %v1428, %v1622
    %v1687 = vadd.f32 %v1430, %v1624
    %v1688 = vadd.f32 %v1479, %v1673
    %v1689 = vadd.f32 %v1432, %v1626
    %v1690 = vadd.f32 %v1434, %v1628
    %v1691 = vadd.f32 %v1482, %v1676
    %v1692 = vadd.f32 %v1438, %v1632
    %v1693 = vadd.f32 %v1440, %v1634
    %v1694 = vadd.f32 %v1487, %v1681
    %v1695 = vld [vmem:[#allocation2 + $0x8] sm:$0xf]
    %s1696 = scalar_lea.vmem %s5, 288
    %v1697 = vld [vmem:[%s1696] sm:$0xff]
    %v1698 = vld [vmem:[%s1696 + $0x8] sm:$0xf]
    %v1699 = vld [vmem:[%s1696 + $0xc] sm:$0xff]
    %v1700 = vld [vmem:[%s1696 + $0x14] sm:$0xf]
    %v1701 = vld [vmem:[%s1696 + $0x18] sm:$0xff]
    %v1702 = vld [vmem:[%s1696 + $0x20] sm:$0xf]
    %v1703 = vld [vmem:[%s1696 + $0x24] sm:$0xff]
    %v1704 = vld [vmem:[%s1696 + $0x2c] sm:$0xf]
    %v1705 = vld [vmem:[%s1696 + $0x30] sm:$0xff]
    %v1706 = vld [vmem:[%s1696 + $0x38] sm:$0xf]
    %v1707 = vld [vmem:[%s1696 + $0x3c] sm:$0xff]
    %v1708 = vld [vmem:[%s1696 + $0x44] sm:$0xf]
    %v1709 = vld [vmem:[%s1696 + $0x48] sm:$0xff]
    %v1710 = vld [vmem:[%s1696 + $0x50] sm:$0xf]
    %v1711 = vld [vmem:[%s1696 + $0x54] sm:$0xff]
    %v1712 = vld [vmem:[%s1696 + $0x5c] sm:$0xf]
    %v1714 = vunpack.c.l.b16 %v1695
    %v1715 = vpack.c.b16 %v1714, %v1714
    %vm1716 = vsmask.f32 6400
    %v1718 = vshrl.u32 %v1512, 16
    %v1720 = vrot.slane %v1718, 1
    %v1721 = vshll.u32 %v1512, 16
    %v1723 = vrot.slane %v1721, 2
    %v1724 = vor.u32 %v1720, %v1723
    %v1726 = vshrl.u32 %v1715, 16
    %v1728 = vrot.slane %v1726, 1
    %v1729 = vshll.u32 %v1715, 16
    %v1731 = vrot.slane %v1729, 2
    %v1732 = vor.u32 %v1728, %v1731
    %v1733 = vsel %vm1716, %v1724, %v1732
    %v1750 = vunpack.c.l.b16 %v1697
    %v1751 = vunpack.c.h.b16 %v1697
    %v1752 = vunpack.c.l.b16 %v1698
    %v1753 = vunpack.c.l.b16 %v1699
    %v1754 = vunpack.c.h.b16 %v1699
    %v1755 = vunpack.c.l.b16 %v1700
    %v1756 = vunpack.c.l.b16 %v1701
    %v1757 = vunpack.c.h.b16 %v1701
    %v1758 = vunpack.c.l.b16 %v1702
    %v1759 = vunpack.c.l.b16 %v1703
    %v1760 = vunpack.c.h.b16 %v1703
    %v1761 = vunpack.c.l.b16 %v1704
    %v1762 = vunpack.c.l.b16 %v1705
    %v1763 = vunpack.c.h.b16 %v1705
    %v1764 = vunpack.c.l.b16 %v1706
    %v1765 = vunpack.c.l.b16 %v1707
    %v1766 = vunpack.c.h.b16 %v1707
    %v1767 = vunpack.c.l.b16 %v1708
    %v1768 = vunpack.c.l.b16 %v1709
    %v1769 = vunpack.c.h.b16 %v1709
    %v1770 = vunpack.c.l.b16 %v1710
    %v1771 = vunpack.c.l.b16 %v1711
    %v1772 = vunpack.c.h.b16 %v1711
    %v1773 = vunpack.c.l.b16 %v1712
    %v1774 = vpack.c.b16 %v1753, %v1750
    %v1775 = vpack.c.b16 %v1754, %v1751
    %v1776 = vpack.c.b16 %v1755, %v1752
    %v1777 = vpack.c.b16 %v1759, %v1756
    %v1778 = vpack.c.b16 %v1760, %v1757
    %v1779 = vpack.c.b16 %v1761, %v1758
    %v1780 = vpack.c.b16 %v1765, %v1762
    %v1781 = vpack.c.b16 %v1766, %v1763
    %v1782 = vpack.c.b16 %v1767, %v1764
    %v1783 = vpack.c.b16 %v1771, %v1768
    %v1784 = vpack.c.b16 %v1772, %v1769
    %v1785 = vpack.c.b16 %v1773, %v1770
    %v1799 = vsel %vm67, %v1733, 0
    %v1802 = vsel %vm67, %v1732, 0
    %1804 = vmatprep.subr.bf16.mxu0 0
    %1805 = vmatpush1.bf16.msra.mxu0 0
    %1806 = vmatprep.subr.bf16.mxu0 0
    %1807 = vmatpush1.bf16.msra.mxu0 0
    %1808 = vmatprep.subr.bf16.mxu0 0
    %1809 = vmatpush1.bf16.msra.mxu0 0
    %1810 = vmatprep.subr.bf16.mxu0 0
    %1811 = vmatpush1.bf16.msra.mxu0 0
    %1812 = vmatprep.subr.bf16.mxu0 %v1784
    %1813 = vmatpush1.bf16.msra.mxu0 %v1783
    %1814 = vmatprep.subr.bf16.mxu0 %v1781
    %1815 = vmatpush1.bf16.msra.mxu0 %v1780
    %1816 = vmatprep.subr.bf16.mxu0 %v1778
    %1817 = vmatpush1.bf16.msra.mxu0 %v1777
    %1818 = vmatprep.subr.bf16.mxu0 %v1775
    %1819 = vmatpush1.bf16.msra.mxu0 %v1774
    %1820 = vmatprep.subr.bf16.mxu0 0
    %1821 = vmatpush2.bf16.msra.mxu0 0
    %1822 = vmatprep.subr.bf16.mxu0 0
    %1823 = vmatpush2.bf16.msra.mxu0 0
    %1824 = vmatprep.subr.bf16.mxu0 0
    %1825 = vmatpush2.bf16.msra.mxu0 0
    %1826 = vmatprep.subr.bf16.mxu0 0
    %1827 = vmatpush2.bf16.msra.mxu0 0
    %1828 = vmatprep.subr.bf16.mxu0 0
    %1829 = vmatpush2.bf16.msra.mxu0 0
    %1830 = vmatprep.subr.bf16.mxu0 0
    %1831 = vmatpush2.bf16.msra.mxu0 0
    %1832 = vmatprep.subr.bf16.mxu0 0
    %1833 = vmatpush2.bf16.msra.mxu0 0
    %1834 = vmatprep.subr.bf16.mxu0 0
    %1835 = vmatpush2.bf16.msra.mxu0 0
    %1836 = vmatprep.mubr.bf16.mxu0 0
    %1837 = vmatmul.mubr.bf16.gmra.mxu0 %v1799
    %v1838 = vpop.f32.mrf.mxu0
    %v1839 = vadd.f32 0.0, %v1838
    %v1840 = vpop.f32.mrf.mxu0
    %v1841 = vadd.f32 0.0, %v1840
    %v1842 = vpop.f32.mrf.mxu0
    %v1843 = vadd.f32 0.0, %v1842
    %v1844 = vpop.f32.mrf.mxu0
    %v1845 = vadd.f32 0.0, %v1844
    %1846 = vmatprep.mubr.bf16.mxu0 0
    %1847 = vmatmul.mubr.bf16.gmra.mxu0 %v1802
    %v1848 = vpop.f32.mrf.mxu0
    %v1849 = vadd.f32 0.0, %v1848
    %v1850 = vpop.f32.mrf.mxu0
    %v1851 = vadd.f32 0.0, %v1850
    %v1852 = vpop.f32.mrf.mxu0
    %v1853 = vpop.f32.mrf.mxu0
    %1854 = vdwg.mxu0
    %1855 = vmatprep.subr.bf16.mxu0 0
    %1856 = vmatpush1.bf16.msra.mxu0 0
    %1857 = vmatprep.subr.bf16.mxu0 0
    %1858 = vmatpush1.bf16.msra.mxu0 0
    %1859 = vmatprep.subr.bf16.mxu0 0
    %1860 = vmatpush1.bf16.msra.mxu0 0
    %1861 = vmatprep.subr.bf16.mxu0 0
    %1862 = vmatpush1.bf16.msra.mxu0 0
    %1863 = vmatprep.subr.bf16.mxu0 0
    %1864 = vmatpush1.bf16.msra.mxu0 %v1785
    %1865 = vmatprep.subr.bf16.mxu0 0
    %1866 = vmatpush1.bf16.msra.mxu0 %v1782
    %1867 = vmatprep.subr.bf16.mxu0 0
    %1868 = vmatpush1.bf16.msra.mxu0 %v1779
    %1869 = vmatprep.subr.bf16.mxu0 0
    %1870 = vmatpush1.bf16.msra.mxu0 %v1776
    %1871 = vmatprep.subr.bf16.mxu0 0
    %1872 = vmatpush2.bf16.msra.mxu0 0
    %1873 = vmatprep.subr.bf16.mxu0 0
    %1874 = vmatpush2.bf16.msra.mxu0 0
    %1875 = vmatprep.subr.bf16.mxu0 0
    %1876 = vmatpush2.bf16.msra.mxu0 0
    %1877 = vmatprep.subr.bf16.mxu0 0
    %1878 = vmatpush2.bf16.msra.mxu0 0
    %1879 = vmatprep.subr.bf16.mxu0 0
    %1880 = vmatpush2.bf16.msra.mxu0 0
    %1881 = vmatprep.subr.bf16.mxu0 0
    %1882 = vmatpush2.bf16.msra.mxu0 0
    %1883 = vmatprep.subr.bf16.mxu0 0
    %1884 = vmatpush2.bf16.msra.mxu0 0
    %1885 = vmatprep.subr.bf16.mxu0 0
    %1886 = vmatpush2.bf16.msra.mxu0 0
    %1887 = vmatprep.mubr.bf16.mxu0 0
    %1888 = vmatmul.mubr.bf16.gmra.mxu0 %v1799
    %v1889 = vpop.f32.mrf.mxu0
    %v1890 = vadd.f32 0.0, %v1889
    %v1891 = vpop.f32.mrf.mxu0
    %v1892 = vpop.f32.mrf.mxu0
    %v1893 = vadd.f32 0.0, %v1892
    %v1894 = vpop.f32.mrf.mxu0
    %1895 = vmatprep.mubr.bf16.mxu0 0
    %1896 = vmatmul.mubr.bf16.gmra.mxu0 %v1802
    %v1897 = vpop.f32.mrf.mxu0
    %v1898 = vadd.f32 0.0, %v1897
    %v1899 = vpop.f32.mrf.mxu0
    %v1900 = vpop.f32.mrf.mxu0
    %v1901 = vpop.f32.mrf.mxu0
    %1902 = vdwg.mxu0
    %v1903 = vadd.f32 %v1686, %v1839
    %v1904 = vadd.f32 %v1687, %v1841
    %v1905 = vadd.f32 %v1688, %v1890
    %v1906 = vadd.f32 %v1689, %v1843
    %v1907 = vadd.f32 %v1690, %v1845
    %v1908 = vadd.f32 %v1691, %v1893
    %v1909 = vadd.f32 %v1692, %v1849
    %v1910 = vadd.f32 %v1693, %v1851
    %v1911 = vadd.f32 %v1694, %v1898
    %v1912 = vld [vmem:[#allocation2] sm:$0xc]
    %s1913 = scalar_lea.vmem %s5, 384
    %v1914 = vld [vmem:[%s1913] sm:$0xff]
    %v1915 = vld [vmem:[%s1913 + $0x8] sm:$0xf]
    %v1916 = vld [vmem:[%s1913 + $0xc] sm:$0xff]
    %v1917 = vld [vmem:[%s1913 + $0x14] sm:$0xf]
    %v1918 = vld [vmem:[%s1913 + $0x18] sm:$0xff]
    %v1919 = vld [vmem:[%s1913 + $0x20] sm:$0xf]
    %v1920 = vld [vmem:[%s1913 + $0x24] sm:$0xff]
    %v1921 = vld [vmem:[%s1913 + $0x2c] sm:$0xf]
    %v1922 = vld [vmem:[%s1913 + $0x30] sm:$0xff]
    %v1923 = vld [vmem:[%s1913 + $0x38] sm:$0xf]
    %v1924 = vld [vmem:[%s1913 + $0x3c] sm:$0xff]
    %v1925 = vld [vmem:[%s1913 + $0x44] sm:$0xf]
    %v1926 = vld [vmem:[%s1913 + $0x48] sm:$0xff]
    %v1927 = vld [vmem:[%s1913 + $0x50] sm:$0xf]
    %v1928 = vld [vmem:[%s1913 + $0x54] sm:$0xff]
    %v1929 = vld [vmem:[%s1913 + $0x5c] sm:$0xf]
    %v1931 = vunpack.c.l.b16 %v1912
    %v1932 = vpack.c.b16 %v1132, %v1931
    %vm1933 = vcmask 1045504
    %v1934 = vrot.slane %v1932, 2
    %v1935 = vrot.slane %v1715, 2
    %v1936 = vsel %vm1933, %v1934, %v1935
    %v1953 = vunpack.c.l.b16 %v1914
    %v1954 = vunpack.c.h.b16 %v1914
    %v1955 = vunpack.c.l.b16 %v1915
    %v1956 = vunpack.c.l.b16 %v1916
    %v1957 = vunpack.c.h.b16 %v1916
    %v1958 = vunpack.c.l.b16 %v1917
    %v1959 = vunpack.c.l.b16 %v1918
    %v1960 = vunpack.c.h.b16 %v1918
    %v1961 = vunpack.c.l.b16 %v1919
    %v1962 = vunpack.c.l.b16 %v1920
    %v1963 = vunpack.c.h.b16 %v1920
    %v1964 = vunpack.c.l.b16 %v1921
    %v1965 = vunpack.c.l.b16 %v1922
    %v1966 = vunpack.c.h.b16 %v1922
    %v1967 = vunpack.c.l.b16 %v1923
    %v1968 = vunpack.c.l.b16 %v1924
    %v1969 = vunpack.c.h.b16 %v1924
    %v1970 = vunpack.c.l.b16 %v1925
    %v1971 = vunpack.c.l.b16 %v1926
    %v1972 = vunpack.c.h.b16 %v1926
    %v1973 = vunpack.c.l.b16 %v1927
    %v1974 = vunpack.c.l.b16 %v1928
    %v1975 = vunpack.c.h.b16 %v1928
    %v1976 = vunpack.c.l.b16 %v1929
    %v1977 = vpack.c.b16 %v1956, %v1953
    %v1978 = vpack.c.b16 %v1957, %v1954
    %v1979 = vpack.c.b16 %v1958, %v1955
    %v1980 = vpack.c.b16 %v1962, %v1959
    %v1981 = vpack.c.b16 %v1963, %v1960
    %v1982 = vpack.c.b16 %v1964, %v1961
    %v1983 = vpack.c.b16 %v1968, %v1965
    %v1984 = vpack.c.b16 %v1969, %v1966
    %v1985 = vpack.c.b16 %v1970, %v1967
    %v1986 = vpack.c.b16 %v1974, %v1971
    %v1987 = vpack.c.b16 %v1975, %v1972
    %v1988 = vpack.c.b16 %v1976, %v1973
    %v2002 = vsel %vm67, %v1936, 0
    %v2005 = vsel %vm67, %v1935, 0
    %2007 = vmatprep.subr.bf16.mxu0 0
    %2008 = vmatpush1.bf16.msra.mxu0 0
    %2009 = vmatprep.subr.bf16.mxu0 0
    %2010 = vmatpush1.bf16.msra.mxu0 0
    %2011 = vmatprep.subr.bf16.mxu0 0
    %2012 = vmatpush1.bf16.msra.mxu0 0
    %2013 = vmatprep.subr.bf16.mxu0 0
    %2014 = vmatpush1.bf16.msra.mxu0 0
    %2015 = vmatprep.subr.bf16.mxu0 %v1987
    %2016 = vmatpush1.bf16.msra.mxu0 %v1986
    %2017 = vmatprep.subr.bf16.mxu0 %v1984
    %2018 = vmatpush1.bf16.msra.mxu0 %v1983
    %2019 = vmatprep.subr.bf16.mxu0 %v1981
    %2020 = vmatpush1.bf16.msra.mxu0 %v1980
    %2021 = vmatprep.subr.bf16.mxu0 %v1978
    %2022 = vmatpush1.bf16.msra.mxu0 %v1977
    %2023 = vmatprep.subr.bf16.mxu0 0
    %2024 = vmatpush2.bf16.msra.mxu0 0
    %2025 = vmatprep.subr.bf16.mxu0 0
    %2026 = vmatpush2.bf16.msra.mxu0 0
    %2027 = vmatprep.subr.bf16.mxu0 0
    %2028 = vmatpush2.bf16.msra.mxu0 0
    %2029 = vmatprep.subr.bf16.mxu0 0
    %2030 = vmatpush2.bf16.msra.mxu0 0
    %2031 = vmatprep.subr.bf16.mxu0 0
    %2032 = vmatpush2.bf16.msra.mxu0 0
    %2033 = vmatprep.subr.bf16.mxu0 0
    %2034 = vmatpush2.bf16.msra.mxu0 0
    %2035 = vmatprep.subr.bf16.mxu0 0
    %2036 = vmatpush2.bf16.msra.mxu0 0
    %2037 = vmatprep.subr.bf16.mxu0 0
    %2038 = vmatpush2.bf16.msra.mxu0 0
    %2039 = vmatprep.mubr.bf16.mxu0 0
    %2040 = vmatmul.mubr.bf16.gmra.mxu0 %v2002
    %v2041 = vpop.f32.mrf.mxu0
    %v2042 = vadd.f32 0.0, %v2041
    %v2043 = vpop.f32.mrf.mxu0
    %v2044 = vadd.f32 0.0, %v2043
    %v2045 = vpop.f32.mrf.mxu0
    %v2046 = vadd.f32 0.0, %v2045
    %v2047 = vpop.f32.mrf.mxu0
    %v2048 = vadd.f32 0.0, %v2047
    %2049 = vmatprep.mubr.bf16.mxu0 0
    %2050 = vmatmul.mubr.bf16.gmra.mxu0 %v2005
    %v2051 = vpop.f32.mrf.mxu0
    %v2052 = vadd.f32 0.0, %v2051
    %v2053 = vpop.f32.mrf.mxu0
    %v2054 = vadd.f32 0.0, %v2053
    %v2055 = vpop.f32.mrf.mxu0
    %v2056 = vpop.f32.mrf.mxu0
    %2057 = vdwg.mxu0
    %2058 = vmatprep.subr.bf16.mxu0 0
    %2059 = vmatpush1.bf16.msra.mxu0 0
    %2060 = vmatprep.subr.bf16.mxu0 0
    %2061 = vmatpush1.bf16.msra.mxu0 0
    %2062 = vmatprep.subr.bf16.mxu0 0
    %2063 = vmatpush1.bf16.msra.mxu0 0
    %2064 = vmatprep.subr.bf16.mxu0 0
    %2065 = vmatpush1.bf16.msra.mxu0 0
    %2066 = vmatprep.subr.bf16.mxu0 0
    %2067 = vmatpush1.bf16.msra.mxu0 %v1988
    %2068 = vmatprep.subr.bf16.mxu0 0
    %2069 = vmatpush1.bf16.msra.mxu0 %v1985
    %2070 = vmatprep.subr.bf16.mxu0 0
    %2071 = vmatpush1.bf16.msra.mxu0 %v1982
    %2072 = vmatprep.subr.bf16.mxu0 0
    %2073 = vmatpush1.bf16.msra.mxu0 %v1979
    %2074 = vmatprep.subr.bf16.mxu0 0
    %2075 = vmatpush2.bf16.msra.mxu0 0
    %2076 = vmatprep.subr.bf16.mxu0 0
    %2077 = vmatpush2.bf16.msra.mxu0 0
    %2078 = vmatprep.subr.bf16.mxu0 0
    %2079 = vmatpush2.bf16.msra.mxu0 0
    %2080 = vmatprep.subr.bf16.mxu0 0
    %2081 = vmatpush2.bf16.msra.mxu0 0
    %2082 = vmatprep.subr.bf16.mxu0 0
    %2083 = vmatpush2.bf16.msra.mxu0 0
    %2084 = vmatprep.subr.bf16.mxu0 0
    %2085 = vmatpush2.bf16.msra.mxu0 0
    %2086 = vmatprep.subr.bf16.mxu0 0
    %2087 = vmatpush2.bf16.msra.mxu0 0
    %2088 = vmatprep.subr.bf16.mxu0 0
    %2089 = vmatpush2.bf16.msra.mxu0 0
    %2090 = vmatprep.mubr.bf16.mxu0 0
    %2091 = vmatmul.mubr.bf16.gmra.mxu0 %v2002
    %v2092 = vpop.f32.mrf.mxu0
    %v2093 = vadd.f32 0.0, %v2092
    %v2094 = vpop.f32.mrf.mxu0
    %v2095 = vpop.f32.mrf.mxu0
    %v2096 = vadd.f32 0.0, %v2095
    %v2097 = vpop.f32.mrf.mxu0
    %2098 = vmatprep.mubr.bf16.mxu0 0
    %2099 = vmatmul.mubr.bf16.gmra.mxu0 %v2005
    %v2100 = vpop.f32.mrf.mxu0
    %v2101 = vadd.f32 0.0, %v2100
    %v2102 = vpop.f32.mrf.mxu0
    %v2103 = vpop.f32.mrf.mxu0
    %v2104 = vpop.f32.mrf.mxu0
    %2105 = vdwg.mxu0
    %v2106 = vadd.f32 %v1903, %v2042
    %v2107 = vadd.f32 %v1904, %v2044
    %v2108 = vadd.f32 %v1905, %v2093
    %v2109 = vadd.f32 %v1906, %v2046
    %v2110 = vadd.f32 %v1907, %v2048
    %v2111 = vadd.f32 %v1908, %v2096
    %v2112 = vadd.f32 %v1909, %v2052
    %v2113 = vadd.f32 %v1910, %v2054
    %v2114 = vadd.f32 %v1911, %v2101
    %v2115 = vld [vmem:[%s6] sm:$0x7]
    %v2117 = vlaneseq
    %v2118 = vshrl.u32 %v2117, 7
    %v2119 = vsub.s32 0, %v2118
    %v2120 = vrot.slane %v2115, %v2119
    %v2121 = vlaneseq
    %v2122 = vshrl.u32 %v2121, 7
    %v2123 = vsub.s32 1, %v2122
    %v2124 = vrot.slane %v2115, %v2123
    %v2125 = vlaneseq
    %v2126 = vshrl.u32 %v2125, 7
    %v2127 = vsub.s32 2, %v2126
    %v2128 = vrot.slane %v2115, %v2127
    %v2132 = vadd.f32 %v2106, %v2120
    %v2133 = vadd.f32 %v2107, %v2124
    %v2134 = vadd.f32 %v2108, %v2128
    %v2135 = vtanh.pop %v2132
    %v2136 = vtanh.pop %v2133
    %v2137 = vtanh.pop %v2134
    %v2138 = vpack.c.bf16 %v2135, %v2135
    %v2139 = vpack.c.bf16 %v2136, %v2136
    %v2140 = vpack.c.bf16 %v2137, %v2137
    %v2144 = vunpack.c.l.b16 %v2138
    %v2145 = vunpack.c.l.b16 %v2139
    %v2146 = vunpack.c.l.b16 %v2140
    %v2147 = vpack.c.b16 %v2145, %v2144
    %v2148 = vpack.c.b16 %v2146, %v2146
    %v2149 = vrot.slane %v2147, 7
    %v2150 = vrot.slane %v2148, 7
    %v2151 = vrot.slane %v2149, 4
    %v2152 = vrot.slane %v2150, 4
    %2157 = vst [vmem:[#allocation3] sm:$0xee] %v2149
    %2158 = vst [vmem:[#allocation3 + $0x8] sm:$0xe] %v2150
    %2159 = vst [vmem:[#allocation3 + $0xc] sm:$0x11] %v2151
    %2160 = vst [vmem:[#allocation3 + $0x14] sm:$0x1] %v2152
    %v2161 = vadd.f32 %v2109, %v2120
    %v2162 = vadd.f32 %v2110, %v2124
    %v2163 = vadd.f32 %v2111, %v2128
    %v2164 = vadd.f32 %v2112, %v2120
    %v2165 = vadd.f32 %v2113, %v2124
    %v2166 = vadd.f32 %v2114, %v2128
    %v2167 = vtanh.pop %v2161
    %v2168 = vtanh.pop %v2162
    %v2169 = vtanh.pop %v2163
    %v2170 = vtanh.pop %v2164
    %v2171 = vtanh.pop %v2165
    %v2172 = vtanh.pop %v2166
    %v2173 = vpack.c.bf16 %v2170, %v2167
    %v2174 = vpack.c.bf16 %v2171, %v2168
    %v2175 = vpack.c.bf16 %v2172, %v2169
    %v2179 = vunpack.c.l.b16 %v2173
    %v2180 = vunpack.c.l.b16 %v2174
    %v2181 = vunpack.c.l.b16 %v2175
    %v2182 = vunpack.c.h.b16 %v2173
    %v2183 = vunpack.c.h.b16 %v2174
    %v2184 = vunpack.c.h.b16 %v2175
    %v2185 = vpack.c.b16 %v2180, %v2179
    %v2186 = vpack.c.b16 %v2181, %v2181
    %v2187 = vpack.c.b16 %v2183, %v2182
    %v2188 = vpack.c.b16 %v2184, %v2184
    %vm2189 = vcmask 1040384
    %vm2190 = vcmask 1044484
    %vm2191 = vmor %vm2189, %vm2190
    %v2192 = vrot.slane %v2185, 7
    %v2193 = vrot.slane %v2186, 7
    %v2194 = vrot.slane %v2192, 4
    %v2195 = vrot.slane %v2187, 7
    %v2196 = vsel %vm2191, %v2194, %v2195
    %v2197 = vrot.slane %v2193, 4
    %v2198 = vrot.slane %v2188, 7
    %v2199 = vsel %vm2191, %v2197, %v2198
    %2204 = vst [vmem:[#allocation3 + $0xc] sm:$0x88] %v2192
    %2205 = vst [vmem:[#allocation3 + $0x14] sm:$0x8] %v2193
    %2206 = vst [vmem:[#allocation3 + $0x18] sm:$0x77] %v2196
    %2207 = vst [vmem:[#allocation3 + $0x20] sm:$0x7] %v2199
    %v2208 = vld [vmem:[#allocation3] sm:$0xff]
    %v2209 = vld [vmem:[#allocation3 + $0x8] sm:$0xf]
    %v2210 = vld [vmem:[#allocation3 + $0xc] sm:$0xff]
    %v2211 = vld [vmem:[#allocation3 + $0x14] sm:$0xf]
    %v2212 = vld [vmem:[#allocation3 + $0x18] sm:$0x33]
    %v2213 = vld [vmem:[#allocation3 + $0x20] sm:$0x3]
    %v2214 = vld [vmem:[%s7] sm:$0xff]
    %v2215 = vld [vmem:[%s7 + $0x8] sm:$0xff]
    %v2216 = vld [vmem:[%s7 + $0x10] sm:$0xff]
    %v2217 = vld [vmem:[%s7 + $0x18] sm:$0xff]
    %v2218 = vld [vmem:[%s7 + $0x20] sm:$0xff]
    %v2219 = vld [vmem:[%s7 + $0x28] sm:$0xff]
    %v2220 = vld [vmem:[%s7 + $0x30] sm:$0xff]
    %v2221 = vld [vmem:[%s7 + $0x38] sm:$0xff]
    %v2222 = vld [vmem:[%s7 + $0x40] sm:$0xff]
    %v2223 = vld [vmem:[%s7 + $0x48] sm:$0xff]
    %v2224 = vld [vmem:[%s7 + $0x50] sm:$0xff]
    %v2225 = vld [vmem:[%s7 + $0x58] sm:$0xff]
    %v2226 = vld [vmem:[%s7 + $0x60] sm:$0xff]
    %v2227 = vld [vmem:[%s7 + $0x68] sm:$0xff]
    %v2228 = vld [vmem:[%s7 + $0x70] sm:$0xff]
    %v2229 = vld [vmem:[%s7 + $0x78] sm:$0xff]
    %v2230 = vld [vmem:[%s7 + $0x80] sm:$0xff]
    %v2231 = vld [vmem:[%s7 + $0x88] sm:$0xff]
    %v2232 = vld [vmem:[%s7 + $0x90] sm:$0xff]
    %v2233 = vld [vmem:[%s7 + $0x98] sm:$0xff]
    %v2234 = vld [vmem:[%s7 + $0xa0] sm:$0xff]
    %v2235 = vld [vmem:[%s7 + $0xa8] sm:$0xff]
    %v2236 = vld [vmem:[%s7 + $0xb0] sm:$0xff]
    %v2237 = vld [vmem:[%s7 + $0xb8] sm:$0xff]
    %v2238 = vld [vmem:[%s7 + $0xc0] sm:$0xff]
    %v2239 = vld [vmem:[%s7 + $0xc8] sm:$0xff]
    %v2240 = vld [vmem:[%s7 + $0xd0] sm:$0xff]
    %v2241 = vld [vmem:[%s7 + $0xd8] sm:$0xff]
    %v2242 = vld [vmem:[%s7 + $0xe0] sm:$0xff]
    %v2243 = vld [vmem:[%s7 + $0xe8] sm:$0xff]
    %v2244 = vld [vmem:[%s7 + $0xf0] sm:$0xff]
    %v2245 = vld [vmem:[%s7 + $0xf8] sm:$0xff]
    %v2246 = vld [vmem:[%s7 + $0x100] sm:$0xff]
    %v2247 = vld [vmem:[%s7 + $0x108] sm:$0xff]
    %v2248 = vld [vmem:[%s7 + $0x110] sm:$0xff]
    %v2249 = vld [vmem:[%s7 + $0x118] sm:$0xff]
    %v2250 = vld [vmem:[%s7 + $0x120] sm:$0xff]
    %v2251 = vld [vmem:[%s7 + $0x128] sm:$0xff]
    %v2252 = vld [vmem:[%s7 + $0x130] sm:$0xff]
    %v2253 = vld [vmem:[%s7 + $0x138] sm:$0xff]
    %v2254 = vld [vmem:[%s7 + $0x140] sm:$0xff]
    %v2255 = vld [vmem:[%s7 + $0x148] sm:$0xff]
    %v2256 = vld [vmem:[%s7 + $0x150] sm:$0xff]
    %v2257 = vld [vmem:[%s7 + $0x158] sm:$0xff]
    %v2258 = vld [vmem:[%s7 + $0x160] sm:$0xff]
    %v2259 = vld [vmem:[%s7 + $0x168] sm:$0xff]
    %v2260 = vld [vmem:[%s7 + $0x170] sm:$0xff]
    %v2261 = vld [vmem:[%s7 + $0x178] sm:$0xff]
    %v2262 = vld [vmem:[#allocation3 + $0x18] sm:$0x77]
    %v2263 = vld [vmem:[#allocation3 + $0x20] sm:$0x7]
    %s2264 = scalar_lea.vmem %s7, 384
    %v2265 = vld [vmem:[%s2264] sm:$0xff]
    %v2266 = vld [vmem:[%s2264 + $0x8] sm:$0xff]
    %v2267 = vld [vmem:[%s2264 + $0x10] sm:$0xff]
    %v2268 = vld [vmem:[%s2264 + $0x18] sm:$0xff]
    %v2269 = vld [vmem:[%s2264 + $0x20] sm:$0xff]
    %v2270 = vld [vmem:[%s2264 + $0x28] sm:$0xff]
    %v2271 = vld [vmem:[%s2264 + $0x30] sm:$0xff]
    %v2272 = vld [vmem:[%s2264 + $0x38] sm:$0xff]
    %v2273 = vld [vmem:[%s2264 + $0x40] sm:$0xff]
    %v2274 = vld [vmem:[%s2264 + $0x48] sm:$0xff]
    %v2275 = vld [vmem:[%s2264 + $0x50] sm:$0xff]
    %v2276 = vld [vmem:[%s2264 + $0x58] sm:$0xff]
    %v2277 = vld [vmem:[%s2264 + $0x60] sm:$0xff]
    %v2278 = vld [vmem:[%s2264 + $0x68] sm:$0xff]
    %v2279 = vld [vmem:[%s2264 + $0x70] sm:$0xff]
    %v2280 = vld [vmem:[%s2264 + $0x78] sm:$0xff]
    %v2281 = vld [vmem:[%s2264 + $0x80] sm:$0xff]
    %v2282 = vld [vmem:[%s2264 + $0x88] sm:$0xff]
    %v2283 = vld [vmem:[%s2264 + $0x90] sm:$0xff]
    %v2284 = vld [vmem:[%s2264 + $0x98] sm:$0xff]
    %v2285 = vld [vmem:[%s2264 + $0xa0] sm:$0xff]
    %v2286 = vld [vmem:[%s2264 + $0xa8] sm:$0xff]
    %v2287 = vld [vmem:[%s2264 + $0xb0] sm:$0xff]
    %v2288 = vld [vmem:[%s2264 + $0xb8] sm:$0xff]
    %v2289 = vld [vmem:[%s2264 + $0xc0] sm:$0xff]
    %v2290 = vld [vmem:[%s2264 + $0xc8] sm:$0xff]
    %v2291 = vld [vmem:[%s2264 + $0xd0] sm:$0xff]
    %v2292 = vld [vmem:[%s2264 + $0xd8] sm:$0xff]
    %v2293 = vld [vmem:[%s2264 + $0xe0] sm:$0xff]
    %v2294 = vld [vmem:[%s2264 + $0xe8] sm:$0xff]
    %v2295 = vld [vmem:[%s2264 + $0xf0] sm:$0xff]
    %v2296 = vld [vmem:[%s2264 + $0xf8] sm:$0xff]
    %v2297 = vld [vmem:[%s2264 + $0x100] sm:$0xff]
    %v2298 = vld [vmem:[%s2264 + $0x108] sm:$0xff]
    %v2299 = vld [vmem:[%s2264 + $0x110] sm:$0xff]
    %v2300 = vld [vmem:[%s2264 + $0x118] sm:$0xff]
    %v2301 = vld [vmem:[%s2264 + $0x120] sm:$0xff]
    %v2302 = vld [vmem:[%s2264 + $0x128] sm:$0xff]
    %v2303 = vld [vmem:[%s2264 + $0x130] sm:$0xff]
    %v2304 = vld [vmem:[%s2264 + $0x138] sm:$0xff]
    %v2305 = vld [vmem:[%s2264 + $0x140] sm:$0xff]
    %v2306 = vld [vmem:[%s2264 + $0x148] sm:$0xff]
    %v2307 = vld [vmem:[%s2264 + $0x150] sm:$0xff]
    %v2308 = vld [vmem:[%s2264 + $0x158] sm:$0xff]
    %v2309 = vld [vmem:[%s2264 + $0x160] sm:$0xff]
    %v2310 = vld [vmem:[%s2264 + $0x168] sm:$0xff]
    %v2311 = vld [vmem:[%s2264 + $0x170] sm:$0xff]
    %v2312 = vld [vmem:[%s2264 + $0x178] sm:$0xff]
    %v2319 = vunpack.c.l.b16 %v2208
    %v2320 = vunpack.c.h.b16 %v2208
    %v2321 = vunpack.c.l.b16 %v2209
    %v2322 = vunpack.c.l.b16 %v2210
    %v2323 = vunpack.c.h.b16 %v2210
    %v2324 = vunpack.c.l.b16 %v2211
    %v2325 = vunpack.c.l.b16 %v2262
    %v2326 = vunpack.c.h.b16 %v2262
    %v2327 = vunpack.c.l.b16 %v2263
    %v2328 = vpack.c.b16 %v2322, %v2319
    %v2329 = vpack.c.b16 %v2323, %v2320
    %v2330 = vpack.c.b16 %v2324, %v2321
    %v2331 = vpack.c.b16 %v2325, %v2325
    %v2332 = vpack.c.b16 %v2326, %v2326
    %v2333 = vpack.c.b16 %v2327, %v2327
    %v2335 = vshrl.u32 %v2328, 16
    %v2337 = vshll.u32 %v2328, 16
    %v2339 = vrot.slane %v2337, 1
    %v2340 = vor.u32 %v2335, %v2339
    %v2342 = vshll.u32 %v2331, 16
    %v2344 = vrot.slane %v2342, 1
    %v2345 = vsel %vm1136, %v2340, %v2344
    %v2347 = vshrl.u32 %v2329, 16
    %v2349 = vshll.u32 %v2329, 16
    %v2351 = vrot.slane %v2349, 1
    %v2352 = vor.u32 %v2347, %v2351
    %v2354 = vshll.u32 %v2332, 16
    %v2356 = vrot.slane %v2354, 1
    %v2357 = vsel %vm1136, %v2352, %v2356
    %v2359 = vshrl.u32 %v2330, 16
    %v2361 = vshll.u32 %v2330, 16
    %v2363 = vrot.slane %v2361, 1
    %v2364 = vor.u32 %v2359, %v2363
    %v2366 = vshll.u32 %v2333, 16
    %v2368 = vrot.slane %v2366, 1
    %v2369 = vsel %vm1136, %v2364, %v2368
    %v2370 = vshrl.u32 %v2331, 16
    %v2372 = vor.u32 %v2370, %v2344
    %v2373 = vshrl.u32 %v2332, 16
    %v2375 = vor.u32 %v2373, %v2356
    %v2376 = vshrl.u32 %v2333, 16
    %v2378 = vor.u32 %v2376, %v2368
    %v2433 = vunpack.c.l.b16 %v2265
    %v2434 = vunpack.c.h.b16 %v2265
    %v2435 = vunpack.c.l.b16 %v2266
    %v2436 = vunpack.c.h.b16 %v2266
    %v2437 = vunpack.c.l.b16 %v2267
    %v2438 = vunpack.c.h.b16 %v2267
    %v2439 = vunpack.c.l.b16 %v2268
    %v2440 = vunpack.c.h.b16 %v2268
    %v2441 = vunpack.c.l.b16 %v2269
    %v2442 = vunpack.c.h.b16 %v2269
    %v2443 = vunpack.c.l.b16 %v2270
    %v2444 = vunpack.c.h.b16 %v2270
    %v2445 = vunpack.c.l.b16 %v2271
    %v2446 = vunpack.c.h.b16 %v2271
    %v2447 = vunpack.c.l.b16 %v2272
    %v2448 = vunpack.c.h.b16 %v2272
    %v2449 = vunpack.c.l.b16 %v2273
    %v2450 = vunpack.c.h.b16 %v2273
    %v2451 = vunpack.c.l.b16 %v2274
    %v2452 = vunpack.c.h.b16 %v2274
    %v2453 = vunpack.c.l.b16 %v2275
    %v2454 = vunpack.c.h.b16 %v2275
    %v2455 = vunpack.c.l.b16 %v2276
    %v2456 = vunpack.c.h.b16 %v2276
    %v2457 = vunpack.c.l.b16 %v2277
    %v2458 = vunpack.c.h.b16 %v2277
    %v2459 = vunpack.c.l.b16 %v2278
    %v2460 = vunpack.c.h.b16 %v2278
    %v2461 = vunpack.c.l.b16 %v2279
    %v2462 = vunpack.c.h.b16 %v2279
    %v2463 = vunpack.c.l.b16 %v2280
    %v2464 = vunpack.c.h.b16 %v2280
    %v2465 = vunpack.c.l.b16 %v2281
    %v2466 = vunpack.c.h.b16 %v2281
    %v2467 = vunpack.c.l.b16 %v2282
    %v2468 = vunpack.c.h.b16 %v2282
    %v2469 = vunpack.c.l.b16 %v2283
    %v2470 = vunpack.c.h.b16 %v2283
    %v2471 = vunpack.c.l.b16 %v2284
    %v2472 = vunpack.c.h.b16 %v2284
    %v2473 = vunpack.c.l.b16 %v2285
    %v2474 = vunpack.c.h.b16 %v2285
    %v2475 = vunpack.c.l.b16 %v2286
    %v2476 = vunpack.c.h.b16 %v2286
    %v2477 = vunpack.c.l.b16 %v2287
    %v2478 = vunpack.c.h.b16 %v2287
    %v2479 = vunpack.c.l.b16 %v2288
    %v2480 = vunpack.c.h.b16 %v2288
    %v2481 = vunpack.c.l.b16 %v2289
    %v2482 = vunpack.c.h.b16 %v2289
    %v2483 = vunpack.c.l.b16 %v2290
    %v2484 = vunpack.c.h.b16 %v2290
    %v2485 = vunpack.c.l.b16 %v2291
    %v2486 = vunpack.c.h.b16 %v2291
    %v2487 = vunpack.c.l.b16 %v2292
    %v2488 = vunpack.c.h.b16 %v2292
    %v2489 = vunpack.c.l.b16 %v2293
    %v2490 = vunpack.c.h.b16 %v2293
    %v2491 = vunpack.c.l.b16 %v2294
    %v2492 = vunpack.c.h.b16 %v2294
    %v2493 = vunpack.c.l.b16 %v2295
    %v2494 = vunpack.c.h.b16 %v2295
    %v2495 = vunpack.c.l.b16 %v2296
    %v2496 = vunpack.c.h.b16 %v2296
    %v2497 = vunpack.c.l.b16 %v2297
    %v2498 = vunpack.c.h.b16 %v2297
    %v2499 = vunpack.c.l.b16 %v2298
    %v2500 = vunpack.c.h.b16 %v2298
    %v2501 = vunpack.c.l.b16 %v2299
    %v2502 = vunpack.c.h.b16 %v2299
    %v2503 = vunpack.c.l.b16 %v2300
    %v2504 = vunpack.c.h.b16 %v2300
    %v2505 = vunpack.c.l.b16 %v2301
    %v2506 = vunpack.c.h.b16 %v2301
    %v2507 = vunpack.c.l.b16 %v2302
    %v2508 = vunpack.c.h.b16 %v2302
    %v2509 = vunpack.c.l.b16 %v2303
    %v2510 = vunpack.c.h.b16 %v2303
    %v2511 = vunpack.c.l.b16 %v2304
    %v2512 = vunpack.c.h.b16 %v2304
    %v2513 = vunpack.c.l.b16 %v2305
    %v2514 = vunpack.c.h.b16 %v2305
    %v2515 = vunpack.c.l.b16 %v2306
    %v2516 = vunpack.c.h.b16 %v2306
    %v2517 = vunpack.c.l.b16 %v2307
    %v2518 = vunpack.c.h.b16 %v2307
    %v2519 = vunpack.c.l.b16 %v2308
    %v2520 = vunpack.c.h.b16 %v2308
    %v2521 = vunpack.c.l.b16 %v2309
    %v2522 = vunpack.c.h.b16 %v2309
    %v2523 = vunpack.c.l.b16 %v2310
    %v2524 = vunpack.c.h.b16 %v2310
    %v2525 = vunpack.c.l.b16 %v2311
    %v2526 = vunpack.c.h.b16 %v2311
    %v2527 = vunpack.c.l.b16 %v2312
    %v2528 = vunpack.c.h.b16 %v2312
    %v2529 = vpack.c.b16 %v2435, %v2433
    %v2530 = vpack.c.b16 %v2436, %v2434
    %v2531 = vpack.c.b16 %v2439, %v2437
    %v2532 = vpack.c.b16 %v2440, %v2438
    %v2533 = vpack.c.b16 %v2443, %v2441
    %v2534 = vpack.c.b16 %v2444, %v2442
    %v2535 = vpack.c.b16 %v2447, %v2445
    %v2536 = vpack.c.b16 %v2448, %v2446
    %v2537 = vpack.c.b16 %v2451, %v2449
    %v2538 = vpack.c.b16 %v2452, %v2450
    %v2539 = vpack.c.b16 %v2455, %v2453
    %v2540 = vpack.c.b16 %v2456, %v2454
    %v2541 = vpack.c.b16 %v2459, %v2457
    %v2542 = vpack.c.b16 %v2460, %v2458
    %v2543 = vpack.c.b16 %v2463, %v2461
    %v2544 = vpack.c.b16 %v2464, %v2462
    %v2545 = vpack.c.b16 %v2467, %v2465
    %v2546 = vpack.c.b16 %v2468, %v2466
    %v2547 = vpack.c.b16 %v2471, %v2469
    %v2548 = vpack.c.b16 %v2472, %v2470
    %v2549 = vpack.c.b16 %v2475, %v2473
    %v2550 = vpack.c.b16 %v2476, %v2474
    %v2551 = vpack.c.b16 %v2479, %v2477
    %v2552 = vpack.c.b16 %v2480, %v2478
    %v2553 = vpack.c.b16 %v2483, %v2481
    %v2554 = vpack.c.b16 %v2484, %v2482
    %v2555 = vpack.c.b16 %v2487, %v2485
    %v2556 = vpack.c.b16 %v2488, %v2486
    %v2557 = vpack.c.b16 %v2491, %v2489
    %v2558 = vpack.c.b16 %v2492, %v2490
    %v2559 = vpack.c.b16 %v2495, %v2493
    %v2560 = vpack.c.b16 %v2496, %v2494
    %v2561 = vpack.c.b16 %v2499, %v2497
    %v2562 = vpack.c.b16 %v2500, %v2498
    %v2563 = vpack.c.b16 %v2503, %v2501
    %v2564 = vpack.c.b16 %v2504, %v2502
    %v2565 = vpack.c.b16 %v2507, %v2505
    %v2566 = vpack.c.b16 %v2508, %v2506
    %v2567 = vpack.c.b16 %v2511, %v2509
    %v2568 = vpack.c.b16 %v2512, %v2510
    %v2569 = vpack.c.b16 %v2515, %v2513
    %v2570 = vpack.c.b16 %v2516, %v2514
    %v2571 = vpack.c.b16 %v2519, %v2517
    %v2572 = vpack.c.b16 %v2520, %v2518
    %v2573 = vpack.c.b16 %v2523, %v2521
    %v2574 = vpack.c.b16 %v2524, %v2522
    %v2575 = vpack.c.b16 %v2527, %v2525
    %v2576 = vpack.c.b16 %v2528, %v2526
    %2625 = vmatprep.subr.bf16.mxu0 %v2544
    %2626 = vmatpush1.bf16.msra.mxu0 %v2543
    %2627 = vmatprep.subr.bf16.mxu0 %v2542
    %2628 = vmatpush1.bf16.msra.mxu0 %v2541
    %2629 = vmatprep.subr.bf16.mxu0 %v2540
    %2630 = vmatpush1.bf16.msra.mxu0 %v2539
    %2631 = vmatprep.subr.bf16.mxu0 %v2538
    %2632 = vmatpush1.bf16.msra.mxu0 %v2537
    %2633 = vmatprep.subr.bf16.mxu0 %v2536
    %2634 = vmatpush1.bf16.msra.mxu0 %v2535
    %2635 = vmatprep.subr.bf16.mxu0 %v2534
    %2636 = vmatpush1.bf16.msra.mxu0 %v2533
    %2637 = vmatprep.subr.bf16.mxu0 %v2532
    %2638 = vmatpush1.bf16.msra.mxu0 %v2531
    %2639 = vmatprep.subr.bf16.mxu0 %v2530
    %2640 = vmatpush1.bf16.msra.mxu0 %v2529
    %2641 = vmatprep.subr.bf16.mxu0 %v2560
    %2642 = vmatpush2.bf16.msra.mxu0 %v2559
    %2643 = vmatprep.subr.bf16.mxu0 %v2558
    %2644 = vmatpush2.bf16.msra.mxu0 %v2557
    %2645 = vmatprep.subr.bf16.mxu0 %v2556
    %2646 = vmatpush2.bf16.msra.mxu0 %v2555
    %2647 = vmatprep.subr.bf16.mxu0 %v2554
    %2648 = vmatpush2.bf16.msra.mxu0 %v2553
    %2649 = vmatprep.subr.bf16.mxu0 %v2552
    %2650 = vmatpush2.bf16.msra.mxu0 %v2551
    %2651 = vmatprep.subr.bf16.mxu0 %v2550
    %2652 = vmatpush2.bf16.msra.mxu0 %v2549
    %2653 = vmatprep.subr.bf16.mxu0 %v2548
    %2654 = vmatpush2.bf16.msra.mxu0 %v2547
    %2655 = vmatprep.subr.bf16.mxu0 %v2546
    %2656 = vmatpush2.bf16.msra.mxu0 %v2545
    %2657 = vmatprep.mubr.bf16.mxu0 %v2357
    %2658 = vmatmul.mubr.bf16.gmra.mxu0 %v2345
    %v2659 = vpop.f32.mrf.mxu0
    %v2660 = vadd.f32 0.0, %v2659
    %v2661 = vpop.f32.mrf.mxu0
    %v2662 = vadd.f32 0.0, %v2661
    %v2663 = vpop.f32.mrf.mxu0
    %v2664 = vadd.f32 0.0, %v2663
    %v2665 = vpop.f32.mrf.mxu0
    %v2666 = vadd.f32 0.0, %v2665
    %2667 = vmatprep.mubr.bf16.mxu0 %v2375
    %2668 = vmatmul.mubr.bf16.gmra.mxu0 %v2372
    %v2669 = vpop.f32.mrf.mxu0
    %v2670 = vadd.f32 0.0, %v2669
    %v2671 = vpop.f32.mrf.mxu0
    %v2672 = vadd.f32 0.0, %v2671
    %v2673 = vpop.f32.mrf.mxu0
    %v2674 = vpop.f32.mrf.mxu0
    %2675 = vdwg.mxu0
    %2676 = vmatprep.subr.bf16.mxu0 %v2576
    %2677 = vmatpush1.bf16.msra.mxu0 %v2575
    %2678 = vmatprep.subr.bf16.mxu0 %v2574
    %2679 = vmatpush1.bf16.msra.mxu0 %v2573
    %2680 = vmatprep.subr.bf16.mxu0 %v2572
    %2681 = vmatpush1.bf16.msra.mxu0 %v2571
    %2682 = vmatprep.subr.bf16.mxu0 %v2570
    %2683 = vmatpush1.bf16.msra.mxu0 %v2569
    %2684 = vmatprep.subr.bf16.mxu0 %v2568
    %2685 = vmatpush1.bf16.msra.mxu0 %v2567
    %2686 = vmatprep.subr.bf16.mxu0 %v2566
    %2687 = vmatpush1.bf16.msra.mxu0 %v2565
    %2688 = vmatprep.subr.bf16.mxu0 %v2564
    %2689 = vmatpush1.bf16.msra.mxu0 %v2563
    %2690 = vmatprep.subr.bf16.mxu0 %v2562
    %2691 = vmatpush1.bf16.msra.mxu0 %v2561
    %2692 = vmatprep.subr.bf16.mxu0 0
    %2693 = vmatpush2.bf16.msra.mxu0 0
    %2694 = vmatprep.subr.bf16.mxu0 0
    %2695 = vmatpush2.bf16.msra.mxu0 0
    %2696 = vmatprep.subr.bf16.mxu0 0
    %2697 = vmatpush2.bf16.msra.mxu0 0
    %2698 = vmatprep.subr.bf16.mxu0 0
    %2699 = vmatpush2.bf16.msra.mxu0 0
    %2700 = vmatprep.subr.bf16.mxu0 0
    %2701 = vmatpush2.bf16.msra.mxu0 0
    %2702 = vmatprep.subr.bf16.mxu0 0
    %2703 = vmatpush2.bf16.msra.mxu0 0
    %2704 = vmatprep.subr.bf16.mxu0 0
    %2705 = vmatpush2.bf16.msra.mxu0 0
    %2706 = vmatprep.subr.bf16.mxu0 0
    %2707 = vmatpush2.bf16.msra.mxu0 0
    %2708 = vmatprep.mubr.bf16.mxu0 0
    %2709 = vmatmul.mubr.bf16.gmra.mxu0 %v2369
    %v2710 = vpop.f32.mrf.mxu0
    %v2711 = vadd.f32 %v2660, %v2710
    %v2712 = vpop.f32.mrf.mxu0
    %v2713 = vadd.f32 %v2662, %v2712
    %v2714 = vpop.f32.mrf.mxu0
    %v2715 = vadd.f32 %v2664, %v2714
    %v2716 = vpop.f32.mrf.mxu0
    %v2717 = vadd.f32 %v2666, %v2716
    %2718 = vmatprep.mubr.bf16.mxu0 0
    %2719 = vmatmul.mubr.bf16.gmra.mxu0 %v2378
    %v2720 = vpop.f32.mrf.mxu0
    %v2721 = vadd.f32 %v2670, %v2720
    %v2722 = vpop.f32.mrf.mxu0
    %v2723 = vadd.f32 %v2672, %v2722
    %v2724 = vpop.f32.mrf.mxu0
    %v2725 = vpop.f32.mrf.mxu0
    %2726 = vdwg.mxu0
    %v2729 = vunpack.c.l.b16 %v2212
    %v2730 = vunpack.c.h.b16 %v2212
    %v2731 = vunpack.c.l.b16 %v2213
    %v2732 = vpack.c.b16 %v2729, %v2729
    %v2733 = vpack.c.b16 %v2730, %v2730
    %v2734 = vpack.c.b16 %v2731, %v2731
    %v2789 = vunpack.c.l.b16 %v2214
    %v2790 = vunpack.c.h.b16 %v2214
    %v2791 = vunpack.c.l.b16 %v2215
    %v2792 = vunpack.c.h.b16 %v2215
    %v2793 = vunpack.c.l.b16 %v2216
    %v2794 = vunpack.c.h.b16 %v2216
    %v2795 = vunpack.c.l.b16 %v2217
    %v2796 = vunpack.c.h.b16 %v2217
    %v2797 = vunpack.c.l.b16 %v2218
    %v2798 = vunpack.c.h.b16 %v2218
    %v2799 = vunpack.c.l.b16 %v2219
    %v2800 = vunpack.c.h.b16 %v2219
    %v2801 = vunpack.c.l.b16 %v2220
    %v2802 = vunpack.c.h.b16 %v2220
    %v2803 = vunpack.c.l.b16 %v2221
    %v2804 = vunpack.c.h.b16 %v2221
    %v2805 = vunpack.c.l.b16 %v2222
    %v2806 = vunpack.c.h.b16 %v2222
    %v2807 = vunpack.c.l.b16 %v2223
    %v2808 = vunpack.c.h.b16 %v2223
    %v2809 = vunpack.c.l.b16 %v2224
    %v2810 = vunpack.c.h.b16 %v2224
    %v2811 = vunpack.c.l.b16 %v2225
    %v2812 = vunpack.c.h.b16 %v2225
    %v2813 = vunpack.c.l.b16 %v2226
    %v2814 = vunpack.c.h.b16 %v2226
    %v2815 = vunpack.c.l.b16 %v2227
    %v2816 = vunpack.c.h.b16 %v2227
    %v2817 = vunpack.c.l.b16 %v2228
    %v2818 = vunpack.c.h.b16 %v2228
    %v2819 = vunpack.c.l.b16 %v2229
    %v2820 = vunpack.c.h.b16 %v2229
    %v2821 = vunpack.c.l.b16 %v2230
    %v2822 = vunpack.c.h.b16 %v2230
    %v2823 = vunpack.c.l.b16 %v2231
    %v2824 = vunpack.c.h.b16 %v2231
    %v2825 = vunpack.c.l.b16 %v2232
    %v2826 = vunpack.c.h.b16 %v2232
    %v2827 = vunpack.c.l.b16 %v2233
    %v2828 = vunpack.c.h.b16 %v2233
    %v2829 = vunpack.c.l.b16 %v2234
    %v2830 = vunpack.c.h.b16 %v2234
    %v2831 = vunpack.c.l.b16 %v2235
    %v2832 = vunpack.c.h.b16 %v2235
    %v2833 = vunpack.c.l.b16 %v2236
    %v2834 = vunpack.c.h.b16 %v2236
    %v2835 = vunpack.c.l.b16 %v2237
    %v2836 = vunpack.c.h.b16 %v2237
    %v2837 = vunpack.c.l.b16 %v2238
    %v2838 = vunpack.c.h.b16 %v2238
    %v2839 = vunpack.c.l.b16 %v2239
    %v2840 = vunpack.c.h.b16 %v2239
    %v2841 = vunpack.c.l.b16 %v2240
    %v2842 = vunpack.c.h.b16 %v2240
    %v2843 = vunpack.c.l.b16 %v2241
    %v2844 = vunpack.c.h.b16 %v2241
    %v2845 = vunpack.c.l.b16 %v2242
    %v2846 = vunpack.c.h.b16 %v2242
    %v2847 = vunpack.c.l.b16 %v2243
    %v2848 = vunpack.c.h.b16 %v2243
    %v2849 = vunpack.c.l.b16 %v2244
    %v2850 = vunpack.c.h.b16 %v2244
    %v2851 = vunpack.c.l.b16 %v2245
    %v2852 = vunpack.c.h.b16 %v2245
    %v2853 = vunpack.c.l.b16 %v2246
    %v2854 = vunpack.c.h.b16 %v2246
    %v2855 = vunpack.c.l.b16 %v2247
    %v2856 = vunpack.c.h.b16 %v2247
    %v2857 = vunpack.c.l.b16 %v2248
    %v2858 = vunpack.c.h.b16 %v2248
    %v2859 = vunpack.c.l.b16 %v2249
    %v2860 = vunpack.c.h.b16 %v2249
    %v2861 = vunpack.c.l.b16 %v2250
    %v2862 = vunpack.c.h.b16 %v2250
    %v2863 = vunpack.c.l.b16 %v2251
    %v2864 = vunpack.c.h.b16 %v2251
    %v2865 = vunpack.c.l.b16 %v2252
    %v2866 = vunpack.c.h.b16 %v2252
    %v2867 = vunpack.c.l.b16 %v2253
    %v2868 = vunpack.c.h.b16 %v2253
    %v2869 = vunpack.c.l.b16 %v2254
    %v2870 = vunpack.c.h.b16 %v2254
    %v2871 = vunpack.c.l.b16 %v2255
    %v2872 = vunpack.c.h.b16 %v2255
    %v2873 = vunpack.c.l.b16 %v2256
    %v2874 = vunpack.c.h.b16 %v2256
    %v2875 = vunpack.c.l.b16 %v2257
    %v2876 = vunpack.c.h.b16 %v2257
    %v2877 = vunpack.c.l.b16 %v2258
    %v2878 = vunpack.c.h.b16 %v2258
    %v2879 = vunpack.c.l.b16 %v2259
    %v2880 = vunpack.c.h.b16 %v2259
    %v2881 = vunpack.c.l.b16 %v2260
    %v2882 = vunpack.c.h.b16 %v2260
    %v2883 = vunpack.c.l.b16 %v2261
    %v2884 = vunpack.c.h.b16 %v2261
    %v2885 = vpack.c.b16 %v2791, %v2789
    %v2886 = vpack.c.b16 %v2792, %v2790
    %v2887 = vpack.c.b16 %v2795, %v2793
    %v2888 = vpack.c.b16 %v2796, %v2794
    %v2889 = vpack.c.b16 %v2799, %v2797
    %v2890 = vpack.c.b16 %v2800, %v2798
    %v2891 = vpack.c.b16 %v2803, %v2801
    %v2892 = vpack.c.b16 %v2804, %v2802
    %v2893 = vpack.c.b16 %v2807, %v2805
    %v2894 = vpack.c.b16 %v2808, %v2806
    %v2895 = vpack.c.b16 %v2811, %v2809
    %v2896 = vpack.c.b16 %v2812, %v2810
    %v2897 = vpack.c.b16 %v2815, %v2813
    %v2898 = vpack.c.b16 %v2816, %v2814
    %v2899 = vpack.c.b16 %v2819, %v2817
    %v2900 = vpack.c.b16 %v2820, %v2818
    %v2901 = vpack.c.b16 %v2823, %v2821
    %v2902 = vpack.c.b16 %v2824, %v2822
    %v2903 = vpack.c.b16 %v2827, %v2825
    %v2904 = vpack.c.b16 %v2828, %v2826
    %v2905 = vpack.c.b16 %v2831, %v2829
    %v2906 = vpack.c.b16 %v2832, %v2830
    %v2907 = vpack.c.b16 %v2835, %v2833
    %v2908 = vpack.c.b16 %v2836, %v2834
    %v2909 = vpack.c.b16 %v2839, %v2837
    %v2910 = vpack.c.b16 %v2840, %v2838
    %v2911 = vpack.c.b16 %v2843, %v2841
    %v2912 = vpack.c.b16 %v2844, %v2842
    %v2913 = vpack.c.b16 %v2847, %v2845
    %v2914 = vpack.c.b16 %v2848, %v2846
    %v2915 = vpack.c.b16 %v2851, %v2849
    %v2916 = vpack.c.b16 %v2852, %v2850
    %v2917 = vpack.c.b16 %v2855, %v2853
    %v2918 = vpack.c.b16 %v2856, %v2854
    %v2919 = vpack.c.b16 %v2859, %v2857
    %v2920 = vpack.c.b16 %v2860, %v2858
    %v2921 = vpack.c.b16 %v2863, %v2861
    %v2922 = vpack.c.b16 %v2864, %v2862
    %v2923 = vpack.c.b16 %v2867, %v2865
    %v2924 = vpack.c.b16 %v2868, %v2866
    %v2925 = vpack.c.b16 %v2871, %v2869
    %v2926 = vpack.c.b16 %v2872, %v2870
    %v2927 = vpack.c.b16 %v2875, %v2873
    %v2928 = vpack.c.b16 %v2876, %v2874
    %v2929 = vpack.c.b16 %v2879, %v2877
    %v2930 = vpack.c.b16 %v2880, %v2878
    %v2931 = vpack.c.b16 %v2883, %v2881
    %v2932 = vpack.c.b16 %v2884, %v2882
    %2981 = vmatprep.subr.bf16.mxu0 %v2900
    %2982 = vmatpush1.bf16.msra.mxu0 %v2899
    %2983 = vmatprep.subr.bf16.mxu0 %v2898
    %2984 = vmatpush1.bf16.msra.mxu0 %v2897
    %2985 = vmatprep.subr.bf16.mxu0 %v2896
    %2986 = vmatpush1.bf16.msra.mxu0 %v2895
    %2987 = vmatprep.subr.bf16.mxu0 %v2894
    %2988 = vmatpush1.bf16.msra.mxu0 %v2893
    %2989 = vmatprep.subr.bf16.mxu0 %v2892
    %2990 = vmatpush1.bf16.msra.mxu0 %v2891
    %2991 = vmatprep.subr.bf16.mxu0 %v2890
    %2992 = vmatpush1.bf16.msra.mxu0 %v2889
    %2993 = vmatprep.subr.bf16.mxu0 %v2888
    %2994 = vmatpush1.bf16.msra.mxu0 %v2887
    %2995 = vmatprep.subr.bf16.mxu0 %v2886
    %2996 = vmatpush1.bf16.msra.mxu0 %v2885
    %2997 = vmatprep.subr.bf16.mxu0 %v2916
    %2998 = vmatpush2.bf16.msra.mxu0 %v2915
    %2999 = vmatprep.subr.bf16.mxu0 %v2914
    %3000 = vmatpush2.bf16.msra.mxu0 %v2913
    %3001 = vmatprep.subr.bf16.mxu0 %v2912
    %3002 = vmatpush2.bf16.msra.mxu0 %v2911
    %3003 = vmatprep.subr.bf16.mxu0 %v2910
    %3004 = vmatpush2.bf16.msra.mxu0 %v2909
    %3005 = vmatprep.subr.bf16.mxu0 %v2908
    %3006 = vmatpush2.bf16.msra.mxu0 %v2907
    %3007 = vmatprep.subr.bf16.mxu0 %v2906
    %3008 = vmatpush2.bf16.msra.mxu0 %v2905
    %3009 = vmatprep.subr.bf16.mxu0 %v2904
    %3010 = vmatpush2.bf16.msra.mxu0 %v2903
    %3011 = vmatprep.subr.bf16.mxu0 %v2902
    %3012 = vmatpush2.bf16.msra.mxu0 %v2901
    %3013 = vmatprep.mubr.bf16.mxu0 %v2329
    %3014 = vmatmul.mubr.bf16.gmra.mxu0 %v2328
    %v3015 = vpop.f32.mrf.mxu0
    %v3016 = vadd.f32 %v2711, %v3015
    %v3017 = vpop.f32.mrf.mxu0
    %v3018 = vadd.f32 %v2713, %v3017
    %v3019 = vpop.f32.mrf.mxu0
    %v3020 = vadd.f32 %v2715, %v3019
    %v3021 = vpop.f32.mrf.mxu0
    %v3022 = vadd.f32 %v2717, %v3021
    %3023 = vmatprep.mubr.bf16.mxu0 %v2733
    %3024 = vmatmul.mubr.bf16.gmra.mxu0 %v2732
    %v3025 = vpop.f32.mrf.mxu0
    %v3026 = vadd.f32 %v2721, %v3025
    %v3027 = vpop.f32.mrf.mxu0
    %v3028 = vadd.f32 %v2723, %v3027
    %v3029 = vpop.f32.mrf.mxu0
    %v3030 = vpop.f32.mrf.mxu0
    %3031 = vdwg.mxu0
    %3032 = vmatprep.subr.bf16.mxu0 %v2932
    %3033 = vmatpush1.bf16.msra.mxu0 %v2931
    %3034 = vmatprep.subr.bf16.mxu0 %v2930
    %3035 = vmatpush1.bf16.msra.mxu0 %v2929
    %3036 = vmatprep.subr.bf16.mxu0 %v2928
    %3037 = vmatpush1.bf16.msra.mxu0 %v2927
    %3038 = vmatprep.subr.bf16.mxu0 %v2926
    %3039 = vmatpush1.bf16.msra.mxu0 %v2925
    %3040 = vmatprep.subr.bf16.mxu0 %v2924
    %3041 = vmatpush1.bf16.msra.mxu0 %v2923
    %3042 = vmatprep.subr.bf16.mxu0 %v2922
    %3043 = vmatpush1.bf16.msra.mxu0 %v2921
    %3044 = vmatprep.subr.bf16.mxu0 %v2920
    %3045 = vmatpush1.bf16.msra.mxu0 %v2919
    %3046 = vmatprep.subr.bf16.mxu0 %v2918
    %3047 = vmatpush1.bf16.msra.mxu0 %v2917
    %3048 = vmatprep.subr.bf16.mxu0 0
    %3049 = vmatpush2.bf16.msra.mxu0 0
    %3050 = vmatprep.subr.bf16.mxu0 0
    %3051 = vmatpush2.bf16.msra.mxu0 0
    %3052 = vmatprep.subr.bf16.mxu0 0
    %3053 = vmatpush2.bf16.msra.mxu0 0
    %3054 = vmatprep.subr.bf16.mxu0 0
    %3055 = vmatpush2.bf16.msra.mxu0 0
    %3056 = vmatprep.subr.bf16.mxu0 0
    %3057 = vmatpush2.bf16.msra.mxu0 0
    %3058 = vmatprep.subr.bf16.mxu0 0
    %3059 = vmatpush2.bf16.msra.mxu0 0
    %3060 = vmatprep.subr.bf16.mxu0 0
    %3061 = vmatpush2.bf16.msra.mxu0 0
    %3062 = vmatprep.subr.bf16.mxu0 0
    %3063 = vmatpush2.bf16.msra.mxu0 0
    %3064 = vmatprep.mubr.bf16.mxu0 0
    %3065 = vmatmul.mubr.bf16.gmra.mxu0 %v2330
    %v3066 = vpop.f32.mrf.mxu0
    %v3067 = vadd.f32 %v3016, %v3066
    %v3068 = vpop.f32.mrf.mxu0
    %v3069 = vadd.f32 %v3018, %v3068
    %v3070 = vpop.f32.mrf.mxu0
    %v3071 = vadd.f32 %v3020, %v3070
    %v3072 = vpop.f32.mrf.mxu0
    %v3073 = vadd.f32 %v3022, %v3072
    %3074 = vmatprep.mubr.bf16.mxu0 0
    %3075 = vmatmul.mubr.bf16.gmra.mxu0 %v2734
    %v3076 = vpop.f32.mrf.mxu0
    %v3077 = vadd.f32 %v3026, %v3076
    %v3078 = vpop.f32.mrf.mxu0
    %v3079 = vadd.f32 %v3028, %v3078
    %v3080 = vpop.f32.mrf.mxu0
    %v3081 = vpop.f32.mrf.mxu0
    %3082 = vdwg.mxu0
    %v3083 = vld [vmem:[#allocation3] sm:$0xee]
    %v3084 = vld [vmem:[#allocation3 + $0x8] sm:$0xe]
    %s3085 = scalar_lea.vmem %s7, 768
    %v3086 = vld [vmem:[%s3085] sm:$0xff]
    %v3087 = vld [vmem:[%s3085 + $0x8] sm:$0xff]
    %v3088 = vld [vmem:[%s3085 + $0x10] sm:$0xff]
    %v3089 = vld [vmem:[%s3085 + $0x18] sm:$0xff]
    %v3090 = vld [vmem:[%s3085 + $0x20] sm:$0xff]
    %v3091 = vld [vmem:[%s3085 + $0x28] sm:$0xff]
    %v3092 = vld [vmem:[%s3085 + $0x30] sm:$0xff]
    %v3093 = vld [vmem:[%s3085 + $0x38] sm:$0xff]
    %v3094 = vld [vmem:[%s3085 + $0x40] sm:$0xff]
    %v3095 = vld [vmem:[%s3085 + $0x48] sm:$0xff]
    %v3096 = vld [vmem:[%s3085 + $0x50] sm:$0xff]
    %v3097 = vld [vmem:[%s3085 + $0x58] sm:$0xff]
    %v3098 = vld [vmem:[%s3085 + $0x60] sm:$0xff]
    %v3099 = vld [vmem:[%s3085 + $0x68] sm:$0xff]
    %v3100 = vld [vmem:[%s3085 + $0x70] sm:$0xff]
    %v3101 = vld [vmem:[%s3085 + $0x78] sm:$0xff]
    %v3102 = vld [vmem:[%s3085 + $0x80] sm:$0xff]
    %v3103 = vld [vmem:[%s3085 + $0x88] sm:$0xff]
    %v3104 = vld [vmem:[%s3085 + $0x90] sm:$0xff]
    %v3105 = vld [vmem:[%s3085 + $0x98] sm:$0xff]
    %v3106 = vld [vmem:[%s3085 + $0xa0] sm:$0xff]
    %v3107 = vld [vmem:[%s3085 + $0xa8] sm:$0xff]
    %v3108 = vld [vmem:[%s3085 + $0xb0] sm:$0xff]
    %v3109 = vld [vmem:[%s3085 + $0xb8] sm:$0xff]
    %v3110 = vld [vmem:[%s3085 + $0xc0] sm:$0xff]
    %v3111 = vld [vmem:[%s3085 + $0xc8] sm:$0xff]
    %v3112 = vld [vmem:[%s3085 + $0xd0] sm:$0xff]
    %v3113 = vld [vmem:[%s3085 + $0xd8] sm:$0xff]
    %v3114 = vld [vmem:[%s3085 + $0xe0] sm:$0xff]
    %v3115 = vld [vmem:[%s3085 + $0xe8] sm:$0xff]
    %v3116 = vld [vmem:[%s3085 + $0xf0] sm:$0xff]
    %v3117 = vld [vmem:[%s3085 + $0xf8] sm:$0xff]
    %v3118 = vld [vmem:[%s3085 + $0x100] sm:$0xff]
    %v3119 = vld [vmem:[%s3085 + $0x108] sm:$0xff]
    %v3120 = vld [vmem:[%s3085 + $0x110] sm:$0xff]
    %v3121 = vld [vmem:[%s3085 + $0x118] sm:$0xff]
    %v3122 = vld [vmem:[%s3085 + $0x120] sm:$0xff]
    %v3123 = vld [vmem:[%s3085 + $0x128] sm:$0xff]
    %v3124 = vld [vmem:[%s3085 + $0x130] sm:$0xff]
    %v3125 = vld [vmem:[%s3085 + $0x138] sm:$0xff]
    %v3126 = vld [vmem:[%s3085 + $0x140] sm:$0xff]
    %v3127 = vld [vmem:[%s3085 + $0x148] sm:$0xff]
    %v3128 = vld [vmem:[%s3085 + $0x150] sm:$0xff]
    %v3129 = vld [vmem:[%s3085 + $0x158] sm:$0xff]
    %v3130 = vld [vmem:[%s3085 + $0x160] sm:$0xff]
    %v3131 = vld [vmem:[%s3085 + $0x168] sm:$0xff]
    %v3132 = vld [vmem:[%s3085 + $0x170] sm:$0xff]
    %v3133 = vld [vmem:[%s3085 + $0x178] sm:$0xff]
    %v3136 = vunpack.c.l.b16 %v3083
    %v3137 = vunpack.c.h.b16 %v3083
    %v3138 = vunpack.c.l.b16 %v3084
    %v3139 = vpack.c.b16 %v2322, %v3136
    %v3140 = vpack.c.b16 %v2323, %v3137
    %v3141 = vpack.c.b16 %v2324, %v3138
    %v3142 = vrot.slane %v3139, 1
    %v3143 = vrot.slane %v2331, 1
    %v3144 = vsel %vm1513, %v3142, %v3143
    %v3145 = vrot.slane %v3140, 1
    %v3146 = vrot.slane %v2332, 1
    %v3147 = vsel %vm1513, %v3145, %v3146
    %v3148 = vrot.slane %v3141, 1
    %v3149 = vrot.slane %v2333, 1
    %v3150 = vsel %vm1513, %v3148, %v3149
    %v3205 = vunpack.c.l.b16 %v3086
    %v3206 = vunpack.c.h.b16 %v3086
    %v3207 = vunpack.c.l.b16 %v3087
    %v3208 = vunpack.c.h.b16 %v3087
    %v3209 = vunpack.c.l.b16 %v3088
    %v3210 = vunpack.c.h.b16 %v3088
    %v3211 = vunpack.c.l.b16 %v3089
    %v3212 = vunpack.c.h.b16 %v3089
    %v3213 = vunpack.c.l.b16 %v3090
    %v3214 = vunpack.c.h.b16 %v3090
    %v3215 = vunpack.c.l.b16 %v3091
    %v3216 = vunpack.c.h.b16 %v3091
    %v3217 = vunpack.c.l.b16 %v3092
    %v3218 = vunpack.c.h.b16 %v3092
    %v3219 = vunpack.c.l.b16 %v3093
    %v3220 = vunpack.c.h.b16 %v3093
    %v3221 = vunpack.c.l.b16 %v3094
    %v3222 = vunpack.c.h.b16 %v3094
    %v3223 = vunpack.c.l.b16 %v3095
    %v3224 = vunpack.c.h.b16 %v3095
    %v3225 = vunpack.c.l.b16 %v3096
    %v3226 = vunpack.c.h.b16 %v3096
    %v3227 = vunpack.c.l.b16 %v3097
    %v3228 = vunpack.c.h.b16 %v3097
    %v3229 = vunpack.c.l.b16 %v3098
    %v3230 = vunpack.c.h.b16 %v3098
    %v3231 = vunpack.c.l.b16 %v3099
    %v3232 = vunpack.c.h.b16 %v3099
    %v3233 = vunpack.c.l.b16 %v3100
    %v3234 = vunpack.c.h.b16 %v3100
    %v3235 = vunpack.c.l.b16 %v3101
    %v3236 = vunpack.c.h.b16 %v3101
    %v3237 = vunpack.c.l.b16 %v3102
    %v3238 = vunpack.c.h.b16 %v3102
    %v3239 = vunpack.c.l.b16 %v3103
    %v3240 = vunpack.c.h.b16 %v3103
    %v3241 = vunpack.c.l.b16 %v3104
    %v3242 = vunpack.c.h.b16 %v3104
    %v3243 = vunpack.c.l.b16 %v3105
    %v3244 = vunpack.c.h.b16 %v3105
    %v3245 = vunpack.c.l.b16 %v3106
    %v3246 = vunpack.c.h.b16 %v3106
    %v3247 = vunpack.c.l.b16 %v3107
    %v3248 = vunpack.c.h.b16 %v3107
    %v3249 = vunpack.c.l.b16 %v3108
    %v3250 = vunpack.c.h.b16 %v3108
    %v3251 = vunpack.c.l.b16 %v3109
    %v3252 = vunpack.c.h.b16 %v3109
    %v3253 = vunpack.c.l.b16 %v3110
    %v3254 = vunpack.c.h.b16 %v3110
    %v3255 = vunpack.c.l.b16 %v3111
    %v3256 = vunpack.c.h.b16 %v3111
    %v3257 = vunpack.c.l.b16 %v3112
    %v3258 = vunpack.c.h.b16 %v3112
    %v3259 = vunpack.c.l.b16 %v3113
    %v3260 = vunpack.c.h.b16 %v3113
    %v3261 = vunpack.c.l.b16 %v3114
    %v3262 = vunpack.c.h.b16 %v3114
    %v3263 = vunpack.c.l.b16 %v3115
    %v3264 = vunpack.c.h.b16 %v3115
    %v3265 = vunpack.c.l.b16 %v3116
    %v3266 = vunpack.c.h.b16 %v3116
    %v3267 = vunpack.c.l.b16 %v3117
    %v3268 = vunpack.c.h.b16 %v3117
    %v3269 = vunpack.c.l.b16 %v3118
    %v3270 = vunpack.c.h.b16 %v3118
    %v3271 = vunpack.c.l.b16 %v3119
    %v3272 = vunpack.c.h.b16 %v3119
    %v3273 = vunpack.c.l.b16 %v3120
    %v3274 = vunpack.c.h.b16 %v3120
    %v3275 = vunpack.c.l.b16 %v3121
    %v3276 = vunpack.c.h.b16 %v3121
    %v3277 = vunpack.c.l.b16 %v3122
    %v3278 = vunpack.c.h.b16 %v3122
    %v3279 = vunpack.c.l.b16 %v3123
    %v3280 = vunpack.c.h.b16 %v3123
    %v3281 = vunpack.c.l.b16 %v3124
    %v3282 = vunpack.c.h.b16 %v3124
    %v3283 = vunpack.c.l.b16 %v3125
    %v3284 = vunpack.c.h.b16 %v3125
    %v3285 = vunpack.c.l.b16 %v3126
    %v3286 = vunpack.c.h.b16 %v3126
    %v3287 = vunpack.c.l.b16 %v3127
    %v3288 = vunpack.c.h.b16 %v3127
    %v3289 = vunpack.c.l.b16 %v3128
    %v3290 = vunpack.c.h.b16 %v3128
    %v3291 = vunpack.c.l.b16 %v3129
    %v3292 = vunpack.c.h.b16 %v3129
    %v3293 = vunpack.c.l.b16 %v3130
    %v3294 = vunpack.c.h.b16 %v3130
    %v3295 = vunpack.c.l.b16 %v3131
    %v3296 = vunpack.c.h.b16 %v3131
    %v3297 = vunpack.c.l.b16 %v3132
    %v3298 = vunpack.c.h.b16 %v3132
    %v3299 = vunpack.c.l.b16 %v3133
    %v3300 = vunpack.c.h.b16 %v3133
    %v3301 = vpack.c.b16 %v3207, %v3205
    %v3302 = vpack.c.b16 %v3208, %v3206
    %v3303 = vpack.c.b16 %v3211, %v3209
    %v3304 = vpack.c.b16 %v3212, %v3210
    %v3305 = vpack.c.b16 %v3215, %v3213
    %v3306 = vpack.c.b16 %v3216, %v3214
    %v3307 = vpack.c.b16 %v3219, %v3217
    %v3308 = vpack.c.b16 %v3220, %v3218
    %v3309 = vpack.c.b16 %v3223, %v3221
    %v3310 = vpack.c.b16 %v3224, %v3222
    %v3311 = vpack.c.b16 %v3227, %v3225
    %v3312 = vpack.c.b16 %v3228, %v3226
    %v3313 = vpack.c.b16 %v3231, %v3229
    %v3314 = vpack.c.b16 %v3232, %v3230
    %v3315 = vpack.c.b16 %v3235, %v3233
    %v3316 = vpack.c.b16 %v3236, %v3234
    %v3317 = vpack.c.b16 %v3239, %v3237
    %v3318 = vpack.c.b16 %v3240, %v3238
    %v3319 = vpack.c.b16 %v3243, %v3241
    %v3320 = vpack.c.b16 %v3244, %v3242
    %v3321 = vpack.c.b16 %v3247, %v3245
    %v3322 = vpack.c.b16 %v3248, %v3246
    %v3323 = vpack.c.b16 %v3251, %v3249
    %v3324 = vpack.c.b16 %v3252, %v3250
    %v3325 = vpack.c.b16 %v3255, %v3253
    %v3326 = vpack.c.b16 %v3256, %v3254
    %v3327 = vpack.c.b16 %v3259, %v3257
    %v3328 = vpack.c.b16 %v3260, %v3258
    %v3329 = vpack.c.b16 %v3263, %v3261
    %v3330 = vpack.c.b16 %v3264, %v3262
    %v3331 = vpack.c.b16 %v3267, %v3265
    %v3332 = vpack.c.b16 %v3268, %v3266
    %v3333 = vpack.c.b16 %v3271, %v3269
    %v3334 = vpack.c.b16 %v3272, %v3270
    %v3335 = vpack.c.b16 %v3275, %v3273
    %v3336 = vpack.c.b16 %v3276, %v3274
    %v3337 = vpack.c.b16 %v3279, %v3277
    %v3338 = vpack.c.b16 %v3280, %v3278
    %v3339 = vpack.c.b16 %v3283, %v3281
    %v3340 = vpack.c.b16 %v3284, %v3282
    %v3341 = vpack.c.b16 %v3287, %v3285
    %v3342 = vpack.c.b16 %v3288, %v3286
    %v3343 = vpack.c.b16 %v3291, %v3289
    %v3344 = vpack.c.b16 %v3292, %v3290
    %v3345 = vpack.c.b16 %v3295, %v3293
    %v3346 = vpack.c.b16 %v3296, %v3294
    %v3347 = vpack.c.b16 %v3299, %v3297
    %v3348 = vpack.c.b16 %v3300, %v3298
    %3397 = vmatprep.subr.bf16.mxu0 %v3316
    %3398 = vmatpush1.bf16.msra.mxu0 %v3315
    %3399 = vmatprep.subr.bf16.mxu0 %v3314
    %3400 = vmatpush1.bf16.msra.mxu0 %v3313
    %3401 = vmatprep.subr.bf16.mxu0 %v3312
    %3402 = vmatpush1.bf16.msra.mxu0 %v3311
    %3403 = vmatprep.subr.bf16.mxu0 %v3310
    %3404 = vmatpush1.bf16.msra.mxu0 %v3309
    %3405 = vmatprep.subr.bf16.mxu0 %v3308
    %3406 = vmatpush1.bf16.msra.mxu0 %v3307
    %3407 = vmatprep.subr.bf16.mxu0 %v3306
    %3408 = vmatpush1.bf16.msra.mxu0 %v3305
    %3409 = vmatprep.subr.bf16.mxu0 %v3304
    %3410 = vmatpush1.bf16.msra.mxu0 %v3303
    %3411 = vmatprep.subr.bf16.mxu0 %v3302
    %3412 = vmatpush1.bf16.msra.mxu0 %v3301
    %3413 = vmatprep.subr.bf16.mxu0 %v3332
    %3414 = vmatpush2.bf16.msra.mxu0 %v3331
    %3415 = vmatprep.subr.bf16.mxu0 %v3330
    %3416 = vmatpush2.bf16.msra.mxu0 %v3329
    %3417 = vmatprep.subr.bf16.mxu0 %v3328
    %3418 = vmatpush2.bf16.msra.mxu0 %v3327
    %3419 = vmatprep.subr.bf16.mxu0 %v3326
    %3420 = vmatpush2.bf16.msra.mxu0 %v3325
    %3421 = vmatprep.subr.bf16.mxu0 %v3324
    %3422 = vmatpush2.bf16.msra.mxu0 %v3323
    %3423 = vmatprep.subr.bf16.mxu0 %v3322
    %3424 = vmatpush2.bf16.msra.mxu0 %v3321
    %3425 = vmatprep.subr.bf16.mxu0 %v3320
    %3426 = vmatpush2.bf16.msra.mxu0 %v3319
    %3427 = vmatprep.subr.bf16.mxu0 %v3318
    %3428 = vmatpush2.bf16.msra.mxu0 %v3317
    %3429 = vmatprep.mubr.bf16.mxu0 %v3147
    %3430 = vmatmul.mubr.bf16.gmra.mxu0 %v3144
    %v3431 = vpop.f32.mrf.mxu0
    %v3432 = vadd.f32 0.0, %v3431
    %v3433 = vpop.f32.mrf.mxu0
    %v3434 = vadd.f32 0.0, %v3433
    %v3435 = vpop.f32.mrf.mxu0
    %v3436 = vadd.f32 0.0, %v3435
    %v3437 = vpop.f32.mrf.mxu0
    %v3438 = vadd.f32 0.0, %v3437
    %3439 = vmatprep.mubr.bf16.mxu0 %v3146
    %3440 = vmatmul.mubr.bf16.gmra.mxu0 %v3143
    %v3441 = vpop.f32.mrf.mxu0
    %v3442 = vadd.f32 0.0, %v3441
    %v3443 = vpop.f32.mrf.mxu0
    %v3444 = vadd.f32 0.0, %v3443
    %v3445 = vpop.f32.mrf.mxu0
    %v3446 = vpop.f32.mrf.mxu0
    %3447 = vdwg.mxu0
    %3448 = vmatprep.subr.bf16.mxu0 %v3348
    %3449 = vmatpush1.bf16.msra.mxu0 %v3347
    %3450 = vmatprep.subr.bf16.mxu0 %v3346
    %3451 = vmatpush1.bf16.msra.mxu0 %v3345
    %3452 = vmatprep.subr.bf16.mxu0 %v3344
    %3453 = vmatpush1.bf16.msra.mxu0 %v3343
    %3454 = vmatprep.subr.bf16.mxu0 %v3342
    %3455 = vmatpush1.bf16.msra.mxu0 %v3341
    %3456 = vmatprep.subr.bf16.mxu0 %v3340
    %3457 = vmatpush1.bf16.msra.mxu0 %v3339
    %3458 = vmatprep.subr.bf16.mxu0 %v3338
    %3459 = vmatpush1.bf16.msra.mxu0 %v3337
    %3460 = vmatprep.subr.bf16.mxu0 %v3336
    %3461 = vmatpush1.bf16.msra.mxu0 %v3335
    %3462 = vmatprep.subr.bf16.mxu0 %v3334
    %3463 = vmatpush1.bf16.msra.mxu0 %v3333
    %3464 = vmatprep.subr.bf16.mxu0 0
    %3465 = vmatpush2.bf16.msra.mxu0 0
    %3466 = vmatprep.subr.bf16.mxu0 0
    %3467 = vmatpush2.bf16.msra.mxu0 0
    %3468 = vmatprep.subr.bf16.mxu0 0
    %3469 = vmatpush2.bf16.msra.mxu0 0
    %3470 = vmatprep.subr.bf16.mxu0 0
    %3471 = vmatpush2.bf16.msra.mxu0 0
    %3472 = vmatprep.subr.bf16.mxu0 0
    %3473 = vmatpush2.bf16.msra.mxu0 0
    %3474 = vmatprep.subr.bf16.mxu0 0
    %3475 = vmatpush2.bf16.msra.mxu0 0
    %3476 = vmatprep.subr.bf16.mxu0 0
    %3477 = vmatpush2.bf16.msra.mxu0 0
    %3478 = vmatprep.subr.bf16.mxu0 0
    %3479 = vmatpush2.bf16.msra.mxu0 0
    %3480 = vmatprep.mubr.bf16.mxu0 0
    %3481 = vmatmul.mubr.bf16.gmra.mxu0 %v3150
    %v3482 = vpop.f32.mrf.mxu0
    %v3483 = vadd.f32 %v3432, %v3482
    %v3484 = vpop.f32.mrf.mxu0
    %v3485 = vadd.f32 %v3434, %v3484
    %v3486 = vpop.f32.mrf.mxu0
    %v3487 = vadd.f32 %v3436, %v3486
    %v3488 = vpop.f32.mrf.mxu0
    %v3489 = vadd.f32 %v3438, %v3488
    %3490 = vmatprep.mubr.bf16.mxu0 0
    %3491 = vmatmul.mubr.bf16.gmra.mxu0 %v3149
    %v3492 = vpop.f32.mrf.mxu0
    %v3493 = vadd.f32 %v3442, %v3492
    %v3494 = vpop.f32.mrf.mxu0
    %v3495 = vadd.f32 %v3444, %v3494
    %v3496 = vpop.f32.mrf.mxu0
    %v3497 = vpop.f32.mrf.mxu0
    %3498 = vdwg.mxu0
    %v3499 = vadd.f32 %v3067, %v3483
    %v3500 = vadd.f32 %v3069, %v3485
    %v3501 = vadd.f32 %v3071, %v3487
    %v3502 = vadd.f32 %v3073, %v3489
    %v3503 = vadd.f32 %v3077, %v3493
    %v3504 = vadd.f32 %v3079, %v3495
    %v3505 = vld [vmem:[#allocation3 + $0x18] sm:$0xff]
    %v3506 = vld [vmem:[#allocation3 + $0x20] sm:$0xf]
    %s3507 = scalar_lea.vmem %s7, 1152
    %v3508 = vld [vmem:[%s3507] sm:$0xff]
    %v3509 = vld [vmem:[%s3507 + $0x8] sm:$0xff]
    %v3510 = vld [vmem:[%s3507 + $0x10] sm:$0xff]
    %v3511 = vld [vmem:[%s3507 + $0x18] sm:$0xff]
    %v3512 = vld [vmem:[%s3507 + $0x20] sm:$0xff]
    %v3513 = vld [vmem:[%s3507 + $0x28] sm:$0xff]
    %v3514 = vld [vmem:[%s3507 + $0x30] sm:$0xff]
    %v3515 = vld [vmem:[%s3507 + $0x38] sm:$0xff]
    %v3516 = vld [vmem:[%s3507 + $0x40] sm:$0xff]
    %v3517 = vld [vmem:[%s3507 + $0x48] sm:$0xff]
    %v3518 = vld [vmem:[%s3507 + $0x50] sm:$0xff]
    %v3519 = vld [vmem:[%s3507 + $0x58] sm:$0xff]
    %v3520 = vld [vmem:[%s3507 + $0x60] sm:$0xff]
    %v3521 = vld [vmem:[%s3507 + $0x68] sm:$0xff]
    %v3522 = vld [vmem:[%s3507 + $0x70] sm:$0xff]
    %v3523 = vld [vmem:[%s3507 + $0x78] sm:$0xff]
    %v3524 = vld [vmem:[%s3507 + $0x80] sm:$0xff]
    %v3525 = vld [vmem:[%s3507 + $0x88] sm:$0xff]
    %v3526 = vld [vmem:[%s3507 + $0x90] sm:$0xff]
    %v3527 = vld [vmem:[%s3507 + $0x98] sm:$0xff]
    %v3528 = vld [vmem:[%s3507 + $0xa0] sm:$0xff]
    %v3529 = vld [vmem:[%s3507 + $0xa8] sm:$0xff]
    %v3530 = vld [vmem:[%s3507 + $0xb0] sm:$0xff]
    %v3531 = vld [vmem:[%s3507 + $0xb8] sm:$0xff]
    %v3532 = vld [vmem:[%s3507 + $0xc0] sm:$0xff]
    %v3533 = vld [vmem:[%s3507 + $0xc8] sm:$0xff]
    %v3534 = vld [vmem:[%s3507 + $0xd0] sm:$0xff]
    %v3535 = vld [vmem:[%s3507 + $0xd8] sm:$0xff]
    %v3536 = vld [vmem:[%s3507 + $0xe0] sm:$0xff]
    %v3537 = vld [vmem:[%s3507 + $0xe8] sm:$0xff]
    %v3538 = vld [vmem:[%s3507 + $0xf0] sm:$0xff]
    %v3539 = vld [vmem:[%s3507 + $0xf8] sm:$0xff]
    %v3540 = vld [vmem:[%s3507 + $0x100] sm:$0xff]
    %v3541 = vld [vmem:[%s3507 + $0x108] sm:$0xff]
    %v3542 = vld [vmem:[%s3507 + $0x110] sm:$0xff]
    %v3543 = vld [vmem:[%s3507 + $0x118] sm:$0xff]
    %v3544 = vld [vmem:[%s3507 + $0x120] sm:$0xff]
    %v3545 = vld [vmem:[%s3507 + $0x128] sm:$0xff]
    %v3546 = vld [vmem:[%s3507 + $0x130] sm:$0xff]
    %v3547 = vld [vmem:[%s3507 + $0x138] sm:$0xff]
    %v3548 = vld [vmem:[%s3507 + $0x140] sm:$0xff]
    %v3549 = vld [vmem:[%s3507 + $0x148] sm:$0xff]
    %v3550 = vld [vmem:[%s3507 + $0x150] sm:$0xff]
    %v3551 = vld [vmem:[%s3507 + $0x158] sm:$0xff]
    %v3552 = vld [vmem:[%s3507 + $0x160] sm:$0xff]
    %v3553 = vld [vmem:[%s3507 + $0x168] sm:$0xff]
    %v3554 = vld [vmem:[%s3507 + $0x170] sm:$0xff]
    %v3555 = vld [vmem:[%s3507 + $0x178] sm:$0xff]
    %v3558 = vunpack.c.l.b16 %v3505
    %v3559 = vunpack.c.h.b16 %v3505
    %v3560 = vunpack.c.l.b16 %v3506
    %v3561 = vpack.c.b16 %v3558, %v3558
    %v3562 = vpack.c.b16 %v3559, %v3559
    %v3563 = vpack.c.b16 %v3560, %v3560
    %v3565 = vshrl.u32 %v3139, 16
    %v3567 = vrot.slane %v3565, 1
    %v3568 = vshll.u32 %v3139, 16
    %v3570 = vrot.slane %v3568, 2
    %v3571 = vor.u32 %v3567, %v3570
    %v3573 = vshrl.u32 %v3561, 16
    %v3575 = vrot.slane %v3573, 1
    %v3576 = vshll.u32 %v3561, 16
    %v3578 = vrot.slane %v3576, 2
    %v3579 = vor.u32 %v3575, %v3578
    %v3580 = vsel %vm1716, %v3571, %v3579
    %v3582 = vshrl.u32 %v3140, 16
    %v3584 = vrot.slane %v3582, 1
    %v3585 = vshll.u32 %v3140, 16
    %v3587 = vrot.slane %v3585, 2
    %v3588 = vor.u32 %v3584, %v3587
    %v3590 = vshrl.u32 %v3562, 16
    %v3592 = vrot.slane %v3590, 1
    %v3593 = vshll.u32 %v3562, 16
    %v3595 = vrot.slane %v3593, 2
    %v3596 = vor.u32 %v3592, %v3595
    %v3597 = vsel %vm1716, %v3588, %v3596
    %v3599 = vshrl.u32 %v3141, 16
    %v3601 = vrot.slane %v3599, 1
    %v3602 = vshll.u32 %v3141, 16
    %v3604 = vrot.slane %v3602, 2
    %v3605 = vor.u32 %v3601, %v3604
    %v3607 = vshrl.u32 %v3563, 16
    %v3609 = vrot.slane %v3607, 1
    %v3610 = vshll.u32 %v3563, 16
    %v3612 = vrot.slane %v3610, 2
    %v3613 = vor.u32 %v3609, %v3612
    %v3614 = vsel %vm1716, %v3605, %v3613
    %v3669 = vunpack.c.l.b16 %v3508
    %v3670 = vunpack.c.h.b16 %v3508
    %v3671 = vunpack.c.l.b16 %v3509
    %v3672 = vunpack.c.h.b16 %v3509
    %v3673 = vunpack.c.l.b16 %v3510
    %v3674 = vunpack.c.h.b16 %v3510
    %v3675 = vunpack.c.l.b16 %v3511
    %v3676 = vunpack.c.h.b16 %v3511
    %v3677 = vunpack.c.l.b16 %v3512
    %v3678 = vunpack.c.h.b16 %v3512
    %v3679 = vunpack.c.l.b16 %v3513
    %v3680 = vunpack.c.h.b16 %v3513
    %v3681 = vunpack.c.l.b16 %v3514
    %v3682 = vunpack.c.h.b16 %v3514
    %v3683 = vunpack.c.l.b16 %v3515
    %v3684 = vunpack.c.h.b16 %v3515
    %v3685 = vunpack.c.l.b16 %v3516
    %v3686 = vunpack.c.h.b16 %v3516
    %v3687 = vunpack.c.l.b16 %v3517
    %v3688 = vunpack.c.h.b16 %v3517
    %v3689 = vunpack.c.l.b16 %v3518
    %v3690 = vunpack.c.h.b16 %v3518
    %v3691 = vunpack.c.l.b16 %v3519
    %v3692 = vunpack.c.h.b16 %v3519
    %v3693 = vunpack.c.l.b16 %v3520
    %v3694 = vunpack.c.h.b16 %v3520
    %v3695 = vunpack.c.l.b16 %v3521
    %v3696 = vunpack.c.h.b16 %v3521
    %v3697 = vunpack.c.l.b16 %v3522
    %v3698 = vunpack.c.h.b16 %v3522
    %v3699 = vunpack.c.l.b16 %v3523
    %v3700 = vunpack.c.h.b16 %v3523
    %v3701 = vunpack.c.l.b16 %v3524
    %v3702 = vunpack.c.h.b16 %v3524
    %v3703 = vunpack.c.l.b16 %v3525
    %v3704 = vunpack.c.h.b16 %v3525
    %v3705 = vunpack.c.l.b16 %v3526
    %v3706 = vunpack.c.h.b16 %v3526
    %v3707 = vunpack.c.l.b16 %v3527
    %v3708 = vunpack.c.h.b16 %v3527
    %v3709 = vunpack.c.l.b16 %v3528
    %v3710 = vunpack.c.h.b16 %v3528
    %v3711 = vunpack.c.l.b16 %v3529
    %v3712 = vunpack.c.h.b16 %v3529
    %v3713 = vunpack.c.l.b16 %v3530
    %v3714 = vunpack.c.h.b16 %v3530
    %v3715 = vunpack.c.l.b16 %v3531
    %v3716 = vunpack.c.h.b16 %v3531
    %v3717 = vunpack.c.l.b16 %v3532
    %v3718 = vunpack.c.h.b16 %v3532
    %v3719 = vunpack.c.l.b16 %v3533
    %v3720 = vunpack.c.h.b16 %v3533
    %v3721 = vunpack.c.l.b16 %v3534
    %v3722 = vunpack.c.h.b16 %v3534
    %v3723 = vunpack.c.l.b16 %v3535
    %v3724 = vunpack.c.h.b16 %v3535
    %v3725 = vunpack.c.l.b16 %v3536
    %v3726 = vunpack.c.h.b16 %v3536
    %v3727 = vunpack.c.l.b16 %v3537
    %v3728 = vunpack.c.h.b16 %v3537
    %v3729 = vunpack.c.l.b16 %v3538
    %v3730 = vunpack.c.h.b16 %v3538
    %v3731 = vunpack.c.l.b16 %v3539
    %v3732 = vunpack.c.h.b16 %v3539
    %v3733 = vunpack.c.l.b16 %v3540
    %v3734 = vunpack.c.h.b16 %v3540
    %v3735 = vunpack.c.l.b16 %v3541
    %v3736 = vunpack.c.h.b16 %v3541
    %v3737 = vunpack.c.l.b16 %v3542
    %v3738 = vunpack.c.h.b16 %v3542
    %v3739 = vunpack.c.l.b16 %v3543
    %v3740 = vunpack.c.h.b16 %v3543
    %v3741 = vunpack.c.l.b16 %v3544
    %v3742 = vunpack.c.h.b16 %v3544
    %v3743 = vunpack.c.l.b16 %v3545
    %v3744 = vunpack.c.h.b16 %v3545
    %v3745 = vunpack.c.l.b16 %v3546
    %v3746 = vunpack.c.h.b16 %v3546
    %v3747 = vunpack.c.l.b16 %v3547
    %v3748 = vunpack.c.h.b16 %v3547
    %v3749 = vunpack.c.l.b16 %v3548
    %v3750 = vunpack.c.h.b16 %v3548
    %v3751 = vunpack.c.l.b16 %v3549
    %v3752 = vunpack.c.h.b16 %v3549
    %v3753 = vunpack.c.l.b16 %v3550
    %v3754 = vunpack.c.h.b16 %v3550
    %v3755 = vunpack.c.l.b16 %v3551
    %v3756 = vunpack.c.h.b16 %v3551
    %v3757 = vunpack.c.l.b16 %v3552
    %v3758 = vunpack.c.h.b16 %v3552
    %v3759 = vunpack.c.l.b16 %v3553
    %v3760 = vunpack.c.h.b16 %v3553
    %v3761 = vunpack.c.l.b16 %v3554
    %v3762 = vunpack.c.h.b16 %v3554
    %v3763 = vunpack.c.l.b16 %v3555
    %v3764 = vunpack.c.h.b16 %v3555
    %v3765 = vpack.c.b16 %v3671, %v3669
    %v3766 = vpack.c.b16 %v3672, %v3670
    %v3767 = vpack.c.b16 %v3675, %v3673
    %v3768 = vpack.c.b16 %v3676, %v3674
    %v3769 = vpack.c.b16 %v3679, %v3677
    %v3770 = vpack.c.b16 %v3680, %v3678
    %v3771 = vpack.c.b16 %v3683, %v3681
    %v3772 = vpack.c.b16 %v3684, %v3682
    %v3773 = vpack.c.b16 %v3687, %v3685
    %v3774 = vpack.c.b16 %v3688, %v3686
    %v3775 = vpack.c.b16 %v3691, %v3689
    %v3776 = vpack.c.b16 %v3692, %v3690
    %v3777 = vpack.c.b16 %v3695, %v3693
    %v3778 = vpack.c.b16 %v3696, %v3694
    %v3779 = vpack.c.b16 %v3699, %v3697
    %v3780 = vpack.c.b16 %v3700, %v3698
    %v3781 = vpack.c.b16 %v3703, %v3701
    %v3782 = vpack.c.b16 %v3704, %v3702
    %v3783 = vpack.c.b16 %v3707, %v3705
    %v3784 = vpack.c.b16 %v3708, %v3706
    %v3785 = vpack.c.b16 %v3711, %v3709
    %v3786 = vpack.c.b16 %v3712, %v3710
    %v3787 = vpack.c.b16 %v3715, %v3713
    %v3788 = vpack.c.b16 %v3716, %v3714
    %v3789 = vpack.c.b16 %v3719, %v3717
    %v3790 = vpack.c.b16 %v3720, %v3718
    %v3791 = vpack.c.b16 %v3723, %v3721
    %v3792 = vpack.c.b16 %v3724, %v3722
    %v3793 = vpack.c.b16 %v3727, %v3725
    %v3794 = vpack.c.b16 %v3728, %v3726
    %v3795 = vpack.c.b16 %v3731, %v3729
    %v3796 = vpack.c.b16 %v3732, %v3730
    %v3797 = vpack.c.b16 %v3735, %v3733
    %v3798 = vpack.c.b16 %v3736, %v3734
    %v3799 = vpack.c.b16 %v3739, %v3737
    %v3800 = vpack.c.b16 %v3740, %v3738
    %v3801 = vpack.c.b16 %v3743, %v3741
    %v3802 = vpack.c.b16 %v3744, %v3742
    %v3803 = vpack.c.b16 %v3747, %v3745
    %v3804 = vpack.c.b16 %v3748, %v3746
    %v3805 = vpack.c.b16 %v3751, %v3749
    %v3806 = vpack.c.b16 %v3752, %v3750
    %v3807 = vpack.c.b16 %v3755, %v3753
    %v3808 = vpack.c.b16 %v3756, %v3754
    %v3809 = vpack.c.b16 %v3759, %v3757
    %v3810 = vpack.c.b16 %v3760, %v3758
    %v3811 = vpack.c.b16 %v3763, %v3761
    %v3812 = vpack.c.b16 %v3764, %v3762
    %3861 = vmatprep.subr.bf16.mxu0 %v3780
    %3862 = vmatpush1.bf16.msra.mxu0 %v3779
    %3863 = vmatprep.subr.bf16.mxu0 %v3778
    %3864 = vmatpush1.bf16.msra.mxu0 %v3777
    %3865 = vmatprep.subr.bf16.mxu0 %v3776
    %3866 = vmatpush1.bf16.msra.mxu0 %v3775
    %3867 = vmatprep.subr.bf16.mxu0 %v3774
    %3868 = vmatpush1.bf16.msra.mxu0 %v3773
    %3869 = vmatprep.subr.bf16.mxu0 %v3772
    %3870 = vmatpush1.bf16.msra.mxu0 %v3771
    %3871 = vmatprep.subr.bf16.mxu0 %v3770
    %3872 = vmatpush1.bf16.msra.mxu0 %v3769
    %3873 = vmatprep.subr.bf16.mxu0 %v3768
    %3874 = vmatpush1.bf16.msra.mxu0 %v3767
    %3875 = vmatprep.subr.bf16.mxu0 %v3766
    %3876 = vmatpush1.bf16.msra.mxu0 %v3765
    %3877 = vmatprep.subr.bf16.mxu0 %v3796
    %3878 = vmatpush2.bf16.msra.mxu0 %v3795
    %3879 = vmatprep.subr.bf16.mxu0 %v3794
    %3880 = vmatpush2.bf16.msra.mxu0 %v3793
    %3881 = vmatprep.subr.bf16.mxu0 %v3792
    %3882 = vmatpush2.bf16.msra.mxu0 %v3791
    %3883 = vmatprep.subr.bf16.mxu0 %v3790
    %3884 = vmatpush2.bf16.msra.mxu0 %v3789
    %3885 = vmatprep.subr.bf16.mxu0 %v3788
    %3886 = vmatpush2.bf16.msra.mxu0 %v3787
    %3887 = vmatprep.subr.bf16.mxu0 %v3786
    %3888 = vmatpush2.bf16.msra.mxu0 %v3785
    %3889 = vmatprep.subr.bf16.mxu0 %v3784
    %3890 = vmatpush2.bf16.msra.mxu0 %v3783
    %3891 = vmatprep.subr.bf16.mxu0 %v3782
    %3892 = vmatpush2.bf16.msra.mxu0 %v3781
    %3893 = vmatprep.mubr.bf16.mxu0 %v3597
    %3894 = vmatmul.mubr.bf16.gmra.mxu0 %v3580
    %v3895 = vpop.f32.mrf.mxu0
    %v3896 = vadd.f32 0.0, %v3895
    %v3897 = vpop.f32.mrf.mxu0
    %v3898 = vadd.f32 0.0, %v3897
    %v3899 = vpop.f32.mrf.mxu0
    %v3900 = vadd.f32 0.0, %v3899
    %v3901 = vpop.f32.mrf.mxu0
    %v3902 = vadd.f32 0.0, %v3901
    %3903 = vmatprep.mubr.bf16.mxu0 %v3596
    %3904 = vmatmul.mubr.bf16.gmra.mxu0 %v3579
    %v3905 = vpop.f32.mrf.mxu0
    %v3906 = vadd.f32 0.0, %v3905
    %v3907 = vpop.f32.mrf.mxu0
    %v3908 = vadd.f32 0.0, %v3907
    %v3909 = vpop.f32.mrf.mxu0
    %v3910 = vpop.f32.mrf.mxu0
    %3911 = vdwg.mxu0
    %3912 = vmatprep.subr.bf16.mxu0 %v3812
    %3913 = vmatpush1.bf16.msra.mxu0 %v3811
    %3914 = vmatprep.subr.bf16.mxu0 %v3810
    %3915 = vmatpush1.bf16.msra.mxu0 %v3809
    %3916 = vmatprep.subr.bf16.mxu0 %v3808
    %3917 = vmatpush1.bf16.msra.mxu0 %v3807
    %3918 = vmatprep.subr.bf16.mxu0 %v3806
    %3919 = vmatpush1.bf16.msra.mxu0 %v3805
    %3920 = vmatprep.subr.bf16.mxu0 %v3804
    %3921 = vmatpush1.bf16.msra.mxu0 %v3803
    %3922 = vmatprep.subr.bf16.mxu0 %v3802
    %3923 = vmatpush1.bf16.msra.mxu0 %v3801
    %3924 = vmatprep.subr.bf16.mxu0 %v3800
    %3925 = vmatpush1.bf16.msra.mxu0 %v3799
    %3926 = vmatprep.subr.bf16.mxu0 %v3798
    %3927 = vmatpush1.bf16.msra.mxu0 %v3797
    %3928 = vmatprep.subr.bf16.mxu0 0
    %3929 = vmatpush2.bf16.msra.mxu0 0
    %3930 = vmatprep.subr.bf16.mxu0 0
    %3931 = vmatpush2.bf16.msra.mxu0 0
    %3932 = vmatprep.subr.bf16.mxu0 0
    %3933 = vmatpush2.bf16.msra.mxu0 0
    %3934 = vmatprep.subr.bf16.mxu0 0
    %3935 = vmatpush2.bf16.msra.mxu0 0
    %3936 = vmatprep.subr.bf16.mxu0 0
    %3937 = vmatpush2.bf16.msra.mxu0 0
    %3938 = vmatprep.subr.bf16.mxu0 0
    %3939 = vmatpush2.bf16.msra.mxu0 0
    %3940 = vmatprep.subr.bf16.mxu0 0
    %3941 = vmatpush2.bf16.msra.mxu0 0
    %3942 = vmatprep.subr.bf16.mxu0 0
    %3943 = vmatpush2.bf16.msra.mxu0 0
    %3944 = vmatprep.mubr.bf16.mxu0 0
    %3945 = vmatmul.mubr.bf16.gmra.mxu0 %v3614
    %v3946 = vpop.f32.mrf.mxu0
    %v3947 = vadd.f32 %v3896, %v3946
    %v3948 = vpop.f32.mrf.mxu0
    %v3949 = vadd.f32 %v3898, %v3948
    %v3950 = vpop.f32.mrf.mxu0
    %v3951 = vadd.f32 %v3900, %v3950
    %v3952 = vpop.f32.mrf.mxu0
    %v3953 = vadd.f32 %v3902, %v3952
    %3954 = vmatprep.mubr.bf16.mxu0 0
    %3955 = vmatmul.mubr.bf16.gmra.mxu0 %v3613
    %v3956 = vpop.f32.mrf.mxu0
    %v3957 = vadd.f32 %v3906, %v3956
    %v3958 = vpop.f32.mrf.mxu0
    %v3959 = vadd.f32 %v3908, %v3958
    %v3960 = vpop.f32.mrf.mxu0
    %v3961 = vpop.f32.mrf.mxu0
    %3962 = vdwg.mxu0
    %v3963 = vadd.f32 %v3499, %v3947
    %v3964 = vadd.f32 %v3500, %v3949
    %v3965 = vadd.f32 %v3501, %v3951
    %v3966 = vadd.f32 %v3502, %v3953
    %v3967 = vadd.f32 %v3503, %v3957
    %v3968 = vadd.f32 %v3504, %v3959
    %v3969 = vld [vmem:[#allocation3] sm:$0xcc]
    %v3970 = vld [vmem:[#allocation3 + $0x8] sm:$0xc]
    %s3971 = scalar_lea.vmem %s7, 1536
    %v3972 = vld [vmem:[%s3971] sm:$0xff]
    %v3973 = vld [vmem:[%s3971 + $0x8] sm:$0xff]
    %v3974 = vld [vmem:[%s3971 + $0x10] sm:$0xff]
    %v3975 = vld [vmem:[%s3971 + $0x18] sm:$0xff]
    %v3976 = vld [vmem:[%s3971 + $0x20] sm:$0xff]
    %v3977 = vld [vmem:[%s3971 + $0x28] sm:$0xff]
    %v3978 = vld [vmem:[%s3971 + $0x30] sm:$0xff]
    %v3979 = vld [vmem:[%s3971 + $0x38] sm:$0xff]
    %v3980 = vld [vmem:[%s3971 + $0x40] sm:$0xff]
    %v3981 = vld [vmem:[%s3971 + $0x48] sm:$0xff]
    %v3982 = vld [vmem:[%s3971 + $0x50] sm:$0xff]
    %v3983 = vld [vmem:[%s3971 + $0x58] sm:$0xff]
    %v3984 = vld [vmem:[%s3971 + $0x60] sm:$0xff]
    %v3985 = vld [vmem:[%s3971 + $0x68] sm:$0xff]
    %v3986 = vld [vmem:[%s3971 + $0x70] sm:$0xff]
    %v3987 = vld [vmem:[%s3971 + $0x78] sm:$0xff]
    %v3988 = vld [vmem:[%s3971 + $0x80] sm:$0xff]
    %v3989 = vld [vmem:[%s3971 + $0x88] sm:$0xff]
    %v3990 = vld [vmem:[%s3971 + $0x90] sm:$0xff]
    %v3991 = vld [vmem:[%s3971 + $0x98] sm:$0xff]
    %v3992 = vld [vmem:[%s3971 + $0xa0] sm:$0xff]
    %v3993 = vld [vmem:[%s3971 + $0xa8] sm:$0xff]
    %v3994 = vld [vmem:[%s3971 + $0xb0] sm:$0xff]
    %v3995 = vld [vmem:[%s3971 + $0xb8] sm:$0xff]
    %v3996 = vld [vmem:[%s3971 + $0xc0] sm:$0xff]
    %v3997 = vld [vmem:[%s3971 + $0xc8] sm:$0xff]
    %v3998 = vld [vmem:[%s3971 + $0xd0] sm:$0xff]
    %v3999 = vld [vmem:[%s3971 + $0xd8] sm:$0xff]
    %v4000 = vld [vmem:[%s3971 + $0xe0] sm:$0xff]
    %v4001 = vld [vmem:[%s3971 + $0xe8] sm:$0xff]
    %v4002 = vld [vmem:[%s3971 + $0xf0] sm:$0xff]
    %v4003 = vld [vmem:[%s3971 + $0xf8] sm:$0xff]
    %v4004 = vld [vmem:[%s3971 + $0x100] sm:$0xff]
    %v4005 = vld [vmem:[%s3971 + $0x108] sm:$0xff]
    %v4006 = vld [vmem:[%s3971 + $0x110] sm:$0xff]
    %v4007 = vld [vmem:[%s3971 + $0x118] sm:$0xff]
    %v4008 = vld [vmem:[%s3971 + $0x120] sm:$0xff]
    %v4009 = vld [vmem:[%s3971 + $0x128] sm:$0xff]
    %v4010 = vld [vmem:[%s3971 + $0x130] sm:$0xff]
    %v4011 = vld [vmem:[%s3971 + $0x138] sm:$0xff]
    %v4012 = vld [vmem:[%s3971 + $0x140] sm:$0xff]
    %v4013 = vld [vmem:[%s3971 + $0x148] sm:$0xff]
    %v4014 = vld [vmem:[%s3971 + $0x150] sm:$0xff]
    %v4015 = vld [vmem:[%s3971 + $0x158] sm:$0xff]
    %v4016 = vld [vmem:[%s3971 + $0x160] sm:$0xff]
    %v4017 = vld [vmem:[%s3971 + $0x168] sm:$0xff]
    %v4018 = vld [vmem:[%s3971 + $0x170] sm:$0xff]
    %v4019 = vld [vmem:[%s3971 + $0x178] sm:$0xff]
    %v4022 = vunpack.c.l.b16 %v3969
    %v4023 = vunpack.c.h.b16 %v3969
    %v4024 = vunpack.c.l.b16 %v3970
    %v4025 = vpack.c.b16 %v2322, %v4022
    %v4026 = vpack.c.b16 %v2323, %v4023
    %v4027 = vpack.c.b16 %v2324, %v4024
    %v4028 = vrot.slane %v4025, 2
    %v4029 = vrot.slane %v3561, 2
    %v4030 = vsel %vm1933, %v4028, %v4029
    %v4031 = vrot.slane %v4026, 2
    %v4032 = vrot.slane %v3562, 2
    %v4033 = vsel %vm1933, %v4031, %v4032
    %v4034 = vrot.slane %v4027, 2
    %v4035 = vrot.slane %v3563, 2
    %v4036 = vsel %vm1933, %v4034, %v4035
    %v4091 = vunpack.c.l.b16 %v3972
    %v4092 = vunpack.c.h.b16 %v3972
    %v4093 = vunpack.c.l.b16 %v3973
    %v4094 = vunpack.c.h.b16 %v3973
    %v4095 = vunpack.c.l.b16 %v3974
    %v4096 = vunpack.c.h.b16 %v3974
    %v4097 = vunpack.c.l.b16 %v3975
    %v4098 = vunpack.c.h.b16 %v3975
    %v4099 = vunpack.c.l.b16 %v3976
    %v4100 = vunpack.c.h.b16 %v3976
    %v4101 = vunpack.c.l.b16 %v3977
    %v4102 = vunpack.c.h.b16 %v3977
    %v4103 = vunpack.c.l.b16 %v3978
    %v4104 = vunpack.c.h.b16 %v3978
    %v4105 = vunpack.c.l.b16 %v3979
    %v4106 = vunpack.c.h.b16 %v3979
    %v4107 = vunpack.c.l.b16 %v3980
    %v4108 = vunpack.c.h.b16 %v3980
    %v4109 = vunpack.c.l.b16 %v3981
    %v4110 = vunpack.c.h.b16 %v3981
    %v4111 = vunpack.c.l.b16 %v3982
    %v4112 = vunpack.c.h.b16 %v3982
    %v4113 = vunpack.c.l.b16 %v3983
    %v4114 = vunpack.c.h.b16 %v3983
    %v4115 = vunpack.c.l.b16 %v3984
    %v4116 = vunpack.c.h.b16 %v3984
    %v4117 = vunpack.c.l.b16 %v3985
    %v4118 = vunpack.c.h.b16 %v3985
    %v4119 = vunpack.c.l.b16 %v3986
    %v4120 = vunpack.c.h.b16 %v3986
    %v4121 = vunpack.c.l.b16 %v3987
    %v4122 = vunpack.c.h.b16 %v3987
    %v4123 = vunpack.c.l.b16 %v3988
    %v4124 = vunpack.c.h.b16 %v3988
    %v4125 = vunpack.c.l.b16 %v3989
    %v4126 = vunpack.c.h.b16 %v3989
    %v4127 = vunpack.c.l.b16 %v3990
    %v4128 = vunpack.c.h.b16 %v3990
    %v4129 = vunpack.c.l.b16 %v3991
    %v4130 = vunpack.c.h.b16 %v3991
    %v4131 = vunpack.c.l.b16 %v3992
    %v4132 = vunpack.c.h.b16 %v3992
    %v4133 = vunpack.c.l.b16 %v3993
    %v4134 = vunpack.c.h.b16 %v3993
    %v4135 = vunpack.c.l.b16 %v3994
    %v4136 = vunpack.c.h.b16 %v3994
    %v4137 = vunpack.c.l.b16 %v3995
    %v4138 = vunpack.c.h.b16 %v3995
    %v4139 = vunpack.c.l.b16 %v3996
    %v4140 = vunpack.c.h.b16 %v3996
    %v4141 = vunpack.c.l.b16 %v3997
    %v4142 = vunpack.c.h.b16 %v3997
    %v4143 = vunpack.c.l.b16 %v3998
    %v4144 = vunpack.c.h.b16 %v3998
    %v4145 = vunpack.c.l.b16 %v3999
    %v4146 = vunpack.c.h.b16 %v3999
    %v4147 = vunpack.c.l.b16 %v4000
    %v4148 = vunpack.c.h.b16 %v4000
    %v4149 = vunpack.c.l.b16 %v4001
    %v4150 = vunpack.c.h.b16 %v4001
    %v4151 = vunpack.c.l.b16 %v4002
    %v4152 = vunpack.c.h.b16 %v4002
    %v4153 = vunpack.c.l.b16 %v4003
    %v4154 = vunpack.c.h.b16 %v4003
    %v4155 = vunpack.c.l.b16 %v4004
    %v4156 = vunpack.c.h.b16 %v4004
    %v4157 = vunpack.c.l.b16 %v4005
    %v4158 = vunpack.c.h.b16 %v4005
    %v4159 = vunpack.c.l.b16 %v4006
    %v4160 = vunpack.c.h.b16 %v4006
    %v4161 = vunpack.c.l.b16 %v4007
    %v4162 = vunpack.c.h.b16 %v4007
    %v4163 = vunpack.c.l.b16 %v4008
    %v4164 = vunpack.c.h.b16 %v4008
    %v4165 = vunpack.c.l.b16 %v4009
    %v4166 = vunpack.c.h.b16 %v4009
    %v4167 = vunpack.c.l.b16 %v4010
    %v4168 = vunpack.c.h.b16 %v4010
    %v4169 = vunpack.c.l.b16 %v4011
    %v4170 = vunpack.c.h.b16 %v4011
    %v4171 = vunpack.c.l.b16 %v4012
    %v4172 = vunpack.c.h.b16 %v4012
    %v4173 = vunpack.c.l.b16 %v4013
    %v4174 = vunpack.c.h.b16 %v4013
    %v4175 = vunpack.c.l.b16 %v4014
    %v4176 = vunpack.c.h.b16 %v4014
    %v4177 = vunpack.c.l.b16 %v4015
    %v4178 = vunpack.c.h.b16 %v4015
    %v4179 = vunpack.c.l.b16 %v4016
    %v4180 = vunpack.c.h.b16 %v4016
    %v4181 = vunpack.c.l.b16 %v4017
    %v4182 = vunpack.c.h.b16 %v4017
    %v4183 = vunpack.c.l.b16 %v4018
    %v4184 = vunpack.c.h.b16 %v4018
    %v4185 = vunpack.c.l.b16 %v4019
    %v4186 = vunpack.c.h.b16 %v4019
    %v4187 = vpack.c.b16 %v4093, %v4091
    %v4188 = vpack.c.b16 %v4094, %v4092
    %v4189 = vpack.c.b16 %v4097, %v4095
    %v4190 = vpack.c.b16 %v4098, %v4096
    %v4191 = vpack.c.b16 %v4101, %v4099
    %v4192 = vpack.c.b16 %v4102, %v4100
    %v4193 = vpack.c.b16 %v4105, %v4103
    %v4194 = vpack.c.b16 %v4106, %v4104
    %v4195 = vpack.c.b16 %v4109, %v4107
    %v4196 = vpack.c.b16 %v4110, %v4108
    %v4197 = vpack.c.b16 %v4113, %v4111
    %v4198 = vpack.c.b16 %v4114, %v4112
    %v4199 = vpack.c.b16 %v4117, %v4115
    %v4200 = vpack.c.b16 %v4118, %v4116
    %v4201 = vpack.c.b16 %v4121, %v4119
    %v4202 = vpack.c.b16 %v4122, %v4120
    %v4203 = vpack.c.b16 %v4125, %v4123
    %v4204 = vpack.c.b16 %v4126, %v4124
    %v4205 = vpack.c.b16 %v4129, %v4127
    %v4206 = vpack.c.b16 %v4130, %v4128
    %v4207 = vpack.c.b16 %v4133, %v4131
    %v4208 = vpack.c.b16 %v4134, %v4132
    %v4209 = vpack.c.b16 %v4137, %v4135
    %v4210 = vpack.c.b16 %v4138, %v4136
    %v4211 = vpack.c.b16 %v4141, %v4139
    %v4212 = vpack.c.b16 %v4142, %v4140
    %v4213 = vpack.c.b16 %v4145, %v4143
    %v4214 = vpack.c.b16 %v4146, %v4144
    %v4215 = vpack.c.b16 %v4149, %v4147
    %v4216 = vpack.c.b16 %v4150, %v4148
    %v4217 = vpack.c.b16 %v4153, %v4151
    %v4218 = vpack.c.b16 %v4154, %v4152
    %v4219 = vpack.c.b16 %v4157, %v4155
    %v4220 = vpack.c.b16 %v4158, %v4156
    %v4221 = vpack.c.b16 %v4161, %v4159
    %v4222 = vpack.c.b16 %v4162, %v4160
    %v4223 = vpack.c.b16 %v4165, %v4163
    %v4224 = vpack.c.b16 %v4166, %v4164
    %v4225 = vpack.c.b16 %v4169, %v4167
    %v4226 = vpack.c.b16 %v4170, %v4168
    %v4227 = vpack.c.b16 %v4173, %v4171
    %v4228 = vpack.c.b16 %v4174, %v4172
    %v4229 = vpack.c.b16 %v4177, %v4175
    %v4230 = vpack.c.b16 %v4178, %v4176
    %v4231 = vpack.c.b16 %v4181, %v4179
    %v4232 = vpack.c.b16 %v4182, %v4180
    %v4233 = vpack.c.b16 %v4185, %v4183
    %v4234 = vpack.c.b16 %v4186, %v4184
    %4283 = vmatprep.subr.bf16.mxu0 %v4202
    %4284 = vmatpush1.bf16.msra.mxu0 %v4201
    %4285 = vmatprep.subr.bf16.mxu0 %v4200
    %4286 = vmatpush1.bf16.msra.mxu0 %v4199
    %4287 = vmatprep.subr.bf16.mxu0 %v4198
    %4288 = vmatpush1.bf16.msra.mxu0 %v4197
    %4289 = vmatprep.subr.bf16.mxu0 %v4196
    %4290 = vmatpush1.bf16.msra.mxu0 %v4195
    %4291 = vmatprep.subr.bf16.mxu0 %v4194
    %4292 = vmatpush1.bf16.msra.mxu0 %v4193
    %4293 = vmatprep.subr.bf16.mxu0 %v4192
    %4294 = vmatpush1.bf16.msra.mxu0 %v4191
    %4295 = vmatprep.subr.bf16.mxu0 %v4190
    %4296 = vmatpush1.bf16.msra.mxu0 %v4189
    %4297 = vmatprep.subr.bf16.mxu0 %v4188
    %4298 = vmatpush1.bf16.msra.mxu0 %v4187
    %4299 = vmatprep.subr.bf16.mxu0 %v4218
    %4300 = vmatpush2.bf16.msra.mxu0 %v4217
    %4301 = vmatprep.subr.bf16.mxu0 %v4216
    %4302 = vmatpush2.bf16.msra.mxu0 %v4215
    %4303 = vmatprep.subr.bf16.mxu0 %v4214
    %4304 = vmatpush2.bf16.msra.mxu0 %v4213
    %4305 = vmatprep.subr.bf16.mxu0 %v4212
    %4306 = vmatpush2.bf16.msra.mxu0 %v4211
    %4307 = vmatprep.subr.bf16.mxu0 %v4210
    %4308 = vmatpush2.bf16.msra.mxu0 %v4209
    %4309 = vmatprep.subr.bf16.mxu0 %v4208
    %4310 = vmatpush2.bf16.msra.mxu0 %v4207
    %4311 = vmatprep.subr.bf16.mxu0 %v4206
    %4312 = vmatpush2.bf16.msra.mxu0 %v4205
    %4313 = vmatprep.subr.bf16.mxu0 %v4204
    %4314 = vmatpush2.bf16.msra.mxu0 %v4203
    %4315 = vmatprep.mubr.bf16.mxu0 %v4033
    %4316 = vmatmul.mubr.bf16.gmra.mxu0 %v4030
    %v4317 = vpop.f32.mrf.mxu0
    %v4318 = vadd.f32 0.0, %v4317
    %v4319 = vpop.f32.mrf.mxu0
    %v4320 = vadd.f32 0.0, %v4319
    %v4321 = vpop.f32.mrf.mxu0
    %v4322 = vadd.f32 0.0, %v4321
    %v4323 = vpop.f32.mrf.mxu0
    %v4324 = vadd.f32 0.0, %v4323
    %4325 = vmatprep.mubr.bf16.mxu0 %v4032
    %4326 = vmatmul.mubr.bf16.gmra.mxu0 %v4029
    %v4327 = vpop.f32.mrf.mxu0
    %v4328 = vadd.f32 0.0, %v4327
    %v4329 = vpop.f32.mrf.mxu0
    %v4330 = vadd.f32 0.0, %v4329
    %v4331 = vpop.f32.mrf.mxu0
    %v4332 = vpop.f32.mrf.mxu0
    %4333 = vdwg.mxu0
    %4334 = vmatprep.subr.bf16.mxu0 %v4234
    %4335 = vmatpush1.bf16.msra.mxu0 %v4233
    %4336 = vmatprep.subr.bf16.mxu0 %v4232
    %4337 = vmatpush1.bf16.msra.mxu0 %v4231
    %4338 = vmatprep.subr.bf16.mxu0 %v4230
    %4339 = vmatpush1.bf16.msra.mxu0 %v4229
    %4340 = vmatprep.subr.bf16.mxu0 %v4228
    %4341 = vmatpush1.bf16.msra.mxu0 %v4227
    %4342 = vmatprep.subr.bf16.mxu0 %v4226
    %4343 = vmatpush1.bf16.msra.mxu0 %v4225
    %4344 = vmatprep.subr.bf16.mxu0 %v4224
    %4345 = vmatpush1.bf16.msra.mxu0 %v4223
    %4346 = vmatprep.subr.bf16.mxu0 %v4222
    %4347 = vmatpush1.bf16.msra.mxu0 %v4221
    %4348 = vmatprep.subr.bf16.mxu0 %v4220
    %4349 = vmatpush1.bf16.msra.mxu0 %v4219
    %4350 = vmatprep.subr.bf16.mxu0 0
    %4351 = vmatpush2.bf16.msra.mxu0 0
    %4352 = vmatprep.subr.bf16.mxu0 0
    %4353 = vmatpush2.bf16.msra.mxu0 0
    %4354 = vmatprep.subr.bf16.mxu0 0
    %4355 = vmatpush2.bf16.msra.mxu0 0
    %4356 = vmatprep.subr.bf16.mxu0 0
    %4357 = vmatpush2.bf16.msra.mxu0 0
    %4358 = vmatprep.subr.bf16.mxu0 0
    %4359 = vmatpush2.bf16.msra.mxu0 0
    %4360 = vmatprep.subr.bf16.mxu0 0
    %4361 = vmatpush2.bf16.msra.mxu0 0
    %4362 = vmatprep.subr.bf16.mxu0 0
    %4363 = vmatpush2.bf16.msra.mxu0 0
    %4364 = vmatprep.subr.bf16.mxu0 0
    %4365 = vmatpush2.bf16.msra.mxu0 0
    %4366 = vmatprep.mubr.bf16.mxu0 0
    %4367 = vmatmul.mubr.bf16.gmra.mxu0 %v4036
    %v4368 = vpop.f32.mrf.mxu0
    %v4369 = vadd.f32 %v4318, %v4368
    %v4370 = vpop.f32.mrf.mxu0
    %v4371 = vadd.f32 %v4320, %v4370
    %v4372 = vpop.f32.mrf.mxu0
    %v4373 = vadd.f32 %v4322, %v4372
    %v4374 = vpop.f32.mrf.mxu0
    %v4375 = vadd.f32 %v4324, %v4374
    %4376 = vmatprep.mubr.bf16.mxu0 0
    %4377 = vmatmul.mubr.bf16.gmra.mxu0 %v4035
    %v4378 = vpop.f32.mrf.mxu0
    %v4379 = vadd.f32 %v4328, %v4378
    %v4380 = vpop.f32.mrf.mxu0
    %v4381 = vadd.f32 %v4330, %v4380
    %v4382 = vpop.f32.mrf.mxu0
    %v4383 = vpop.f32.mrf.mxu0
    %4384 = vdwg.mxu0
    %v4385 = vadd.f32 %v3963, %v4369
    %v4386 = vadd.f32 %v3964, %v4371
    %v4387 = vadd.f32 %v3965, %v4373
    %v4388 = vadd.f32 %v3966, %v4375
    %v4389 = vadd.f32 %v3967, %v4379
    %v4390 = vadd.f32 %v3968, %v4381
    %v4391 = vld [vmem:[%s8] sm:$0x3]
    %v4393 = vlaneseq
    %v4394 = vshrl.u32 %v4393, 7
    %v4395 = vsub.s32 0, %v4394
    %v4396 = vrot.slane %v4391, %v4395
    %v4397 = vlaneseq
    %v4398 = vshrl.u32 %v4397, 7
    %v4399 = vsub.s32 1, %v4398
    %v4400 = vrot.slane %v4391, %v4399
    %v4403 = vadd.f32 %v4385, %v4396
    %v4404 = vadd.f32 %v4386, %v4400
    %v4405 = vtanh.pop %v4403
    %v4406 = vtanh.pop %v4404
    %4408 = vrot.lane.b32.xlu0 %v4405, 96
    %v4409 = vpop.permute.xlu0 %4408
    %v4411 = vadd.f32 %v4405, %v4409
    %4412 = vrot.lane.b32.xlu0 %v4405, 64
    %v4413 = vpop.permute.xlu0 %4412
    %v4415 = vadd.f32 %v4411, %v4413
    %4416 = vrot.lane.b32.xlu0 %v4405, 32
    %v4417 = vpop.permute.xlu0 %4416
    %v4419 = vadd.f32 %v4415, %v4417
    %v4420 = vadd.f32 %v4419, %v4406
    %4421 = vst.msk [vmem:[#allocation4] sm:$0xff] %vm153, %v4420
    %v4422 = vadd.f32 %v4387, %v4396
    %v4423 = vadd.f32 %v4388, %v4400
    %v4424 = vadd.f32 %v4389, %v4396
    %v4425 = vadd.f32 %v4390, %v4400
    %v4426 = vtanh.pop %v4422
    %v4427 = vtanh.pop %v4423
    %v4428 = vtanh.pop %v4424
    %v4429 = vtanh.pop %v4425
    %4432 = vrot.lane.b32.xlu0 %v4426, 96
    %v4433 = vpop.permute.xlu0 %4432
    %4434 = vrot.lane.b32.xlu0 %v4428, 96
    %v4435 = vpop.permute.xlu0 %4434
    %v4438 = vadd.f32 %v4426, %v4433
    %v4439 = vadd.f32 %v4428, %v4435
    %4440 = vrot.lane.b32.xlu0 %v4426, 64
    %v4441 = vpop.permute.xlu0 %4440
    %4442 = vrot.lane.b32.xlu0 %v4428, 64
    %v4443 = vpop.permute.xlu0 %4442
    %v4446 = vadd.f32 %v4438, %v4441
    %v4447 = vadd.f32 %v4439, %v4443
    %4448 = vrot.lane.b32.xlu0 %v4426, 32
    %v4449 = vpop.permute.xlu0 %4448
    %4450 = vrot.lane.b32.xlu0 %v4428, 32
    %v4451 = vpop.permute.xlu0 %4450
    %v4454 = vadd.f32 %v4446, %v4449
    %v4455 = vadd.f32 %v4447, %v4451
    %v4456 = vadd.f32 %v4454, %v4427
    %v4457 = vadd.f32 %v4455, %v4429
    %s4458 = scalar_lea.vmem [#allocation4], 8
    %vm4459 = vcmask 261124
    %4460 = vst.msk [vmem:[%s4458 - $0x4] sm:$0xf0] %vm4459, %v4456
    %vm4461 = vcmask 257024
    %4462 = vst.msk [vmem:[%s4458 + $0x4] sm:$0xf] %vm4461, %v4457
    // Predicated region
    $region38: #{network_forward.1} parent=1 // pred_check
      _
    $region39: #{network_forward.1} parent=1 // pred_check_branch
      %4464 = sbr.rel (0) target = $region41
    $region40: #{network_forward.1} parent=1 // pred_region
      %s4466 = ssub.s32 256, 256
      %4467 = vsyncadd [#allocation5], %s4466
      %s4468 = sshll.u32 [#allocation4], 4
      %s4469 = int_to_ptr.vmem [resolvable:$true] %s4468
      %4474 = dma.vmem_to_hbm [thread:$0]  %s4469, 256, %s9, [#allocation5], 128, 128, 8
    $region41: #{network_forward.1} parent=1 // pred_fallthru
      _
    // Predicated region
    $region42: #{network_forward.1} parent=1 // pred_check
      _
    $region43: #{network_forward.1} parent=1 // pred_check_branch
      %4476 = sbr.rel (0) target = $region45
    $region44: #{network_forward.1} parent=1 // pred_region
      %4477 = dma.done [#allocation5], 256
    $region45: #{network_forward.1} parent=1 // pred_fallthru
      _
    %4478 = vsyncpa [#allocation5], 1

</llo_original>
